<compile_context>
chip_gen: v6e
topology: v6e:2x2x1
jax: 0.10.0
libtpu: 0.0.40
codegen_flags: <defaults>
</compile_context>

<pallas_src>
import functools

import jax
import jax.numpy as jnp
from jax import lax
from jax.experimental import pallas as pl
from jax.experimental.pallas import tpu as pltpu

_UNROLL_T_LIMIT = 16  # fully unroll the time loop only for small static T


def _rk4_ode_kernel(y0_ref, w1_ref, b1_ref, w2_ref, b2_ref, out_ref, *, interleave):
    """Fixed-step (dt = 1) RK4 integrator for one row-tile of independent ODEs.

    y0_ref : [tm, D]  f32   initial node+edge state tile
    w1_ref : [D, H]   bf16, b1_ref : [1, H] f32
    w2_ref : [H, D]   bf16, b2_ref : [1, D] f32
    out_ref: [T, tm, D] f32 time-major solution tile (out_ref[0] == y0 tile)
    """
    tm, D = y0_ref.shape
    H = w1_ref.shape[1]
    T = out_ref.shape[0]

    # Invariant bf16 weights, loaded once per tile (MXU-native operands).
    w1 = w1_ref[...]
    w2 = w2_ref[...]

    half = tm // 2 if interleave else tm

    # Hoist bias broadcasts out of the stage function (JAX does not CSE
    # broadcast_in_dim; previously they were re-emitted per RK4 stage).
    b1 = jnp.broadcast_to(b1_ref[...], (half, H))
    b2 = jnp.broadcast_to(b2_ref[...], (half, D))

    # ode_func: f(y) = tanh(y @ W1 + b1) @ W2 + b2  (autonomous MLP field).
    # bf16 only on the dot operands; accumulate and everything else in f32.
    def f_single(y):
        h = jnp.tanh(
            jnp.dot(y.astype(jnp.bfloat16), w1, preferred_element_type=jnp.float32) + b1
        )
        return jnp.dot(h.astype(jnp.bfloat16), w2, preferred_element_type=jnp.float32) + b2

    def f_pair(ya, yb):
        # Two independent row-halves issued back-to-back: half B's MXU push /
        # EUP tanh fills the latency of half A's serial dot->tanh->dot chain.
        ha = jnp.dot(ya.astype(jnp.bfloat16), w1, preferred_element_type=jnp.float32)
        hb = jnp.dot(yb.astype(jnp.bfloat16), w1, preferred_element_type=jnp.float32)
        ha = jnp.tanh(ha + b1)
        hb = jnp.tanh(hb + b1)
        oa = jnp.dot(ha.astype(jnp.bfloat16), w2, preferred_element_type=jnp.float32) + b2
        ob = jnp.dot(hb.astype(jnp.bfloat16), w2, preferred_element_type=jnp.float32) + b2
        return oa, ob

    def rk4_step(ya, yb):
        # RK4 with dt = 1.0 (unit spacing of torch.range(1, T)); dt folded.
        if interleave:
            k1a, k1b = f_pair(ya, yb)
            k2a, k2b = f_pair(ya + 0.5 * k1a, yb + 0.5 * k1b)
            k3a, k3b = f_pair(ya + 0.5 * k2a, yb + 0.5 * k2b)
            k4a, k4b = f_pair(ya + k3a, yb + k3b)
            ya = ya + (1.0 / 6.0) * (k1a + 2.0 * (k2a + k3a) + k4a)
            yb = yb + (1.0 / 6.0) * (k1b + 2.0 * (k2b + k3b) + k4b)
            return ya, yb
        k1 = f_single(ya)
        k2 = f_single(ya + 0.5 * k1)
        k3 = f_single(ya + 0.5 * k2)
        k4 = f_single(ya + k3)
        return ya + (1.0 / 6.0) * (k1 + 2.0 * (k2 + k3) + k4), yb

    def store(t, ya, yb):
        # TODO(synk): at production M, flatten (tile_m, D) so the stored last
        # dim is a multiple of 128 lanes (D=32 here -> masked vst at 25%).
        if interleave:
            out_ref[t, 0:half, :] = ya
            out_ref[t, half:tm, :] = yb
        else:
            out_ref[t, :, :] = ya

    y_full = y0_ref[...]
    if interleave:
        ya = y_full[0:half, :]
        yb = y_full[half:tm, :]
    else:
        ya, yb = y_full, y_full  # yb unused in the single-chain path

    if T <= _UNROLL_T_LIMIT:
        # Small static T: fully unrolled straight-line body, no per-step
        # grid overhead, maximal scheduler visibility.
        for t in range(T):
            store(t, ya, yb)               # solution at times[t] (times[0] = IC)
            if t + 1 < T:                  # skip the wasted final advance
                ya, yb = rk4_step(ya, yb)
    else:
        # Large T: rolled loop with modest unroll to bound compile time and
        # instruction memory while keeping some LLO visibility.
        def body(t, carry):
            ca, cb = carry
            store(t, ca, cb)
            return rk4_step(ca, cb)

        ya, yb = lax.fori_loop(0, T - 1, body, (ya, yb), unroll=2)
        store(T - 1, ya, yb)


def diffeq_solver_forward(x, adj, w1, b1, w2, b2, num_time_steps, *, tile_m=None):
    """Pallas implementation of DiffeqSolver.forward.

    x   : [M, Dx]   node initial states   (graph_batch.x)
    adj : [M, Da]   edge initial states   (graph_batch.adj)
    returns pred_y : [M, T, D]  with D = Dx + Da, T = num_time_steps
    """
    # Glue: concatenation along feature dim (torch.cat([x, adj], 1)).
    y0 = jnp.concatenate([x, adj], axis=1).astype(jnp.float32)
    M, D = y0.shape
    H = w1.shape[1]
    T = int(num_time_steps)

    # Rows are independent ODEs -> leading "parallel" grid axis over row tiles
    # (sharded across the 2 TensorCores on v7x; harmless on v5e/v6e).  At
    # production M use MXU-height tiles (256 on v6e/v7x, 128 on v5e).
    if tile_m is None:
        tile_m = min(M, 256)
    assert M % tile_m == 0 and tile_m % 8 == 0, (M, tile_m)
    num_tiles = M // tile_m
    # 2-way row-half interleaving needs both halves to be sublane-aligned.
    interleave = (tile_m % 16 == 0)

    # Weights as bf16 MXU operands, cast ONCE here (not per stage); biases,
    # carried state and RK4 combine stay f32.
    w1_bf = w1.astype(jnp.bfloat16)
    w2_bf = w2.astype(jnp.bfloat16)
    b1_f = b1.reshape(1, H).astype(jnp.float32)
    b2_f = b2.reshape(1, D).astype(jnp.float32)

    kernel = functools.partial(_rk4_ode_kernel, interleave=interleave)

    # Advisory cost hint (4 field evals x 2 matmuls per RK4 step).
    cost = pl.CostEstimate(
        flops=16 * max(T - 1, 1) * M * D * H,
        transcendentals=4 * max(T - 1, 1) * M * H,
        bytes_accessed=4 * (M * D + D * H + H * D + H + D + T * M * D),
    )

    pred_time_major = pl.pallas_call(
        kernel,
        out_shape=jax.ShapeDtypeStruct((T, M, D), jnp.float32),
        grid=(num_tiles,),
        in_specs=[
            pl.BlockSpec((tile_m, D), lambda i: (i, 0)),   # y0 row tile
            pl.BlockSpec((D, H), lambda i: (0, 0)),        # W1 (bf16, invariant)
            pl.BlockSpec((1, H), lambda i: (0, 0)),        # b1
            pl.BlockSpec((H, D), lambda i: (0, 0)),        # W2 (bf16, invariant)
            pl.BlockSpec((1, D), lambda i: (0, 0)),        # b2
        ],
        # Streamed per-tile writeback: only [T, tile_m, D] resident, not the
        # whole [T, M, D] slab (matters on v7x's 64 MiB VMEM at production M).
        out_specs=pl.BlockSpec((T, tile_m, D), lambda i: (0, i, 0)),
        compiler_params=pltpu.CompilerParams(
            dimension_semantics=("parallel",),
        ),
        cost_estimate=cost,
    )(y0, w1_bf, b1_f, w2_bf, b2_f)

    # pred_y.permute(1, 0, 2): [T, M, D] -> [M, T, D]  (tiny; done by XLA)
    return jnp.transpose(pred_time_major, (1, 0, 2))


def _reference_forward(x, adj, w1, b1, w2, b2, num_time_steps):
    """Pure-JAX reference with the SAME arithmetic (bf16 dot operands, f32
    accumulation/state) as the kernel, for validation."""
    y = jnp.concatenate([x, adj], axis=1).astype(jnp.float32)
    w1_bf = w1.astype(jnp.bfloat16)
    w2_bf = w2.astype(jnp.bfloat16)
    b1r = b1.reshape(1, -1).astype(jnp.float32)
    b2r = b2.reshape(1, -1).astype(jnp.float32)

    def f(yv):
        h = jnp.tanh(
            jnp.dot(yv.astype(jnp.bfloat16), w1_bf, preferred_element_type=jnp.float32) + b1r
        )
        return jnp.dot(h.astype(jnp.bfloat16), w2_bf, preferred_element_type=jnp.float32) + b2r

    outs = []
    for t in range(num_time_steps):
        outs.append(y)
        if t + 1 < num_time_steps:
            k1 = f(y)
            k2 = f(y + 0.5 * k1)
            k3 = f(y + 0.5 * k2)
            k4 = f(y + k3)
            y = y + (1.0 / 6.0) * (k1 + 2.0 * (k2 + k3) + k4)
    return jnp.transpose(jnp.stack(outs, axis=0), (1, 0, 2))


def _reference_forward_f32(x, adj, w1, b1, w2, b2, num_time_steps):
    """Full-f32 reference (sanity check on bf16 operand error)."""
    y = jnp.concatenate([x, adj], axis=1).astype(jnp.float32)
    b1r = b1.reshape(1, -1)
    b2r = b2.reshape(1, -1)

    def f(yv):
        return jnp.tanh(yv @ w1 + b1r) @ w2 + b2r

    outs = []
    for t in range(num_time_steps):
        outs.append(y)
        if t + 1 < num_time_steps:
            k1 = f(y)
            k2 = f(y + 0.5 * k1)
            k3 = f(y + 0.5 * k2)
            k4 = f(y + k3)
            y = y + (1.0 / 6.0) * (k1 + 2.0 * (k2 + k3) + k4)
    return jnp.transpose(jnp.stack(outs, axis=0), (1, 0, 2))


if __name__ == "__main__":
    key = jax.random.PRNGKey(0)
    k_x, k_adj, k_w1, k_w2 = jax.random.split(key, 4)

    # Small, module-consistent shapes:
    #   K (samples) = 2, num_atoms = 8  -> M = K * num_atoms = 16 rows
    #   node feature dim Dx = 16, edge feature dim Da = 16 -> D = 32
    #   ode_func hidden width H = 64, time_steps_to_predict T = 6
    M, Dx, Da, H, T = 16, 16, 16, 64, 6
    D = Dx + Da

    x = jax.random.normal(k_x, (M, Dx), dtype=jnp.float32) * 0.1
    adj = jax.random.normal(k_adj, (M, Da), dtype=jnp.float32) * 0.1

    # Deterministic synthetic ode_func parameters.
    w1 = jax.random.normal(k_w1, (D, H), dtype=jnp.float32) * 0.05
    b1 = jnp.zeros((H,), dtype=jnp.float32)
    w2 = jax.random.normal(k_w2, (H, D), dtype=jnp.float32) * 0.05
    b2 = jnp.zeros((D,), dtype=jnp.float32)

    pred_y = diffeq_solver_forward(x, adj, w1, b1, w2, b2, T)
    pred_y = jax.block_until_ready(pred_y)

    ref_bf = _reference_forward(x, adj, w1, b1, w2, b2, T)
    ref_f32 = _reference_forward_f32(x, adj, w1, b1, w2, b2, T)

    assert pred_y.shape == (M, T, D), pred_y.shape
    # Exact-math reference (same bf16 dot operands): tight tolerance.
    assert jnp.allclose(pred_y, ref_bf, rtol=2e-4, atol=2e-4), "mismatch vs bf16-matched reference"
    # Full-f32 reference: loose tolerance documents the bf16 operand error.
    assert jnp.allclose(pred_y, ref_f32, rtol=2e-2, atol=2e-2), "bf16 error too large vs f32 reference"

    print("KERNEL_OK")
</pallas_src>

<mosaic_0001>
module attributes {stable_mosaic.version = 11 : i64} {
  func.func @_rk4_ode_kernel(%arg0: i32, %arg1: memref<16x32xf32, #tpu.memory_space<vmem>>, %arg2: memref<32x64xbf16, #tpu.memory_space<vmem>>, %arg3: memref<1x64xf32, #tpu.memory_space<vmem>>, %arg4: memref<64x32xbf16, #tpu.memory_space<vmem>>, %arg5: memref<1x32xf32, #tpu.memory_space<vmem>>, %arg6: memref<6x16x32xf32, #tpu.memory_space<vmem>>) attributes {dimension_semantics = [#tpu.dimension_semantics<parallel>], iteration_bounds = array<i64: 1>, scalar_prefetch = 0 : i64, scratch_operands = 0 : i64, tpu.core_type = #tpu.core_type<tc>, window_params = [{transform_indices = @transform_0, window_bounds = array<i64: 16, 32>}, {pipeline_mode = #tpu.pipeline_mode<synchronous>, transform_indices = @transform_1, window_bounds = array<i64: 32, 64>}, {pipeline_mode = #tpu.pipeline_mode<synchronous>, transform_indices = @transform_2, window_bounds = array<i64: 1, 64>}, {pipeline_mode = #tpu.pipeline_mode<synchronous>, transform_indices = @transform_3, window_bounds = array<i64: 64, 32>}, {pipeline_mode = #tpu.pipeline_mode<synchronous>, transform_indices = @transform_4, window_bounds = array<i64: 1, 32>}, {transform_indices = @transform_5, window_bounds = array<i64: 6, 16, 32>}]} {
    %c0 = arith.constant 0 : index
    %c0_0 = arith.constant 0 : index
    %0 = vector.load %arg2[%c0, %c0_0] : memref<32x64xbf16, #tpu.memory_space<vmem>>, vector<32x64xbf16>
    %c0_1 = arith.constant 0 : index
    %c0_2 = arith.constant 0 : index
    %1 = vector.load %arg4[%c0_1, %c0_2] : memref<64x32xbf16, #tpu.memory_space<vmem>>, vector<64x32xbf16>
    %c0_3 = arith.constant 0 : index
    %c0_4 = arith.constant 0 : index
    %2 = vector.load %arg3[%c0_3, %c0_4] : memref<1x64xf32, #tpu.memory_space<vmem>>, vector<1x64xf32>
    %3 = vector.shape_cast %2 : vector<1x64xf32> to vector<1x64xf32>
    %4 = vector.broadcast %3 : vector<1x64xf32> to vector<8x64xf32>
    %c0_5 = arith.constant 0 : index
    %c0_6 = arith.constant 0 : index
    %5 = vector.load %arg5[%c0_5, %c0_6] : memref<1x32xf32, #tpu.memory_space<vmem>>, vector<1x32xf32>
    %6 = vector.shape_cast %5 : vector<1x32xf32> to vector<1x32xf32>
    %7 = vector.broadcast %6 : vector<1x32xf32> to vector<8x32xf32>
    %c0_7 = arith.constant 0 : index
    %c0_8 = arith.constant 0 : index
    %8 = vector.load %arg1[%c0_7, %c0_8] : memref<16x32xf32, #tpu.memory_space<vmem>>, vector<16x32xf32>
    %9 = vector.extract_strided_slice %8 {offsets = [0, 0], sizes = [8, 32], strides = [1, 1]} : vector<16x32xf32> to vector<8x32xf32>
    %10 = vector.extract_strided_slice %8 {offsets = [8, 0], sizes = [8, 32], strides = [1, 1]} : vector<16x32xf32> to vector<8x32xf32>
    %c0_9 = arith.constant 0 : index
    %c0_10 = arith.constant 0 : index
    %c0_11 = arith.constant 0 : index
    %11 = vector.load %arg6[%c0_9, %c0_10, %c0_11] : memref<6x16x32xf32, #tpu.memory_space<vmem>>, vector<1x8x32xf32>
    %12 = vector.shape_cast %11 : vector<1x8x32xf32> to vector<8x32xf32>
    %13 = vector.shape_cast %9 : vector<8x32xf32> to vector<1x8x32xf32>
    tpu.vector_store %arg6[%c0_9, %c0_10, %c0_11], %13 {strides = array<i32>} : memref<6x16x32xf32, #tpu.memory_space<vmem>>, vector<1x8x32xf32>,
    %c0_12 = arith.constant 0 : index
    %c8 = arith.constant 8 : index
    %c0_13 = arith.constant 0 : index
    %14 = vector.load %arg6[%c0_12, %c8, %c0_13] : memref<6x16x32xf32, #tpu.memory_space<vmem>>, vector<1x8x32xf32>
    %15 = vector.shape_cast %14 : vector<1x8x32xf32> to vector<8x32xf32>
    %16 = vector.shape_cast %10 : vector<8x32xf32> to vector<1x8x32xf32>
    tpu.vector_store %arg6[%c0_12, %c8, %c0_13], %16 {strides = array<i32>} : memref<6x16x32xf32, #tpu.memory_space<vmem>>, vector<1x8x32xf32>,
    %17 = arith.truncf %9 : vector<8x32xf32> to vector<8x32xbf16>
    %cst = arith.constant dense<0.000000e+00> : vector<8x64xf32>
    %18 = tpu.matmul %17, %0, %cst {dimension_numbers = #tpu.dot_dimension_numbers<[1], [0], [0], [1], [0, 0, 1, 1], [], []>} : vector<8x32xbf16>, vector<32x64xbf16>, vector<8x64xf32> -> vector<8x64xf32>
    %19 = arith.truncf %10 : vector<8x32xf32> to vector<8x32xbf16>
    %cst_14 = arith.constant dense<0.000000e+00> : vector<8x64xf32>
    %20 = tpu.matmul %19, %0, %cst_14 {dimension_numbers = #tpu.dot_dimension_numbers<[1], [0], [0], [1], [0, 0, 1, 1], [], []>} : vector<8x32xbf16>, vector<32x64xbf16>, vector<8x64xf32> -> vector<8x64xf32>
    %21 = arith.addf %18, %4 : vector<8x64xf32>
    %22 = math.tanh %21 : vector<8x64xf32>
    %23 = arith.addf %20, %4 : vector<8x64xf32>
    %24 = math.tanh %23 : vector<8x64xf32>
    %25 = arith.truncf %22 : vector<8x64xf32> to vector<8x64xbf16>
    %cst_15 = arith.constant dense<0.000000e+00> : vector<8x32xf32>
    %26 = tpu.matmul %25, %1, %cst_15 {dimension_numbers = #tpu.dot_dimension_numbers<[1], [0], [0], [1], [0, 0, 1, 1], [], []>} : vector<8x64xbf16>, vector<64x32xbf16>, vector<8x32xf32> -> vector<8x32xf32>
    %27 = arith.addf %26, %7 : vector<8x32xf32>
    %28 = arith.truncf %24 : vector<8x64xf32> to vector<8x64xbf16>
    %cst_16 = arith.constant dense<0.000000e+00> : vector<8x32xf32>
    %29 = tpu.matmul %28, %1, %cst_16 {dimension_numbers = #tpu.dot_dimension_numbers<[1], [0], [0], [1], [0, 0, 1, 1], [], []>} : vector<8x64xbf16>, vector<64x32xbf16>, vector<8x32xf32> -> vector<8x32xf32>
    %30 = arith.addf %29, %7 : vector<8x32xf32>
    %cst_17 = arith.constant 5.000000e-01 : f32
    %31 = vector.broadcast %cst_17 : f32 to vector<8x32xf32>
    %32 = arith.mulf %31, %27 : vector<8x32xf32>
    %33 = arith.addf %9, %32 : vector<8x32xf32>
    %cst_18 = arith.constant 5.000000e-01 : f32
    %34 = vector.broadcast %cst_18 : f32 to vector<8x32xf32>
    %35 = arith.mulf %34, %30 : vector<8x32xf32>
    %36 = arith.addf %10, %35 : vector<8x32xf32>
    %37 = arith.truncf %33 : vector<8x32xf32> to vector<8x32xbf16>
    %cst_19 = arith.constant dense<0.000000e+00> : vector<8x64xf32>
    %38 = tpu.matmul %37, %0, %cst_19 {dimension_numbers = #tpu.dot_dimension_numbers<[1], [0], [0], [1], [0, 0, 1, 1], [], []>} : vector<8x32xbf16>, vector<32x64xbf16>, vector<8x64xf32> -> vector<8x64xf32>
    %39 = arith.truncf %36 : vector<8x32xf32> to vector<8x32xbf16>
    %cst_20 = arith.constant dense<0.000000e+00> : vector<8x64xf32>
    %40 = tpu.matmul %39, %0, %cst_20 {dimension_numbers = #tpu.dot_dimension_numbers<[1], [0], [0], [1], [0, 0, 1, 1], [], []>} : vector<8x32xbf16>, vector<32x64xbf16>, vector<8x64xf32> -> vector<8x64xf32>
    %41 = arith.addf %38, %4 : vector<8x64xf32>
    %42 = math.tanh %41 : vector<8x64xf32>
    %43 = arith.addf %40, %4 : vector<8x64xf32>
    %44 = math.tanh %43 : vector<8x64xf32>
    %45 = arith.truncf %42 : vector<8x64xf32> to vector<8x64xbf16>
    %cst_21 = arith.constant dense<0.000000e+00> : vector<8x32xf32>
    %46 = tpu.matmul %45, %1, %cst_21 {dimension_numbers = #tpu.dot_dimension_numbers<[1], [0], [0], [1], [0, 0, 1, 1], [], []>} : vector<8x64xbf16>, vector<64x32xbf16>, vector<8x32xf32> -> vector<8x32xf32>
    %47 = arith.addf %46, %7 : vector<8x32xf32>
    %48 = arith.truncf %44 : vector<8x64xf32> to vector<8x64xbf16>
    %cst_22 = arith.constant dense<0.000000e+00> : vector<8x32xf32>
    %49 = tpu.matmul %48, %1, %cst_22 {dimension_numbers = #tpu.dot_dimension_numbers<[1], [0], [0], [1], [0, 0, 1, 1], [], []>} : vector<8x64xbf16>, vector<64x32xbf16>, vector<8x32xf32> -> vector<8x32xf32>
    %50 = arith.addf %49, %7 : vector<8x32xf32>
    %cst_23 = arith.constant 5.000000e-01 : f32
    %51 = vector.broadcast %cst_23 : f32 to vector<8x32xf32>
    %52 = arith.mulf %51, %47 : vector<8x32xf32>
    %53 = arith.addf %9, %52 : vector<8x32xf32>
    %cst_24 = arith.constant 5.000000e-01 : f32
    %54 = vector.broadcast %cst_24 : f32 to vector<8x32xf32>
    %55 = arith.mulf %54, %50 : vector<8x32xf32>
    %56 = arith.addf %10, %55 : vector<8x32xf32>
    %57 = arith.truncf %53 : vector<8x32xf32> to vector<8x32xbf16>
    %cst_25 = arith.constant dense<0.000000e+00> : vector<8x64xf32>
    %58 = tpu.matmul %57, %0, %cst_25 {dimension_numbers = #tpu.dot_dimension_numbers<[1], [0], [0], [1], [0, 0, 1, 1], [], []>} : vector<8x32xbf16>, vector<32x64xbf16>, vector<8x64xf32> -> vector<8x64xf32>
    %59 = arith.truncf %56 : vector<8x32xf32> to vector<8x32xbf16>
    %cst_26 = arith.constant dense<0.000000e+00> : vector<8x64xf32>
    %60 = tpu.matmul %59, %0, %cst_26 {dimension_numbers = #tpu.dot_dimension_numbers<[1], [0], [0], [1], [0, 0, 1, 1], [], []>} : vector<8x32xbf16>, vector<32x64xbf16>, vector<8x64xf32> -> vector<8x64xf32>
    %61 = arith.addf %58, %4 : vector<8x64xf32>
    %62 = math.tanh %61 : vector<8x64xf32>
    %63 = arith.addf %60, %4 : vector<8x64xf32>
    %64 = math.tanh %63 : vector<8x64xf32>
    %65 = arith.truncf %62 : vector<8x64xf32> to vector<8x64xbf16>
    %cst_27 = arith.constant dense<0.000000e+00> : vector<8x32xf32>
    %66 = tpu.matmul %65, %1, %cst_27 {dimension_numbers = #tpu.dot_dimension_numbers<[1], [0], [0], [1], [0, 0, 1, 1], [], []>} : vector<8x64xbf16>, vector<64x32xbf16>, vector<8x32xf32> -> vector<8x32xf32>
    %67 = arith.addf %66, %7 : vector<8x32xf32>
    %68 = arith.truncf %64 : vector<8x64xf32> to vector<8x64xbf16>
    %cst_28 = arith.constant dense<0.000000e+00> : vector<8x32xf32>
    %69 = tpu.matmul %68, %1, %cst_28 {dimension_numbers = #tpu.dot_dimension_numbers<[1], [0], [0], [1], [0, 0, 1, 1], [], []>} : vector<8x64xbf16>, vector<64x32xbf16>, vector<8x32xf32> -> vector<8x32xf32>
    %70 = arith.addf %69, %7 : vector<8x32xf32>
    %71 = arith.addf %9, %67 : vector<8x32xf32>
    %72 = arith.addf %10, %70 : vector<8x32xf32>
    %73 = arith.truncf %71 : vector<8x32xf32> to vector<8x32xbf16>
    %cst_29 = arith.constant dense<0.000000e+00> : vector<8x64xf32>
    %74 = tpu.matmul %73, %0, %cst_29 {dimension_numbers = #tpu.dot_dimension_numbers<[1], [0], [0], [1], [0, 0, 1, 1], [], []>} : vector<8x32xbf16>, vector<32x64xbf16>, vector<8x64xf32> -> vector<8x64xf32>
    %75 = arith.truncf %72 : vector<8x32xf32> to vector<8x32xbf16>
    %cst_30 = arith.constant dense<0.000000e+00> : vector<8x64xf32>
    %76 = tpu.matmul %75, %0, %cst_30 {dimension_numbers = #tpu.dot_dimension_numbers<[1], [0], [0], [1], [0, 0, 1, 1], [], []>} : vector<8x32xbf16>, vector<32x64xbf16>, vector<8x64xf32> -> vector<8x64xf32>
    %77 = arith.addf %74, %4 : vector<8x64xf32>
    %78 = math.tanh %77 : vector<8x64xf32>
    %79 = arith.addf %76, %4 : vector<8x64xf32>
    %80 = math.tanh %79 : vector<8x64xf32>
    %81 = arith.truncf %78 : vector<8x64xf32> to vector<8x64xbf16>
    %cst_31 = arith.constant dense<0.000000e+00> : vector<8x32xf32>
    %82 = tpu.matmul %81, %1, %cst_31 {dimension_numbers = #tpu.dot_dimension_numbers<[1], [0], [0], [1], [0, 0, 1, 1], [], []>} : vector<8x64xbf16>, vector<64x32xbf16>, vector<8x32xf32> -> vector<8x32xf32>
    %83 = arith.addf %82, %7 : vector<8x32xf32>
    %84 = arith.truncf %80 : vector<8x64xf32> to vector<8x64xbf16>
    %cst_32 = arith.constant dense<0.000000e+00> : vector<8x32xf32>
    %85 = tpu.matmul %84, %1, %cst_32 {dimension_numbers = #tpu.dot_dimension_numbers<[1], [0], [0], [1], [0, 0, 1, 1], [], []>} : vector<8x64xbf16>, vector<64x32xbf16>, vector<8x32xf32> -> vector<8x32xf32>
    %86 = arith.addf %85, %7 : vector<8x32xf32>
    %87 = arith.addf %47, %67 : vector<8x32xf32>
    %cst_33 = arith.constant 2.000000e+00 : f32
    %88 = vector.broadcast %cst_33 : f32 to vector<8x32xf32>
    %89 = arith.mulf %88, %87 : vector<8x32xf32>
    %90 = arith.addf %27, %89 : vector<8x32xf32>
    %91 = arith.addf %90, %83 : vector<8x32xf32>
    %cst_34 = arith.constant 0.166666672 : f32
    %92 = vector.broadcast %cst_34 : f32 to vector<8x32xf32>
    %93 = arith.mulf %92, %91 : vector<8x32xf32>
    %94 = arith.addf %9, %93 : vector<8x32xf32>
    %95 = arith.addf %50, %70 : vector<8x32xf32>
    %cst_35 = arith.constant 2.000000e+00 : f32
    %96 = vector.broadcast %cst_35 : f32 to vector<8x32xf32>
    %97 = arith.mulf %96, %95 : vector<8x32xf32>
    %98 = arith.addf %30, %97 : vector<8x32xf32>
    %99 = arith.addf %98, %86 : vector<8x32xf32>
    %cst_36 = arith.constant 0.166666672 : f32
    %100 = vector.broadcast %cst_36 : f32 to vector<8x32xf32>
    %101 = arith.mulf %100, %99 : vector<8x32xf32>
    %102 = arith.addf %10, %101 : vector<8x32xf32>
    %c1 = arith.constant 1 : index
    %c0_37 = arith.constant 0 : index
    %c0_38 = arith.constant 0 : index
    %103 = vector.load %arg6[%c1, %c0_37, %c0_38] : memref<6x16x32xf32, #tpu.memory_space<vmem>>, vector<1x8x32xf32>
    %104 = vector.shape_cast %103 : vector<1x8x32xf32> to vector<8x32xf32>
    %105 = vector.shape_cast %94 : vector<8x32xf32> to vector<1x8x32xf32>
    tpu.vector_store %arg6[%c1, %c0_37, %c0_38], %105 {strides = array<i32>} : memref<6x16x32xf32, #tpu.memory_space<vmem>>, vector<1x8x32xf32>,
    %c1_39 = arith.constant 1 : index
    %c8_40 = arith.constant 8 : index
    %c0_41 = arith.constant 0 : index
    %106 = vector.load %arg6[%c1_39, %c8_40, %c0_41] : memref<6x16x32xf32, #tpu.memory_space<vmem>>, vector<1x8x32xf32>
    %107 = vector.shape_cast %106 : vector<1x8x32xf32> to vector<8x32xf32>
    %108 = vector.shape_cast %102 : vector<8x32xf32> to vector<1x8x32xf32>
    tpu.vector_store %arg6[%c1_39, %c8_40, %c0_41], %108 {strides = array<i32>} : memref<6x16x32xf32, #tpu.memory_space<vmem>>, vector<1x8x32xf32>,
    %109 = arith.truncf %94 : vector<8x32xf32> to vector<8x32xbf16>
    %cst_42 = arith.constant dense<0.000000e+00> : vector<8x64xf32>
    %110 = tpu.matmul %109, %0, %cst_42 {dimension_numbers = #tpu.dot_dimension_numbers<[1], [0], [0], [1], [0, 0, 1, 1], [], []>} : vector<8x32xbf16>, vector<32x64xbf16>, vector<8x64xf32> -> vector<8x64xf32>
    %111 = arith.truncf %102 : vector<8x32xf32> to vector<8x32xbf16>
    %cst_43 = arith.constant dense<0.000000e+00> : vector<8x64xf32>
    %112 = tpu.matmul %111, %0, %cst_43 {dimension_numbers = #tpu.dot_dimension_numbers<[1], [0], [0], [1], [0, 0, 1, 1], [], []>} : vector<8x32xbf16>, vector<32x64xbf16>, vector<8x64xf32> -> vector<8x64xf32>
    %113 = arith.addf %110, %4 : vector<8x64xf32>
    %114 = math.tanh %113 : vector<8x64xf32>
    %115 = arith.addf %112, %4 : vector<8x64xf32>
    %116 = math.tanh %115 : vector<8x64xf32>
    %117 = arith.truncf %114 : vector<8x64xf32> to vector<8x64xbf16>
    %cst_44 = arith.constant dense<0.000000e+00> : vector<8x32xf32>
    %118 = tpu.matmul %117, %1, %cst_44 {dimension_numbers = #tpu.dot_dimension_numbers<[1], [0], [0], [1], [0, 0, 1, 1], [], []>} : vector<8x64xbf16>, vector<64x32xbf16>, vector<8x32xf32> -> vector<8x32xf32>
    %119 = arith.addf %118, %7 : vector<8x32xf32>
    %120 = arith.truncf %116 : vector<8x64xf32> to vector<8x64xbf16>
    %cst_45 = arith.constant dense<0.000000e+00> : vector<8x32xf32>
    %121 = tpu.matmul %120, %1, %cst_45 {dimension_numbers = #tpu.dot_dimension_numbers<[1], [0], [0], [1], [0, 0, 1, 1], [], []>} : vector<8x64xbf16>, vector<64x32xbf16>, vector<8x32xf32> -> vector<8x32xf32>
    %122 = arith.addf %121, %7 : vector<8x32xf32>
    %cst_46 = arith.constant 5.000000e-01 : f32
    %123 = vector.broadcast %cst_46 : f32 to vector<8x32xf32>
    %124 = arith.mulf %123, %119 : vector<8x32xf32>
    %125 = arith.addf %94, %124 : vector<8x32xf32>
    %cst_47 = arith.constant 5.000000e-01 : f32
    %126 = vector.broadcast %cst_47 : f32 to vector<8x32xf32>
    %127 = arith.mulf %126, %122 : vector<8x32xf32>
    %128 = arith.addf %102, %127 : vector<8x32xf32>
    %129 = arith.truncf %125 : vector<8x32xf32> to vector<8x32xbf16>
    %cst_48 = arith.constant dense<0.000000e+00> : vector<8x64xf32>
    %130 = tpu.matmul %129, %0, %cst_48 {dimension_numbers = #tpu.dot_dimension_numbers<[1], [0], [0], [1], [0, 0, 1, 1], [], []>} : vector<8x32xbf16>, vector<32x64xbf16>, vector<8x64xf32> -> vector<8x64xf32>
    %131 = arith.truncf %128 : vector<8x32xf32> to vector<8x32xbf16>
    %cst_49 = arith.constant dense<0.000000e+00> : vector<8x64xf32>
    %132 = tpu.matmul %131, %0, %cst_49 {dimension_numbers = #tpu.dot_dimension_numbers<[1], [0], [0], [1], [0, 0, 1, 1], [], []>} : vector<8x32xbf16>, vector<32x64xbf16>, vector<8x64xf32> -> vector<8x64xf32>
    %133 = arith.addf %130, %4 : vector<8x64xf32>
    %134 = math.tanh %133 : vector<8x64xf32>
    %135 = arith.addf %132, %4 : vector<8x64xf32>
    %136 = math.tanh %135 : vector<8x64xf32>
    %137 = arith.truncf %134 : vector<8x64xf32> to vector<8x64xbf16>
    %cst_50 = arith.constant dense<0.000000e+00> : vector<8x32xf32>
    %138 = tpu.matmul %137, %1, %cst_50 {dimension_numbers = #tpu.dot_dimension_numbers<[1], [0], [0], [1], [0, 0, 1, 1], [], []>} : vector<8x64xbf16>, vector<64x32xbf16>, vector<8x32xf32> -> vector<8x32xf32>
    %139 = arith.addf %138, %7 : vector<8x32xf32>
    %140 = arith.truncf %136 : vector<8x64xf32> to vector<8x64xbf16>
    %cst_51 = arith.constant dense<0.000000e+00> : vector<8x32xf32>
    %141 = tpu.matmul %140, %1, %cst_51 {dimension_numbers = #tpu.dot_dimension_numbers<[1], [0], [0], [1], [0, 0, 1, 1], [], []>} : vector<8x64xbf16>, vector<64x32xbf16>, vector<8x32xf32> -> vector<8x32xf32>
    %142 = arith.addf %141, %7 : vector<8x32xf32>
    %cst_52 = arith.constant 5.000000e-01 : f32
    %143 = vector.broadcast %cst_52 : f32 to vector<8x32xf32>
    %144 = arith.mulf %143, %139 : vector<8x32xf32>
    %145 = arith.addf %94, %144 : vector<8x32xf32>
    %cst_53 = arith.constant 5.000000e-01 : f32
    %146 = vector.broadcast %cst_53 : f32 to vector<8x32xf32>
    %147 = arith.mulf %146, %142 : vector<8x32xf32>
    %148 = arith.addf %102, %147 : vector<8x32xf32>
    %149 = arith.truncf %145 : vector<8x32xf32> to vector<8x32xbf16>
    %cst_54 = arith.constant dense<0.000000e+00> : vector<8x64xf32>
    %150 = tpu.matmul %149, %0, %cst_54 {dimension_numbers = #tpu.dot_dimension_numbers<[1], [0], [0], [1], [0, 0, 1, 1], [], []>} : vector<8x32xbf16>, vector<32x64xbf16>, vector<8x64xf32> -> vector<8x64xf32>
    %151 = arith.truncf %148 : vector<8x32xf32> to vector<8x32xbf16>
    %cst_55 = arith.constant dense<0.000000e+00> : vector<8x64xf32>
    %152 = tpu.matmul %151, %0, %cst_55 {dimension_numbers = #tpu.dot_dimension_numbers<[1], [0], [0], [1], [0, 0, 1, 1], [], []>} : vector<8x32xbf16>, vector<32x64xbf16>, vector<8x64xf32> -> vector<8x64xf32>
    %153 = arith.addf %150, %4 : vector<8x64xf32>
    %154 = math.tanh %153 : vector<8x64xf32>
    %155 = arith.addf %152, %4 : vector<8x64xf32>
    %156 = math.tanh %155 : vector<8x64xf32>
    %157 = arith.truncf %154 : vector<8x64xf32> to vector<8x64xbf16>
    %cst_56 = arith.constant dense<0.000000e+00> : vector<8x32xf32>
    %158 = tpu.matmul %157, %1, %cst_56 {dimension_numbers = #tpu.dot_dimension_numbers<[1], [0], [0], [1], [0, 0, 1, 1], [], []>} : vector<8x64xbf16>, vector<64x32xbf16>, vector<8x32xf32> -> vector<8x32xf32>
    %159 = arith.addf %158, %7 : vector<8x32xf32>
    %160 = arith.truncf %156 : vector<8x64xf32> to vector<8x64xbf16>
    %cst_57 = arith.constant dense<0.000000e+00> : vector<8x32xf32>
    %161 = tpu.matmul %160, %1, %cst_57 {dimension_numbers = #tpu.dot_dimension_numbers<[1], [0], [0], [1], [0, 0, 1, 1], [], []>} : vector<8x64xbf16>, vector<64x32xbf16>, vector<8x32xf32> -> vector<8x32xf32>
    %162 = arith.addf %161, %7 : vector<8x32xf32>
    %163 = arith.addf %94, %159 : vector<8x32xf32>
    %164 = arith.addf %102, %162 : vector<8x32xf32>
    %165 = arith.truncf %163 : vector<8x32xf32> to vector<8x32xbf16>
    %cst_58 = arith.constant dense<0.000000e+00> : vector<8x64xf32>
    %166 = tpu.matmul %165, %0, %cst_58 {dimension_numbers = #tpu.dot_dimension_numbers<[1], [0], [0], [1], [0, 0, 1, 1], [], []>} : vector<8x32xbf16>, vector<32x64xbf16>, vector<8x64xf32> -> vector<8x64xf32>
    %167 = arith.truncf %164 : vector<8x32xf32> to vector<8x32xbf16>
    %cst_59 = arith.constant dense<0.000000e+00> : vector<8x64xf32>
    %168 = tpu.matmul %167, %0, %cst_59 {dimension_numbers = #tpu.dot_dimension_numbers<[1], [0], [0], [1], [0, 0, 1, 1], [], []>} : vector<8x32xbf16>, vector<32x64xbf16>, vector<8x64xf32> -> vector<8x64xf32>
    %169 = arith.addf %166, %4 : vector<8x64xf32>
    %170 = math.tanh %169 : vector<8x64xf32>
    %171 = arith.addf %168, %4 : vector<8x64xf32>
    %172 = math.tanh %171 : vector<8x64xf32>
    %173 = arith.truncf %170 : vector<8x64xf32> to vector<8x64xbf16>
    %cst_60 = arith.constant dense<0.000000e+00> : vector<8x32xf32>
    %174 = tpu.matmul %173, %1, %cst_60 {dimension_numbers = #tpu.dot_dimension_numbers<[1], [0], [0], [1], [0, 0, 1, 1], [], []>} : vector<8x64xbf16>, vector<64x32xbf16>, vector<8x32xf32> -> vector<8x32xf32>
    %175 = arith.addf %174, %7 : vector<8x32xf32>
    %176 = arith.truncf %172 : vector<8x64xf32> to vector<8x64xbf16>
    %cst_61 = arith.constant dense<0.000000e+00> : vector<8x32xf32>
    %177 = tpu.matmul %176, %1, %cst_61 {dimension_numbers = #tpu.dot_dimension_numbers<[1], [0], [0], [1], [0, 0, 1, 1], [], []>} : vector<8x64xbf16>, vector<64x32xbf16>, vector<8x32xf32> -> vector<8x32xf32>
    %178 = arith.addf %177, %7 : vector<8x32xf32>
    %179 = arith.addf %139, %159 : vector<8x32xf32>
    %cst_62 = arith.constant 2.000000e+00 : f32
    %180 = vector.broadcast %cst_62 : f32 to vector<8x32xf32>
    %181 = arith.mulf %180, %179 : vector<8x32xf32>
    %182 = arith.addf %119, %181 : vector<8x32xf32>
    %183 = arith.addf %182, %175 : vector<8x32xf32>
    %cst_63 = arith.constant 0.166666672 : f32
    %184 = vector.broadcast %cst_63 : f32 to vector<8x32xf32>
    %185 = arith.mulf %184, %183 : vector<8x32xf32>
    %186 = arith.addf %94, %185 : vector<8x32xf32>
    %187 = arith.addf %142, %162 : vector<8x32xf32>
    %cst_64 = arith.constant 2.000000e+00 : f32
    %188 = vector.broadcast %cst_64 : f32 to vector<8x32xf32>
    %189 = arith.mulf %188, %187 : vector<8x32xf32>
    %190 = arith.addf %122, %189 : vector<8x32xf32>
    %191 = arith.addf %190, %178 : vector<8x32xf32>
    %cst_65 = arith.constant 0.166666672 : f32
    %192 = vector.broadcast %cst_65 : f32 to vector<8x32xf32>
    %193 = arith.mulf %192, %191 : vector<8x32xf32>
    %194 = arith.addf %102, %193 : vector<8x32xf32>
    %c2 = arith.constant 2 : index
    %c0_66 = arith.constant 0 : index
    %c0_67 = arith.constant 0 : index
    %195 = vector.load %arg6[%c2, %c0_66, %c0_67] : memref<6x16x32xf32, #tpu.memory_space<vmem>>, vector<1x8x32xf32>
    %196 = vector.shape_cast %195 : vector<1x8x32xf32> to vector<8x32xf32>
    %197 = vector.shape_cast %186 : vector<8x32xf32> to vector<1x8x32xf32>
    tpu.vector_store %arg6[%c2, %c0_66, %c0_67], %197 {strides = array<i32>} : memref<6x16x32xf32, #tpu.memory_space<vmem>>, vector<1x8x32xf32>,
    %c2_68 = arith.constant 2 : index
    %c8_69 = arith.constant 8 : index
    %c0_70 = arith.constant 0 : index
    %198 = vector.load %arg6[%c2_68, %c8_69, %c0_70] : memref<6x16x32xf32, #tpu.memory_space<vmem>>, vector<1x8x32xf32>
    %199 = vector.shape_cast %198 : vector<1x8x32xf32> to vector<8x32xf32>
    %200 = vector.shape_cast %194 : vector<8x32xf32> to vector<1x8x32xf32>
    tpu.vector_store %arg6[%c2_68, %c8_69, %c0_70], %200 {strides = array<i32>} : memref<6x16x32xf32, #tpu.memory_space<vmem>>, vector<1x8x32xf32>,
    %201 = arith.truncf %186 : vector<8x32xf32> to vector<8x32xbf16>
    %cst_71 = arith.constant dense<0.000000e+00> : vector<8x64xf32>
    %202 = tpu.matmul %201, %0, %cst_71 {dimension_numbers = #tpu.dot_dimension_numbers<[1], [0], [0], [1], [0, 0, 1, 1], [], []>} : vector<8x32xbf16>, vector<32x64xbf16>, vector<8x64xf32> -> vector<8x64xf32>
    %203 = arith.truncf %194 : vector<8x32xf32> to vector<8x32xbf16>
    %cst_72 = arith.constant dense<0.000000e+00> : vector<8x64xf32>
    %204 = tpu.matmul %203, %0, %cst_72 {dimension_numbers = #tpu.dot_dimension_numbers<[1], [0], [0], [1], [0, 0, 1, 1], [], []>} : vector<8x32xbf16>, vector<32x64xbf16>, vector<8x64xf32> -> vector<8x64xf32>
    %205 = arith.addf %202, %4 : vector<8x64xf32>
    %206 = math.tanh %205 : vector<8x64xf32>
    %207 = arith.addf %204, %4 : vector<8x64xf32>
    %208 = math.tanh %207 : vector<8x64xf32>
    %209 = arith.truncf %206 : vector<8x64xf32> to vector<8x64xbf16>
    %cst_73 = arith.constant dense<0.000000e+00> : vector<8x32xf32>
    %210 = tpu.matmul %209, %1, %cst_73 {dimension_numbers = #tpu.dot_dimension_numbers<[1], [0], [0], [1], [0, 0, 1, 1], [], []>} : vector<8x64xbf16>, vector<64x32xbf16>, vector<8x32xf32> -> vector<8x32xf32>
    %211 = arith.addf %210, %7 : vector<8x32xf32>
    %212 = arith.truncf %208 : vector<8x64xf32> to vector<8x64xbf16>
    %cst_74 = arith.constant dense<0.000000e+00> : vector<8x32xf32>
    %213 = tpu.matmul %212, %1, %cst_74 {dimension_numbers = #tpu.dot_dimension_numbers<[1], [0], [0], [1], [0, 0, 1, 1], [], []>} : vector<8x64xbf16>, vector<64x32xbf16>, vector<8x32xf32> -> vector<8x32xf32>
    %214 = arith.addf %213, %7 : vector<8x32xf32>
    %cst_75 = arith.constant 5.000000e-01 : f32
    %215 = vector.broadcast %cst_75 : f32 to vector<8x32xf32>
    %216 = arith.mulf %215, %211 : vector<8x32xf32>
    %217 = arith.addf %186, %216 : vector<8x32xf32>
    %cst_76 = arith.constant 5.000000e-01 : f32
    %218 = vector.broadcast %cst_76 : f32 to vector<8x32xf32>
    %219 = arith.mulf %218, %214 : vector<8x32xf32>
    %220 = arith.addf %194, %219 : vector<8x32xf32>
    %221 = arith.truncf %217 : vector<8x32xf32> to vector<8x32xbf16>
    %cst_77 = arith.constant dense<0.000000e+00> : vector<8x64xf32>
    %222 = tpu.matmul %221, %0, %cst_77 {dimension_numbers = #tpu.dot_dimension_numbers<[1], [0], [0], [1], [0, 0, 1, 1], [], []>} : vector<8x32xbf16>, vector<32x64xbf16>, vector<8x64xf32> -> vector<8x64xf32>
    %223 = arith.truncf %220 : vector<8x32xf32> to vector<8x32xbf16>
    %cst_78 = arith.constant dense<0.000000e+00> : vector<8x64xf32>
    %224 = tpu.matmul %223, %0, %cst_78 {dimension_numbers = #tpu.dot_dimension_numbers<[1], [0], [0], [1], [0, 0, 1, 1], [], []>} : vector<8x32xbf16>, vector<32x64xbf16>, vector<8x64xf32> -> vector<8x64xf32>
    %225 = arith.addf %222, %4 : vector<8x64xf32>
    %226 = math.tanh %225 : vector<8x64xf32>
    %227 = arith.addf %224, %4 : vector<8x64xf32>
    %228 = math.tanh %227 : vector<8x64xf32>
    %229 = arith.truncf %226 : vector<8x64xf32> to vector<8x64xbf16>
    %cst_79 = arith.constant dense<0.000000e+00> : vector<8x32xf32>
    %230 = tpu.matmul %229, %1, %cst_79 {dimension_numbers = #tpu.dot_dimension_numbers<[1], [0], [0], [1], [0, 0, 1, 1], [], []>} : vector<8x64xbf16>, vector<64x32xbf16>, vector<8x32xf32> -> vector<8x32xf32>
    %231 = arith.addf %230, %7 : vector<8x32xf32>
    %232 = arith.truncf %228 : vector<8x64xf32> to vector<8x64xbf16>
    %cst_80 = arith.constant dense<0.000000e+00> : vector<8x32xf32>
    %233 = tpu.matmul %232, %1, %cst_80 {dimension_numbers = #tpu.dot_dimension_numbers<[1], [0], [0], [1], [0, 0, 1, 1], [], []>} : vector<8x64xbf16>, vector<64x32xbf16>, vector<8x32xf32> -> vector<8x32xf32>
    %234 = arith.addf %233, %7 : vector<8x32xf32>
    %cst_81 = arith.constant 5.000000e-01 : f32
    %235 = vector.broadcast %cst_81 : f32 to vector<8x32xf32>
    %236 = arith.mulf %235, %231 : vector<8x32xf32>
    %237 = arith.addf %186, %236 : vector<8x32xf32>
    %cst_82 = arith.constant 5.000000e-01 : f32
    %238 = vector.broadcast %cst_82 : f32 to vector<8x32xf32>
    %239 = arith.mulf %238, %234 : vector<8x32xf32>
    %240 = arith.addf %194, %239 : vector<8x32xf32>
    %241 = arith.truncf %237 : vector<8x32xf32> to vector<8x32xbf16>
    %cst_83 = arith.constant dense<0.000000e+00> : vector<8x64xf32>
    %242 = tpu.matmul %241, %0, %cst_83 {dimension_numbers = #tpu.dot_dimension_numbers<[1], [0], [0], [1], [0, 0, 1, 1], [], []>} : vector<8x32xbf16>, vector<32x64xbf16>, vector<8x64xf32> -> vector<8x64xf32>
    %243 = arith.truncf %240 : vector<8x32xf32> to vector<8x32xbf16>
    %cst_84 = arith.constant dense<0.000000e+00> : vector<8x64xf32>
    %244 = tpu.matmul %243, %0, %cst_84 {dimension_numbers = #tpu.dot_dimension_numbers<[1], [0], [0], [1], [0, 0, 1, 1], [], []>} : vector<8x32xbf16>, vector<32x64xbf16>, vector<8x64xf32> -> vector<8x64xf32>
    %245 = arith.addf %242, %4 : vector<8x64xf32>
    %246 = math.tanh %245 : vector<8x64xf32>
    %247 = arith.addf %244, %4 : vector<8x64xf32>
    %248 = math.tanh %247 : vector<8x64xf32>
    %249 = arith.truncf %246 : vector<8x64xf32> to vector<8x64xbf16>
    %cst_85 = arith.constant dense<0.000000e+00> : vector<8x32xf32>
    %250 = tpu.matmul %249, %1, %cst_85 {dimension_numbers = #tpu.dot_dimension_numbers<[1], [0], [0], [1], [0, 0, 1, 1], [], []>} : vector<8x64xbf16>, vector<64x32xbf16>, vector<8x32xf32> -> vector<8x32xf32>
    %251 = arith.addf %250, %7 : vector<8x32xf32>
    %252 = arith.truncf %248 : vector<8x64xf32> to vector<8x64xbf16>
    %cst_86 = arith.constant dense<0.000000e+00> : vector<8x32xf32>
    %253 = tpu.matmul %252, %1, %cst_86 {dimension_numbers = #tpu.dot_dimension_numbers<[1], [0], [0], [1], [0, 0, 1, 1], [], []>} : vector<8x64xbf16>, vector<64x32xbf16>, vector<8x32xf32> -> vector<8x32xf32>
    %254 = arith.addf %253, %7 : vector<8x32xf32>
    %255 = arith.addf %186, %251 : vector<8x32xf32>
    %256 = arith.addf %194, %254 : vector<8x32xf32>
    %257 = arith.truncf %255 : vector<8x32xf32> to vector<8x32xbf16>
    %cst_87 = arith.constant dense<0.000000e+00> : vector<8x64xf32>
    %258 = tpu.matmul %257, %0, %cst_87 {dimension_numbers = #tpu.dot_dimension_numbers<[1], [0], [0], [1], [0, 0, 1, 1], [], []>} : vector<8x32xbf16>, vector<32x64xbf16>, vector<8x64xf32> -> vector<8x64xf32>
    %259 = arith.truncf %256 : vector<8x32xf32> to vector<8x32xbf16>
    %cst_88 = arith.constant dense<0.000000e+00> : vector<8x64xf32>
    %260 = tpu.matmul %259, %0, %cst_88 {dimension_numbers = #tpu.dot_dimension_numbers<[1], [0], [0], [1], [0, 0, 1, 1], [], []>} : vector<8x32xbf16>, vector<32x64xbf16>, vector<8x64xf32> -> vector<8x64xf32>
    %261 = arith.addf %258, %4 : vector<8x64xf32>
    %262 = math.tanh %261 : vector<8x64xf32>
    %263 = arith.addf %260, %4 : vector<8x64xf32>
    %264 = math.tanh %263 : vector<8x64xf32>
    %265 = arith.truncf %262 : vector<8x64xf32> to vector<8x64xbf16>
    %cst_89 = arith.constant dense<0.000000e+00> : vector<8x32xf32>
    %266 = tpu.matmul %265, %1, %cst_89 {dimension_numbers = #tpu.dot_dimension_numbers<[1], [0], [0], [1], [0, 0, 1, 1], [], []>} : vector<8x64xbf16>, vector<64x32xbf16>, vector<8x32xf32> -> vector<8x32xf32>
    %267 = arith.addf %266, %7 : vector<8x32xf32>
    %268 = arith.truncf %264 : vector<8x64xf32> to vector<8x64xbf16>
    %cst_90 = arith.constant dense<0.000000e+00> : vector<8x32xf32>
    %269 = tpu.matmul %268, %1, %cst_90 {dimension_numbers = #tpu.dot_dimension_numbers<[1], [0], [0], [1], [0, 0, 1, 1], [], []>} : vector<8x64xbf16>, vector<64x32xbf16>, vector<8x32xf32> -> vector<8x32xf32>
    %270 = arith.addf %269, %7 : vector<8x32xf32>
    %271 = arith.addf %231, %251 : vector<8x32xf32>
    %cst_91 = arith.constant 2.000000e+00 : f32
    %272 = vector.broadcast %cst_91 : f32 to vector<8x32xf32>
    %273 = arith.mulf %272, %271 : vector<8x32xf32>
    %274 = arith.addf %211, %273 : vector<8x32xf32>
    %275 = arith.addf %274, %267 : vector<8x32xf32>
    %cst_92 = arith.constant 0.166666672 : f32
    %276 = vector.broadcast %cst_92 : f32 to vector<8x32xf32>
    %277 = arith.mulf %276, %275 : vector<8x32xf32>
    %278 = arith.addf %186, %277 : vector<8x32xf32>
    %279 = arith.addf %234, %254 : vector<8x32xf32>
    %cst_93 = arith.constant 2.000000e+00 : f32
    %280 = vector.broadcast %cst_93 : f32 to vector<8x32xf32>
    %281 = arith.mulf %280, %279 : vector<8x32xf32>
    %282 = arith.addf %214, %281 : vector<8x32xf32>
    %283 = arith.addf %282, %270 : vector<8x32xf32>
    %cst_94 = arith.constant 0.166666672 : f32
    %284 = vector.broadcast %cst_94 : f32 to vector<8x32xf32>
    %285 = arith.mulf %284, %283 : vector<8x32xf32>
    %286 = arith.addf %194, %285 : vector<8x32xf32>
    %c3 = arith.constant 3 : index
    %c0_95 = arith.constant 0 : index
    %c0_96 = arith.constant 0 : index
    %287 = vector.load %arg6[%c3, %c0_95, %c0_96] : memref<6x16x32xf32, #tpu.memory_space<vmem>>, vector<1x8x32xf32>
    %288 = vector.shape_cast %287 : vector<1x8x32xf32> to vector<8x32xf32>
    %289 = vector.shape_cast %278 : vector<8x32xf32> to vector<1x8x32xf32>
    tpu.vector_store %arg6[%c3, %c0_95, %c0_96], %289 {strides = array<i32>} : memref<6x16x32xf32, #tpu.memory_space<vmem>>, vector<1x8x32xf32>,
    %c3_97 = arith.constant 3 : index
    %c8_98 = arith.constant 8 : index
    %c0_99 = arith.constant 0 : index
    %290 = vector.load %arg6[%c3_97, %c8_98, %c0_99] : memref<6x16x32xf32, #tpu.memory_space<vmem>>, vector<1x8x32xf32>
    %291 = vector.shape_cast %290 : vector<1x8x32xf32> to vector<8x32xf32>
    %292 = vector.shape_cast %286 : vector<8x32xf32> to vector<1x8x32xf32>
    tpu.vector_store %arg6[%c3_97, %c8_98, %c0_99], %292 {strides = array<i32>} : memref<6x16x32xf32, #tpu.memory_space<vmem>>, vector<1x8x32xf32>,
    %293 = arith.truncf %278 : vector<8x32xf32> to vector<8x32xbf16>
    %cst_100 = arith.constant dense<0.000000e+00> : vector<8x64xf32>
    %294 = tpu.matmul %293, %0, %cst_100 {dimension_numbers = #tpu.dot_dimension_numbers<[1], [0], [0], [1], [0, 0, 1, 1], [], []>} : vector<8x32xbf16>, vector<32x64xbf16>, vector<8x64xf32> -> vector<8x64xf32>
    %295 = arith.truncf %286 : vector<8x32xf32> to vector<8x32xbf16>
    %cst_101 = arith.constant dense<0.000000e+00> : vector<8x64xf32>
    %296 = tpu.matmul %295, %0, %cst_101 {dimension_numbers = #tpu.dot_dimension_numbers<[1], [0], [0], [1], [0, 0, 1, 1], [], []>} : vector<8x32xbf16>, vector<32x64xbf16>, vector<8x64xf32> -> vector<8x64xf32>
    %297 = arith.addf %294, %4 : vector<8x64xf32>
    %298 = math.tanh %297 : vector<8x64xf32>
    %299 = arith.addf %296, %4 : vector<8x64xf32>
    %300 = math.tanh %299 : vector<8x64xf32>
    %301 = arith.truncf %298 : vector<8x64xf32> to vector<8x64xbf16>
    %cst_102 = arith.constant dense<0.000000e+00> : vector<8x32xf32>
    %302 = tpu.matmul %301, %1, %cst_102 {dimension_numbers = #tpu.dot_dimension_numbers<[1], [0], [0], [1], [0, 0, 1, 1], [], []>} : vector<8x64xbf16>, vector<64x32xbf16>, vector<8x32xf32> -> vector<8x32xf32>
    %303 = arith.addf %302, %7 : vector<8x32xf32>
    %304 = arith.truncf %300 : vector<8x64xf32> to vector<8x64xbf16>
    %cst_103 = arith.constant dense<0.000000e+00> : vector<8x32xf32>
    %305 = tpu.matmul %304, %1, %cst_103 {dimension_numbers = #tpu.dot_dimension_numbers<[1], [0], [0], [1], [0, 0, 1, 1], [], []>} : vector<8x64xbf16>, vector<64x32xbf16>, vector<8x32xf32> -> vector<8x32xf32>
    %306 = arith.addf %305, %7 : vector<8x32xf32>
    %cst_104 = arith.constant 5.000000e-01 : f32
    %307 = vector.broadcast %cst_104 : f32 to vector<8x32xf32>
    %308 = arith.mulf %307, %303 : vector<8x32xf32>
    %309 = arith.addf %278, %308 : vector<8x32xf32>
    %cst_105 = arith.constant 5.000000e-01 : f32
    %310 = vector.broadcast %cst_105 : f32 to vector<8x32xf32>
    %311 = arith.mulf %310, %306 : vector<8x32xf32>
    %312 = arith.addf %286, %311 : vector<8x32xf32>
    %313 = arith.truncf %309 : vector<8x32xf32> to vector<8x32xbf16>
    %cst_106 = arith.constant dense<0.000000e+00> : vector<8x64xf32>
    %314 = tpu.matmul %313, %0, %cst_106 {dimension_numbers = #tpu.dot_dimension_numbers<[1], [0], [0], [1], [0, 0, 1, 1], [], []>} : vector<8x32xbf16>, vector<32x64xbf16>, vector<8x64xf32> -> vector<8x64xf32>
    %315 = arith.truncf %312 : vector<8x32xf32> to vector<8x32xbf16>
    %cst_107 = arith.constant dense<0.000000e+00> : vector<8x64xf32>
    %316 = tpu.matmul %315, %0, %cst_107 {dimension_numbers = #tpu.dot_dimension_numbers<[1], [0], [0], [1], [0, 0, 1, 1], [], []>} : vector<8x32xbf16>, vector<32x64xbf16>, vector<8x64xf32> -> vector<8x64xf32>
    %317 = arith.addf %314, %4 : vector<8x64xf32>
    %318 = math.tanh %317 : vector<8x64xf32>
    %319 = arith.addf %316, %4 : vector<8x64xf32>
    %320 = math.tanh %319 : vector<8x64xf32>
    %321 = arith.truncf %318 : vector<8x64xf32> to vector<8x64xbf16>
    %cst_108 = arith.constant dense<0.000000e+00> : vector<8x32xf32>
    %322 = tpu.matmul %321, %1, %cst_108 {dimension_numbers = #tpu.dot_dimension_numbers<[1], [0], [0], [1], [0, 0, 1, 1], [], []>} : vector<8x64xbf16>, vector<64x32xbf16>, vector<8x32xf32> -> vector<8x32xf32>
    %323 = arith.addf %322, %7 : vector<8x32xf32>
    %324 = arith.truncf %320 : vector<8x64xf32> to vector<8x64xbf16>
    %cst_109 = arith.constant dense<0.000000e+00> : vector<8x32xf32>
    %325 = tpu.matmul %324, %1, %cst_109 {dimension_numbers = #tpu.dot_dimension_numbers<[1], [0], [0], [1], [0, 0, 1, 1], [], []>} : vector<8x64xbf16>, vector<64x32xbf16>, vector<8x32xf32> -> vector<8x32xf32>
    %326 = arith.addf %325, %7 : vector<8x32xf32>
    %cst_110 = arith.constant 5.000000e-01 : f32
    %327 = vector.broadcast %cst_110 : f32 to vector<8x32xf32>
    %328 = arith.mulf %327, %323 : vector<8x32xf32>
    %329 = arith.addf %278, %328 : vector<8x32xf32>
    %cst_111 = arith.constant 5.000000e-01 : f32
    %330 = vector.broadcast %cst_111 : f32 to vector<8x32xf32>
    %331 = arith.mulf %330, %326 : vector<8x32xf32>
    %332 = arith.addf %286, %331 : vector<8x32xf32>
    %333 = arith.truncf %329 : vector<8x32xf32> to vector<8x32xbf16>
    %cst_112 = arith.constant dense<0.000000e+00> : vector<8x64xf32>
    %334 = tpu.matmul %333, %0, %cst_112 {dimension_numbers = #tpu.dot_dimension_numbers<[1], [0], [0], [1], [0, 0, 1, 1], [], []>} : vector<8x32xbf16>, vector<32x64xbf16>, vector<8x64xf32> -> vector<8x64xf32>
    %335 = arith.truncf %332 : vector<8x32xf32> to vector<8x32xbf16>
    %cst_113 = arith.constant dense<0.000000e+00> : vector<8x64xf32>
    %336 = tpu.matmul %335, %0, %cst_113 {dimension_numbers = #tpu.dot_dimension_numbers<[1], [0], [0], [1], [0, 0, 1, 1], [], []>} : vector<8x32xbf16>, vector<32x64xbf16>, vector<8x64xf32> -> vector<8x64xf32>
    %337 = arith.addf %334, %4 : vector<8x64xf32>
    %338 = math.tanh %337 : vector<8x64xf32>
    %339 = arith.addf %336, %4 : vector<8x64xf32>
    %340 = math.tanh %339 : vector<8x64xf32>
    %341 = arith.truncf %338 : vector<8x64xf32> to vector<8x64xbf16>
    %cst_114 = arith.constant dense<0.000000e+00> : vector<8x32xf32>
    %342 = tpu.matmul %341, %1, %cst_114 {dimension_numbers = #tpu.dot_dimension_numbers<[1], [0], [0], [1], [0, 0, 1, 1], [], []>} : vector<8x64xbf16>, vector<64x32xbf16>, vector<8x32xf32> -> vector<8x32xf32>
    %343 = arith.addf %342, %7 : vector<8x32xf32>
    %344 = arith.truncf %340 : vector<8x64xf32> to vector<8x64xbf16>
    %cst_115 = arith.constant dense<0.000000e+00> : vector<8x32xf32>
    %345 = tpu.matmul %344, %1, %cst_115 {dimension_numbers = #tpu.dot_dimension_numbers<[1], [0], [0], [1], [0, 0, 1, 1], [], []>} : vector<8x64xbf16>, vector<64x32xbf16>, vector<8x32xf32> -> vector<8x32xf32>
    %346 = arith.addf %345, %7 : vector<8x32xf32>
    %347 = arith.addf %278, %343 : vector<8x32xf32>
    %348 = arith.addf %286, %346 : vector<8x32xf32>
    %349 = arith.truncf %347 : vector<8x32xf32> to vector<8x32xbf16>
    %cst_116 = arith.constant dense<0.000000e+00> : vector<8x64xf32>
    %350 = tpu.matmul %349, %0, %cst_116 {dimension_numbers = #tpu.dot_dimension_numbers<[1], [0], [0], [1], [0, 0, 1, 1], [], []>} : vector<8x32xbf16>, vector<32x64xbf16>, vector<8x64xf32> -> vector<8x64xf32>
    %351 = arith.truncf %348 : vector<8x32xf32> to vector<8x32xbf16>
    %cst_117 = arith.constant dense<0.000000e+00> : vector<8x64xf32>
    %352 = tpu.matmul %351, %0, %cst_117 {dimension_numbers = #tpu.dot_dimension_numbers<[1], [0], [0], [1], [0, 0, 1, 1], [], []>} : vector<8x32xbf16>, vector<32x64xbf16>, vector<8x64xf32> -> vector<8x64xf32>
    %353 = arith.addf %350, %4 : vector<8x64xf32>
    %354 = math.tanh %353 : vector<8x64xf32>
    %355 = arith.addf %352, %4 : vector<8x64xf32>
    %356 = math.tanh %355 : vector<8x64xf32>
    %357 = arith.truncf %354 : vector<8x64xf32> to vector<8x64xbf16>
    %cst_118 = arith.constant dense<0.000000e+00> : vector<8x32xf32>
    %358 = tpu.matmul %357, %1, %cst_118 {dimension_numbers = #tpu.dot_dimension_numbers<[1], [0], [0], [1], [0, 0, 1, 1], [], []>} : vector<8x64xbf16>, vector<64x32xbf16>, vector<8x32xf32> -> vector<8x32xf32>
    %359 = arith.addf %358, %7 : vector<8x32xf32>
    %360 = arith.truncf %356 : vector<8x64xf32> to vector<8x64xbf16>
    %cst_119 = arith.constant dense<0.000000e+00> : vector<8x32xf32>
    %361 = tpu.matmul %360, %1, %cst_119 {dimension_numbers = #tpu.dot_dimension_numbers<[1], [0], [0], [1], [0, 0, 1, 1], [], []>} : vector<8x64xbf16>, vector<64x32xbf16>, vector<8x32xf32> -> vector<8x32xf32>
    %362 = arith.addf %361, %7 : vector<8x32xf32>
    %363 = arith.addf %323, %343 : vector<8x32xf32>
    %cst_120 = arith.constant 2.000000e+00 : f32
    %364 = vector.broadcast %cst_120 : f32 to vector<8x32xf32>
    %365 = arith.mulf %364, %363 : vector<8x32xf32>
    %366 = arith.addf %303, %365 : vector<8x32xf32>
    %367 = arith.addf %366, %359 : vector<8x32xf32>
    %cst_121 = arith.constant 0.166666672 : f32
    %368 = vector.broadcast %cst_121 : f32 to vector<8x32xf32>
    %369 = arith.mulf %368, %367 : vector<8x32xf32>
    %370 = arith.addf %278, %369 : vector<8x32xf32>
    %371 = arith.addf %326, %346 : vector<8x32xf32>
    %cst_122 = arith.constant 2.000000e+00 : f32
    %372 = vector.broadcast %cst_122 : f32 to vector<8x32xf32>
    %373 = arith.mulf %372, %371 : vector<8x32xf32>
    %374 = arith.addf %306, %373 : vector<8x32xf32>
    %375 = arith.addf %374, %362 : vector<8x32xf32>
    %cst_123 = arith.constant 0.166666672 : f32
    %376 = vector.broadcast %cst_123 : f32 to vector<8x32xf32>
    %377 = arith.mulf %376, %375 : vector<8x32xf32>
    %378 = arith.addf %286, %377 : vector<8x32xf32>
    %c4 = arith.constant 4 : index
    %c0_124 = arith.constant 0 : index
    %c0_125 = arith.constant 0 : index
    %379 = vector.load %arg6[%c4, %c0_124, %c0_125] : memref<6x16x32xf32, #tpu.memory_space<vmem>>, vector<1x8x32xf32>
    %380 = vector.shape_cast %379 : vector<1x8x32xf32> to vector<8x32xf32>
    %381 = vector.shape_cast %370 : vector<8x32xf32> to vector<1x8x32xf32>
    tpu.vector_store %arg6[%c4, %c0_124, %c0_125], %381 {strides = array<i32>} : memref<6x16x32xf32, #tpu.memory_space<vmem>>, vector<1x8x32xf32>,
    %c4_126 = arith.constant 4 : index
    %c8_127 = arith.constant 8 : index
    %c0_128 = arith.constant 0 : index
    %382 = vector.load %arg6[%c4_126, %c8_127, %c0_128] : memref<6x16x32xf32, #tpu.memory_space<vmem>>, vector<1x8x32xf32>
    %383 = vector.shape_cast %382 : vector<1x8x32xf32> to vector<8x32xf32>
    %384 = vector.shape_cast %378 : vector<8x32xf32> to vector<1x8x32xf32>
    tpu.vector_store %arg6[%c4_126, %c8_127, %c0_128], %384 {strides = array<i32>} : memref<6x16x32xf32, #tpu.memory_space<vmem>>, vector<1x8x32xf32>,
    %385 = arith.truncf %370 : vector<8x32xf32> to vector<8x32xbf16>
    %cst_129 = arith.constant dense<0.000000e+00> : vector<8x64xf32>
    %386 = tpu.matmul %385, %0, %cst_129 {dimension_numbers = #tpu.dot_dimension_numbers<[1], [0], [0], [1], [0, 0, 1, 1], [], []>} : vector<8x32xbf16>, vector<32x64xbf16>, vector<8x64xf32> -> vector<8x64xf32>
    %387 = arith.truncf %378 : vector<8x32xf32> to vector<8x32xbf16>
    %cst_130 = arith.constant dense<0.000000e+00> : vector<8x64xf32>
    %388 = tpu.matmul %387, %0, %cst_130 {dimension_numbers = #tpu.dot_dimension_numbers<[1], [0], [0], [1], [0, 0, 1, 1], [], []>} : vector<8x32xbf16>, vector<32x64xbf16>, vector<8x64xf32> -> vector<8x64xf32>
    %389 = arith.addf %386, %4 : vector<8x64xf32>
    %390 = math.tanh %389 : vector<8x64xf32>
    %391 = arith.addf %388, %4 : vector<8x64xf32>
    %392 = math.tanh %391 : vector<8x64xf32>
    %393 = arith.truncf %390 : vector<8x64xf32> to vector<8x64xbf16>
    %cst_131 = arith.constant dense<0.000000e+00> : vector<8x32xf32>
    %394 = tpu.matmul %393, %1, %cst_131 {dimension_numbers = #tpu.dot_dimension_numbers<[1], [0], [0], [1], [0, 0, 1, 1], [], []>} : vector<8x64xbf16>, vector<64x32xbf16>, vector<8x32xf32> -> vector<8x32xf32>
    %395 = arith.addf %394, %7 : vector<8x32xf32>
    %396 = arith.truncf %392 : vector<8x64xf32> to vector<8x64xbf16>
    %cst_132 = arith.constant dense<0.000000e+00> : vector<8x32xf32>
    %397 = tpu.matmul %396, %1, %cst_132 {dimension_numbers = #tpu.dot_dimension_numbers<[1], [0], [0], [1], [0, 0, 1, 1], [], []>} : vector<8x64xbf16>, vector<64x32xbf16>, vector<8x32xf32> -> vector<8x32xf32>
    %398 = arith.addf %397, %7 : vector<8x32xf32>
    %cst_133 = arith.constant 5.000000e-01 : f32
    %399 = vector.broadcast %cst_133 : f32 to vector<8x32xf32>
    %400 = arith.mulf %399, %395 : vector<8x32xf32>
    %401 = arith.addf %370, %400 : vector<8x32xf32>
    %cst_134 = arith.constant 5.000000e-01 : f32
    %402 = vector.broadcast %cst_134 : f32 to vector<8x32xf32>
    %403 = arith.mulf %402, %398 : vector<8x32xf32>
    %404 = arith.addf %378, %403 : vector<8x32xf32>
    %405 = arith.truncf %401 : vector<8x32xf32> to vector<8x32xbf16>
    %cst_135 = arith.constant dense<0.000000e+00> : vector<8x64xf32>
    %406 = tpu.matmul %405, %0, %cst_135 {dimension_numbers = #tpu.dot_dimension_numbers<[1], [0], [0], [1], [0, 0, 1, 1], [], []>} : vector<8x32xbf16>, vector<32x64xbf16>, vector<8x64xf32> -> vector<8x64xf32>
    %407 = arith.truncf %404 : vector<8x32xf32> to vector<8x32xbf16>
    %cst_136 = arith.constant dense<0.000000e+00> : vector<8x64xf32>
    %408 = tpu.matmul %407, %0, %cst_136 {dimension_numbers = #tpu.dot_dimension_numbers<[1], [0], [0], [1], [0, 0, 1, 1], [], []>} : vector<8x32xbf16>, vector<32x64xbf16>, vector<8x64xf32> -> vector<8x64xf32>
    %409 = arith.addf %406, %4 : vector<8x64xf32>
    %410 = math.tanh %409 : vector<8x64xf32>
    %411 = arith.addf %408, %4 : vector<8x64xf32>
    %412 = math.tanh %411 : vector<8x64xf32>
    %413 = arith.truncf %410 : vector<8x64xf32> to vector<8x64xbf16>
    %cst_137 = arith.constant dense<0.000000e+00> : vector<8x32xf32>
    %414 = tpu.matmul %413, %1, %cst_137 {dimension_numbers = #tpu.dot_dimension_numbers<[1], [0], [0], [1], [0, 0, 1, 1], [], []>} : vector<8x64xbf16>, vector<64x32xbf16>, vector<8x32xf32> -> vector<8x32xf32>
    %415 = arith.addf %414, %7 : vector<8x32xf32>
    %416 = arith.truncf %412 : vector<8x64xf32> to vector<8x64xbf16>
    %cst_138 = arith.constant dense<0.000000e+00> : vector<8x32xf32>
    %417 = tpu.matmul %416, %1, %cst_138 {dimension_numbers = #tpu.dot_dimension_numbers<[1], [0], [0], [1], [0, 0, 1, 1], [], []>} : vector<8x64xbf16>, vector<64x32xbf16>, vector<8x32xf32> -> vector<8x32xf32>
    %418 = arith.addf %417, %7 : vector<8x32xf32>
    %cst_139 = arith.constant 5.000000e-01 : f32
    %419 = vector.broadcast %cst_139 : f32 to vector<8x32xf32>
    %420 = arith.mulf %419, %415 : vector<8x32xf32>
    %421 = arith.addf %370, %420 : vector<8x32xf32>
    %cst_140 = arith.constant 5.000000e-01 : f32
    %422 = vector.broadcast %cst_140 : f32 to vector<8x32xf32>
    %423 = arith.mulf %422, %418 : vector<8x32xf32>
    %424 = arith.addf %378, %423 : vector<8x32xf32>
    %425 = arith.truncf %421 : vector<8x32xf32> to vector<8x32xbf16>
    %cst_141 = arith.constant dense<0.000000e+00> : vector<8x64xf32>
    %426 = tpu.matmul %425, %0, %cst_141 {dimension_numbers = #tpu.dot_dimension_numbers<[1], [0], [0], [1], [0, 0, 1, 1], [], []>} : vector<8x32xbf16>, vector<32x64xbf16>, vector<8x64xf32> -> vector<8x64xf32>
    %427 = arith.truncf %424 : vector<8x32xf32> to vector<8x32xbf16>
    %cst_142 = arith.constant dense<0.000000e+00> : vector<8x64xf32>
    %428 = tpu.matmul %427, %0, %cst_142 {dimension_numbers = #tpu.dot_dimension_numbers<[1], [0], [0], [1], [0, 0, 1, 1], [], []>} : vector<8x32xbf16>, vector<32x64xbf16>, vector<8x64xf32> -> vector<8x64xf32>
    %429 = arith.addf %426, %4 : vector<8x64xf32>
    %430 = math.tanh %429 : vector<8x64xf32>
    %431 = arith.addf %428, %4 : vector<8x64xf32>
    %432 = math.tanh %431 : vector<8x64xf32>
    %433 = arith.truncf %430 : vector<8x64xf32> to vector<8x64xbf16>
    %cst_143 = arith.constant dense<0.000000e+00> : vector<8x32xf32>
    %434 = tpu.matmul %433, %1, %cst_143 {dimension_numbers = #tpu.dot_dimension_numbers<[1], [0], [0], [1], [0, 0, 1, 1], [], []>} : vector<8x64xbf16>, vector<64x32xbf16>, vector<8x32xf32> -> vector<8x32xf32>
    %435 = arith.addf %434, %7 : vector<8x32xf32>
    %436 = arith.truncf %432 : vector<8x64xf32> to vector<8x64xbf16>
    %cst_144 = arith.constant dense<0.000000e+00> : vector<8x32xf32>
    %437 = tpu.matmul %436, %1, %cst_144 {dimension_numbers = #tpu.dot_dimension_numbers<[1], [0], [0], [1], [0, 0, 1, 1], [], []>} : vector<8x64xbf16>, vector<64x32xbf16>, vector<8x32xf32> -> vector<8x32xf32>
    %438 = arith.addf %437, %7 : vector<8x32xf32>
    %439 = arith.addf %370, %435 : vector<8x32xf32>
    %440 = arith.addf %378, %438 : vector<8x32xf32>
    %441 = arith.truncf %439 : vector<8x32xf32> to vector<8x32xbf16>
    %cst_145 = arith.constant dense<0.000000e+00> : vector<8x64xf32>
    %442 = tpu.matmul %441, %0, %cst_145 {dimension_numbers = #tpu.dot_dimension_numbers<[1], [0], [0], [1], [0, 0, 1, 1], [], []>} : vector<8x32xbf16>, vector<32x64xbf16>, vector<8x64xf32> -> vector<8x64xf32>
    %443 = arith.truncf %440 : vector<8x32xf32> to vector<8x32xbf16>
    %cst_146 = arith.constant dense<0.000000e+00> : vector<8x64xf32>
    %444 = tpu.matmul %443, %0, %cst_146 {dimension_numbers = #tpu.dot_dimension_numbers<[1], [0], [0], [1], [0, 0, 1, 1], [], []>} : vector<8x32xbf16>, vector<32x64xbf16>, vector<8x64xf32> -> vector<8x64xf32>
    %445 = arith.addf %442, %4 : vector<8x64xf32>
    %446 = math.tanh %445 : vector<8x64xf32>
    %447 = arith.addf %444, %4 : vector<8x64xf32>
    %448 = math.tanh %447 : vector<8x64xf32>
    %449 = arith.truncf %446 : vector<8x64xf32> to vector<8x64xbf16>
    %cst_147 = arith.constant dense<0.000000e+00> : vector<8x32xf32>
    %450 = tpu.matmul %449, %1, %cst_147 {dimension_numbers = #tpu.dot_dimension_numbers<[1], [0], [0], [1], [0, 0, 1, 1], [], []>} : vector<8x64xbf16>, vector<64x32xbf16>, vector<8x32xf32> -> vector<8x32xf32>
    %451 = arith.addf %450, %7 : vector<8x32xf32>
    %452 = arith.truncf %448 : vector<8x64xf32> to vector<8x64xbf16>
    %cst_148 = arith.constant dense<0.000000e+00> : vector<8x32xf32>
    %453 = tpu.matmul %452, %1, %cst_148 {dimension_numbers = #tpu.dot_dimension_numbers<[1], [0], [0], [1], [0, 0, 1, 1], [], []>} : vector<8x64xbf16>, vector<64x32xbf16>, vector<8x32xf32> -> vector<8x32xf32>
    %454 = arith.addf %453, %7 : vector<8x32xf32>
    %455 = arith.addf %415, %435 : vector<8x32xf32>
    %cst_149 = arith.constant 2.000000e+00 : f32
    %456 = vector.broadcast %cst_149 : f32 to vector<8x32xf32>
    %457 = arith.mulf %456, %455 : vector<8x32xf32>
    %458 = arith.addf %395, %457 : vector<8x32xf32>
    %459 = arith.addf %458, %451 : vector<8x32xf32>
    %cst_150 = arith.constant 0.166666672 : f32
    %460 = vector.broadcast %cst_150 : f32 to vector<8x32xf32>
    %461 = arith.mulf %460, %459 : vector<8x32xf32>
    %462 = arith.addf %370, %461 : vector<8x32xf32>
    %463 = arith.addf %418, %438 : vector<8x32xf32>
    %cst_151 = arith.constant 2.000000e+00 : f32
    %464 = vector.broadcast %cst_151 : f32 to vector<8x32xf32>
    %465 = arith.mulf %464, %463 : vector<8x32xf32>
    %466 = arith.addf %398, %465 : vector<8x32xf32>
    %467 = arith.addf %466, %454 : vector<8x32xf32>
    %cst_152 = arith.constant 0.166666672 : f32
    %468 = vector.broadcast %cst_152 : f32 to vector<8x32xf32>
    %469 = arith.mulf %468, %467 : vector<8x32xf32>
    %470 = arith.addf %378, %469 : vector<8x32xf32>
    %c5 = arith.constant 5 : index
    %c0_153 = arith.constant 0 : index
    %c0_154 = arith.constant 0 : index
    %471 = vector.load %arg6[%c5, %c0_153, %c0_154] : memref<6x16x32xf32, #tpu.memory_space<vmem>>, vector<1x8x32xf32>
    %472 = vector.shape_cast %471 : vector<1x8x32xf32> to vector<8x32xf32>
    %473 = vector.shape_cast %462 : vector<8x32xf32> to vector<1x8x32xf32>
    tpu.vector_store %arg6[%c5, %c0_153, %c0_154], %473 {strides = array<i32>} : memref<6x16x32xf32, #tpu.memory_space<vmem>>, vector<1x8x32xf32>,
    %c5_155 = arith.constant 5 : index
    %c8_156 = arith.constant 8 : index
    %c0_157 = arith.constant 0 : index
    %474 = vector.load %arg6[%c5_155, %c8_156, %c0_157] : memref<6x16x32xf32, #tpu.memory_space<vmem>>, vector<1x8x32xf32>
    %475 = vector.shape_cast %474 : vector<1x8x32xf32> to vector<8x32xf32>
    %476 = vector.shape_cast %470 : vector<8x32xf32> to vector<1x8x32xf32>
    tpu.vector_store %arg6[%c5_155, %c8_156, %c0_157], %476 {strides = array<i32>} : memref<6x16x32xf32, #tpu.memory_space<vmem>>, vector<1x8x32xf32>,
    return
  }
  func.func @transform_0(%arg0: i32) -> (i32, i32) {
    %c0_i32 = arith.constant 0 : i32
    %c0_i32_0 = arith.constant 0 : i32
    return %arg0, %c0_i32 : i32, i32
  }
  func.func @transform_1(%arg0: i32) -> (i32, i32) {
    %c0_i32 = arith.constant 0 : i32
    %c0_i32_0 = arith.constant 0 : i32
    %c0_i32_1 = arith.constant 0 : i32
    return %c0_i32, %c0_i32_0 : i32, i32
  }
  func.func @transform_2(%arg0: i32) -> (i32, i32) {
    %c0_i32 = arith.constant 0 : i32
    %c0_i32_0 = arith.constant 0 : i32
    %c0_i32_1 = arith.constant 0 : i32
    return %c0_i32, %c0_i32_0 : i32, i32
  }
  func.func @transform_3(%arg0: i32) -> (i32, i32) {
    %c0_i32 = arith.constant 0 : i32
    %c0_i32_0 = arith.constant 0 : i32
    %c0_i32_1 = arith.constant 0 : i32
    return %c0_i32, %c0_i32_0 : i32, i32
  }
  func.func @transform_4(%arg0: i32) -> (i32, i32) {
    %c0_i32 = arith.constant 0 : i32
    %c0_i32_0 = arith.constant 0 : i32
    %c0_i32_1 = arith.constant 0 : i32
    return %c0_i32, %c0_i32_0 : i32, i32
  }
  func.func @transform_5(%arg0: i32) -> (i32, i32, i32) {
    %c0_i32 = arith.constant 0 : i32
    %c0_i32_0 = arith.constant 0 : i32
    %c0_i32_1 = arith.constant 0 : i32
    return %c0_i32, %arg0, %c0_i32_0 : i32, i32, i32
  }
}

</mosaic_0001>

<llo_original>
// kernel: tpu_custom_call.1
$region0: #{tpu_custom_call.1}
  #allocation0 [shape = 'u32[]', space=smem, size = 0x4, offset = 0x4, fixed_abs, tag = 'smem constant byte address 0x4 - core index']
  #allocation1 [shape = 'u32[144,128]{1,0:T(1,128)}', space=vmem, size = 0x12000, scoped, tag = 'internal scratch']
  %s0 = inlined_call_operand.vmem [shape: f32[16,32], index: 0, kind: input, shape index: {}]
  %s1 = inlined_call_operand.vmem [shape: bf16[32,64], index: 1, kind: input, shape index: {}]
  %s2 = inlined_call_operand.vmem [shape: f32[1,64], index: 2, kind: input, shape index: {}]
  %s3 = inlined_call_operand.vmem [shape: bf16[64,32], index: 3, kind: input, shape index: {}]
  %s4 = inlined_call_operand.vmem [shape: f32[1,32], index: 4, kind: input, shape index: {}]
  %s5 = inlined_call_operand.hbm [shape: f32[6,16,32], index: 5, kind: output, shape index: {}]
  %s6 = sld [smem:[#allocation0]]
  $region30: #{tpu_custom_call.1} parent=0
    _
  %s8 = ssub.s32 1, %s6
  %s9 = scalar_select 0, %s8, %s6
  $region1: #{tpu_custom_call.1} parent=0
    #allocation2 [shape = 'u8[49152]{0}', space=vmem, size = 0xc000, scoped, tag = 'output window, operand 0, single buffered']
    #allocation3 [shape = 's32[1]{0}', space=sflag, size = 0x4, scoped, tag = 'scoped memory for tpu_custom_call.1']
    %10 = vsyncpa [#allocation3], 0
    // Predicated region
    $region2: #{tpu_custom_call.1} parent=1 // pred_check
      _
    $region3: #{tpu_custom_call.1} parent=1 // pred_check_branch
      %12 = sbr.rel (0) target = $region5
    $region4: #{tpu_custom_call.1} parent=1 // pred_region
      _
    $region5: #{tpu_custom_call.1} parent=1 // pred_fallthru
      _
    // Predicated region
    $region6: #{tpu_custom_call.1} parent=1 // pred_check
      _
    $region7: #{tpu_custom_call.1} parent=1 // pred_check_branch
      %14 = sbr.rel (0) target = $region9
    $region8: #{tpu_custom_call.1} parent=1 // pred_region
      _
    $region9: #{tpu_custom_call.1} parent=1 // pred_fallthru
      _
    // Predicated region
    $region10: #{tpu_custom_call.1} parent=1 // pred_check
      _
    $region11: #{tpu_custom_call.1} parent=1 // pred_check_branch
      %16 = sbr.rel (0) target = $region13
    $region12: #{tpu_custom_call.1} parent=1 // pred_region
      _
    $region13: #{tpu_custom_call.1} parent=1 // pred_fallthru
      _
    // Predicated region
    $region14: #{tpu_custom_call.1} parent=1 // pred_check
      _
    $region15: #{tpu_custom_call.1} parent=1 // pred_check_branch
      %18 = sbr.rel (0) target = $region17
    $region16: #{tpu_custom_call.1} parent=1 // pred_region
      _
    $region17: #{tpu_custom_call.1} parent=1 // pred_fallthru
      _
    // Predicated region
    $region18: #{tpu_custom_call.1} parent=1 // pred_check
      _
    $region19: #{tpu_custom_call.1} parent=1 // pred_check_branch
      %20 = sbr.rel (0) target = $region21
    $region20: #{tpu_custom_call.1} parent=1 // pred_region
      _
    $region21: #{tpu_custom_call.1} parent=1 // pred_fallthru
      _
    %v22 = vld [vmem:[%s1] sm:$0xf]
    %v23 = vld [vmem:[%s1 + $0x4] sm:$0xf]
    %v24 = vld [vmem:[%s1 + $0x8] sm:$0xf]
    %v25 = vld [vmem:[%s1 + $0xc] sm:$0xf]
    %v26 = vld [vmem:[%s3] sm:$0xf]
    %v27 = vld [vmem:[%s3 + $0x4] sm:$0xf]
    %v28 = vld [vmem:[%s3 + $0x8] sm:$0xf]
    %v29 = vld [vmem:[%s3 + $0xc] sm:$0xf]
    %v30 = vld [vmem:[%s3 + $0x10] sm:$0xf]
    %v31 = vld [vmem:[%s3 + $0x14] sm:$0xf]
    %v32 = vld [vmem:[%s3 + $0x18] sm:$0xf]
    %v33 = vld [vmem:[%s3 + $0x1c] sm:$0xf]
    %v34 = vld [vmem:[%s2] sm:$0x1]
    %v36 = vlaneseq
    %v37 = vshrl.u32 %v36, 7
    %v38 = vsub.s32 0, %v37
    %v39 = vrot.slane %v34, %v38
    %v41 = vld [vmem:[%s4] sm:$0x1]
    %v43 = vlaneseq
    %v44 = vshrl.u32 %v43, 7
    %v45 = vsub.s32 0, %v44
    %v46 = vrot.slane %v41, %v45
    %v48 = vld [vmem:[%s0] sm:$0xff]
    %v49 = vld [vmem:[%s0 + $0x8] sm:$0xff]
    %vm50 = vcmask 261120
    %51 = vst.msk [vmem:[#allocation2] sm:$0xff] %vm50, %v48
    %52 = vst.msk [vmem:[#allocation2 + $0x8] sm:$0xff] %vm50, %v49
    %v53 = vpack.c.bf16 %v48, %v48
    %v54 = vpack.c.bf16 %v49, %v49
    %v59 = vunpack.c.l.b16 %v22
    %v60 = vunpack.c.l.b16 %v23
    %v61 = vunpack.c.l.b16 %v24
    %v62 = vunpack.c.l.b16 %v25
    %v63 = vpack.c.b16 %v60, %v59
    %v64 = vpack.c.b16 %v62, %v61
    %v68 = vsel %vm50, %v53, 0
    %70 = vmatprep.subr.bf16.mxu0 0
    %71 = vmatpush1.bf16.msra.mxu0 0
    %72 = vmatprep.subr.bf16.mxu0 0
    %73 = vmatpush1.bf16.msra.mxu0 0
    %74 = vmatprep.subr.bf16.mxu0 0
    %75 = vmatpush1.bf16.msra.mxu0 0
    %76 = vmatprep.subr.bf16.mxu0 0
    %77 = vmatpush1.bf16.msra.mxu0 0
    %78 = vmatprep.subr.bf16.mxu0 0
    %79 = vmatpush1.bf16.msra.mxu0 0
    %80 = vmatprep.subr.bf16.mxu0 0
    %81 = vmatpush1.bf16.msra.mxu0 0
    %82 = vmatprep.subr.bf16.mxu0 0
    %83 = vmatpush1.bf16.msra.mxu0 %v64
    %84 = vmatprep.subr.bf16.mxu0 0
    %85 = vmatpush1.bf16.msra.mxu0 %v63
    %86 = vmatprep.subr.bf16.mxu0 0
    %87 = vmatpush2.bf16.msra.mxu0 0
    %88 = vmatprep.subr.bf16.mxu0 0
    %89 = vmatpush2.bf16.msra.mxu0 0
    %90 = vmatprep.subr.bf16.mxu0 0
    %91 = vmatpush2.bf16.msra.mxu0 0
    %92 = vmatprep.subr.bf16.mxu0 0
    %93 = vmatpush2.bf16.msra.mxu0 0
    %94 = vmatprep.subr.bf16.mxu0 0
    %95 = vmatpush2.bf16.msra.mxu0 0
    %96 = vmatprep.subr.bf16.mxu0 0
    %97 = vmatpush2.bf16.msra.mxu0 0
    %98 = vmatprep.subr.bf16.mxu0 0
    %99 = vmatpush2.bf16.msra.mxu0 0
    %100 = vmatprep.subr.bf16.mxu0 0
    %101 = vmatpush2.bf16.msra.mxu0 0
    %102 = vmatprep.mubr.bf16.mxu0 0
    %103 = vmatmul.mubr.bf16.gmra.mxu0 %v68
    %v104 = vpop.f32.mrf.mxu0
    %v105 = vadd.f32 %v39, %v104
    %v106 = vpop.f32.mrf.mxu0
    %v107 = vpop.f32.mrf.mxu0
    %v108 = vpop.f32.mrf.mxu0
    %109 = vdwg.mxu0
    %v110 = vtanh.pop %v105
    %v112 = vsel %vm50, %v54, 0
    %114 = vmatprep.subr.bf16.mxu0 0
    %115 = vmatpush1.bf16.msra.mxu0 0
    %116 = vmatprep.subr.bf16.mxu0 0
    %117 = vmatpush1.bf16.msra.mxu0 0
    %118 = vmatprep.subr.bf16.mxu0 0
    %119 = vmatpush1.bf16.msra.mxu0 0
    %120 = vmatprep.subr.bf16.mxu0 0
    %121 = vmatpush1.bf16.msra.mxu0 0
    %122 = vmatprep.subr.bf16.mxu0 0
    %123 = vmatpush1.bf16.msra.mxu0 0
    %124 = vmatprep.subr.bf16.mxu0 0
    %125 = vmatpush1.bf16.msra.mxu0 0
    %126 = vmatprep.subr.bf16.mxu0 0
    %127 = vmatpush1.bf16.msra.mxu0 %v64
    %128 = vmatprep.subr.bf16.mxu0 0
    %129 = vmatpush1.bf16.msra.mxu0 %v63
    %130 = vmatprep.subr.bf16.mxu0 0
    %131 = vmatpush2.bf16.msra.mxu0 0
    %132 = vmatprep.subr.bf16.mxu0 0
    %133 = vmatpush2.bf16.msra.mxu0 0
    %134 = vmatprep.subr.bf16.mxu0 0
    %135 = vmatpush2.bf16.msra.mxu0 0
    %136 = vmatprep.subr.bf16.mxu0 0
    %137 = vmatpush2.bf16.msra.mxu0 0
    %138 = vmatprep.subr.bf16.mxu0 0
    %139 = vmatpush2.bf16.msra.mxu0 0
    %140 = vmatprep.subr.bf16.mxu0 0
    %141 = vmatpush2.bf16.msra.mxu0 0
    %142 = vmatprep.subr.bf16.mxu0 0
    %143 = vmatpush2.bf16.msra.mxu0 0
    %144 = vmatprep.subr.bf16.mxu0 0
    %145 = vmatpush2.bf16.msra.mxu0 0
    %146 = vmatprep.mubr.bf16.mxu0 0
    %147 = vmatmul.mubr.bf16.gmra.mxu0 %v112
    %v148 = vpop.f32.mrf.mxu0
    %v149 = vadd.f32 %v39, %v148
    %v150 = vpop.f32.mrf.mxu0
    %v151 = vpop.f32.mrf.mxu0
    %v152 = vpop.f32.mrf.mxu0
    %153 = vdwg.mxu0
    %v154 = vtanh.pop %v149
    %v155 = vpack.c.bf16 %v110, %v110
    %v164 = vunpack.c.l.b16 %v26
    %v165 = vunpack.c.l.b16 %v27
    %v166 = vunpack.c.l.b16 %v28
    %v167 = vunpack.c.l.b16 %v29
    %v168 = vunpack.c.l.b16 %v30
    %v169 = vunpack.c.l.b16 %v31
    %v170 = vunpack.c.l.b16 %v32
    %v171 = vunpack.c.l.b16 %v33
    %v172 = vpack.c.b16 %v165, %v164
    %v173 = vpack.c.b16 %v167, %v166
    %v174 = vpack.c.b16 %v169, %v168
    %v175 = vpack.c.b16 %v171, %v170
    %vm180 = vcmask 523264
    %v182 = vsel %vm180, %v155, 0
    %184 = vmatprep.subr.bf16.mxu0 0
    %185 = vmatpush1.bf16.msra.mxu0 0
    %186 = vmatprep.subr.bf16.mxu0 0
    %187 = vmatpush1.bf16.msra.mxu0 0
    %188 = vmatprep.subr.bf16.mxu0 0
    %189 = vmatpush1.bf16.msra.mxu0 0
    %190 = vmatprep.subr.bf16.mxu0 0
    %191 = vmatpush1.bf16.msra.mxu0 0
    %192 = vmatprep.subr.bf16.mxu0 0
    %193 = vmatpush1.bf16.msra.mxu0 %v175
    %194 = vmatprep.subr.bf16.mxu0 0
    %195 = vmatpush1.bf16.msra.mxu0 %v174
    %196 = vmatprep.subr.bf16.mxu0 0
    %197 = vmatpush1.bf16.msra.mxu0 %v173
    %198 = vmatprep.subr.bf16.mxu0 0
    %199 = vmatpush1.bf16.msra.mxu0 %v172
    %200 = vmatprep.subr.bf16.mxu0 0
    %201 = vmatpush2.bf16.msra.mxu0 0
    %202 = vmatprep.subr.bf16.mxu0 0
    %203 = vmatpush2.bf16.msra.mxu0 0
    %204 = vmatprep.subr.bf16.mxu0 0
    %205 = vmatpush2.bf16.msra.mxu0 0
    %206 = vmatprep.subr.bf16.mxu0 0
    %207 = vmatpush2.bf16.msra.mxu0 0
    %208 = vmatprep.subr.bf16.mxu0 0
    %209 = vmatpush2.bf16.msra.mxu0 0
    %210 = vmatprep.subr.bf16.mxu0 0
    %211 = vmatpush2.bf16.msra.mxu0 0
    %212 = vmatprep.subr.bf16.mxu0 0
    %213 = vmatpush2.bf16.msra.mxu0 0
    %214 = vmatprep.subr.bf16.mxu0 0
    %215 = vmatpush2.bf16.msra.mxu0 0
    %216 = vmatprep.mubr.bf16.mxu0 0
    %217 = vmatmul.mubr.bf16.gmra.mxu0 %v182
    %v218 = vpop.f32.mrf.mxu0
    %v219 = vadd.f32 %v46, %v218
    %v220 = vpop.f32.mrf.mxu0
    %v221 = vpop.f32.mrf.mxu0
    %v222 = vpop.f32.mrf.mxu0
    %223 = vdwg.mxu0
    %v224 = vpack.c.bf16 %v154, %v154
    %v226 = vsel %vm180, %v224, 0
    %228 = vmatprep.subr.bf16.mxu0 0
    %229 = vmatpush1.bf16.msra.mxu0 0
    %230 = vmatprep.subr.bf16.mxu0 0
    %231 = vmatpush1.bf16.msra.mxu0 0
    %232 = vmatprep.subr.bf16.mxu0 0
    %233 = vmatpush1.bf16.msra.mxu0 0
    %234 = vmatprep.subr.bf16.mxu0 0
    %235 = vmatpush1.bf16.msra.mxu0 0
    %236 = vmatprep.subr.bf16.mxu0 0
    %237 = vmatpush1.bf16.msra.mxu0 %v175
    %238 = vmatprep.subr.bf16.mxu0 0
    %239 = vmatpush1.bf16.msra.mxu0 %v174
    %240 = vmatprep.subr.bf16.mxu0 0
    %241 = vmatpush1.bf16.msra.mxu0 %v173
    %242 = vmatprep.subr.bf16.mxu0 0
    %243 = vmatpush1.bf16.msra.mxu0 %v172
    %244 = vmatprep.subr.bf16.mxu0 0
    %245 = vmatpush2.bf16.msra.mxu0 0
    %246 = vmatprep.subr.bf16.mxu0 0
    %247 = vmatpush2.bf16.msra.mxu0 0
    %248 = vmatprep.subr.bf16.mxu0 0
    %249 = vmatpush2.bf16.msra.mxu0 0
    %250 = vmatprep.subr.bf16.mxu0 0
    %251 = vmatpush2.bf16.msra.mxu0 0
    %252 = vmatprep.subr.bf16.mxu0 0
    %253 = vmatpush2.bf16.msra.mxu0 0
    %254 = vmatprep.subr.bf16.mxu0 0
    %255 = vmatpush2.bf16.msra.mxu0 0
    %256 = vmatprep.subr.bf16.mxu0 0
    %257 = vmatpush2.bf16.msra.mxu0 0
    %258 = vmatprep.subr.bf16.mxu0 0
    %259 = vmatpush2.bf16.msra.mxu0 0
    %260 = vmatprep.mubr.bf16.mxu0 0
    %261 = vmatmul.mubr.bf16.gmra.mxu0 %v226
    %v262 = vpop.f32.mrf.mxu0
    %v263 = vadd.f32 %v46, %v262
    %v264 = vpop.f32.mrf.mxu0
    %v265 = vpop.f32.mrf.mxu0
    %v266 = vpop.f32.mrf.mxu0
    %267 = vdwg.mxu0
    %v268 = vmul.f32 %v219, 0.5
    %v269 = vadd.f32 %v48, %v268
    %v270 = vmul.f32 %v263, 0.5
    %v271 = vadd.f32 %v49, %v270
    %v272 = vpack.c.bf16 %v269, %v269
    %v273 = vpack.c.bf16 %v271, %v271
    %v275 = vsel %vm50, %v272, 0
    %277 = vmatprep.subr.bf16.mxu0 0
    %278 = vmatpush1.bf16.msra.mxu0 0
    %279 = vmatprep.subr.bf16.mxu0 0
    %280 = vmatpush1.bf16.msra.mxu0 0
    %281 = vmatprep.subr.bf16.mxu0 0
    %282 = vmatpush1.bf16.msra.mxu0 0
    %283 = vmatprep.subr.bf16.mxu0 0
    %284 = vmatpush1.bf16.msra.mxu0 0
    %285 = vmatprep.subr.bf16.mxu0 0
    %286 = vmatpush1.bf16.msra.mxu0 0
    %287 = vmatprep.subr.bf16.mxu0 0
    %288 = vmatpush1.bf16.msra.mxu0 0
    %289 = vmatprep.subr.bf16.mxu0 0
    %290 = vmatpush1.bf16.msra.mxu0 %v64
    %291 = vmatprep.subr.bf16.mxu0 0
    %292 = vmatpush1.bf16.msra.mxu0 %v63
    %293 = vmatprep.subr.bf16.mxu0 0
    %294 = vmatpush2.bf16.msra.mxu0 0
    %295 = vmatprep.subr.bf16.mxu0 0
    %296 = vmatpush2.bf16.msra.mxu0 0
    %297 = vmatprep.subr.bf16.mxu0 0
    %298 = vmatpush2.bf16.msra.mxu0 0
    %299 = vmatprep.subr.bf16.mxu0 0
    %300 = vmatpush2.bf16.msra.mxu0 0
    %301 = vmatprep.subr.bf16.mxu0 0
    %302 = vmatpush2.bf16.msra.mxu0 0
    %303 = vmatprep.subr.bf16.mxu0 0
    %304 = vmatpush2.bf16.msra.mxu0 0
    %305 = vmatprep.subr.bf16.mxu0 0
    %306 = vmatpush2.bf16.msra.mxu0 0
    %307 = vmatprep.subr.bf16.mxu0 0
    %308 = vmatpush2.bf16.msra.mxu0 0
    %309 = vmatprep.mubr.bf16.mxu0 0
    %310 = vmatmul.mubr.bf16.gmra.mxu0 %v275
    %v311 = vpop.f32.mrf.mxu0
    %v312 = vadd.f32 %v39, %v311
    %v313 = vpop.f32.mrf.mxu0
    %v314 = vpop.f32.mrf.mxu0
    %v315 = vpop.f32.mrf.mxu0
    %316 = vdwg.mxu0
    %v317 = vtanh.pop %v312
    %v319 = vsel %vm50, %v273, 0
    %321 = vmatprep.subr.bf16.mxu0 0
    %322 = vmatpush1.bf16.msra.mxu0 0
    %323 = vmatprep.subr.bf16.mxu0 0
    %324 = vmatpush1.bf16.msra.mxu0 0
    %325 = vmatprep.subr.bf16.mxu0 0
    %326 = vmatpush1.bf16.msra.mxu0 0
    %327 = vmatprep.subr.bf16.mxu0 0
    %328 = vmatpush1.bf16.msra.mxu0 0
    %329 = vmatprep.subr.bf16.mxu0 0
    %330 = vmatpush1.bf16.msra.mxu0 0
    %331 = vmatprep.subr.bf16.mxu0 0
    %332 = vmatpush1.bf16.msra.mxu0 0
    %333 = vmatprep.subr.bf16.mxu0 0
    %334 = vmatpush1.bf16.msra.mxu0 %v64
    %335 = vmatprep.subr.bf16.mxu0 0
    %336 = vmatpush1.bf16.msra.mxu0 %v63
    %337 = vmatprep.subr.bf16.mxu0 0
    %338 = vmatpush2.bf16.msra.mxu0 0
    %339 = vmatprep.subr.bf16.mxu0 0
    %340 = vmatpush2.bf16.msra.mxu0 0
    %341 = vmatprep.subr.bf16.mxu0 0
    %342 = vmatpush2.bf16.msra.mxu0 0
    %343 = vmatprep.subr.bf16.mxu0 0
    %344 = vmatpush2.bf16.msra.mxu0 0
    %345 = vmatprep.subr.bf16.mxu0 0
    %346 = vmatpush2.bf16.msra.mxu0 0
    %347 = vmatprep.subr.bf16.mxu0 0
    %348 = vmatpush2.bf16.msra.mxu0 0
    %349 = vmatprep.subr.bf16.mxu0 0
    %350 = vmatpush2.bf16.msra.mxu0 0
    %351 = vmatprep.subr.bf16.mxu0 0
    %352 = vmatpush2.bf16.msra.mxu0 0
    %353 = vmatprep.mubr.bf16.mxu0 0
    %354 = vmatmul.mubr.bf16.gmra.mxu0 %v319
    %v355 = vpop.f32.mrf.mxu0
    %v356 = vadd.f32 %v39, %v355
    %v357 = vpop.f32.mrf.mxu0
    %v358 = vpop.f32.mrf.mxu0
    %v359 = vpop.f32.mrf.mxu0
    %360 = vdwg.mxu0
    %v361 = vtanh.pop %v356
    %v362 = vpack.c.bf16 %v317, %v317
    %v364 = vsel %vm180, %v362, 0
    %366 = vmatprep.subr.bf16.mxu0 0
    %367 = vmatpush1.bf16.msra.mxu0 0
    %368 = vmatprep.subr.bf16.mxu0 0
    %369 = vmatpush1.bf16.msra.mxu0 0
    %370 = vmatprep.subr.bf16.mxu0 0
    %371 = vmatpush1.bf16.msra.mxu0 0
    %372 = vmatprep.subr.bf16.mxu0 0
    %373 = vmatpush1.bf16.msra.mxu0 0
    %374 = vmatprep.subr.bf16.mxu0 0
    %375 = vmatpush1.bf16.msra.mxu0 %v175
    %376 = vmatprep.subr.bf16.mxu0 0
    %377 = vmatpush1.bf16.msra.mxu0 %v174
    %378 = vmatprep.subr.bf16.mxu0 0
    %379 = vmatpush1.bf16.msra.mxu0 %v173
    %380 = vmatprep.subr.bf16.mxu0 0
    %381 = vmatpush1.bf16.msra.mxu0 %v172
    %382 = vmatprep.subr.bf16.mxu0 0
    %383 = vmatpush2.bf16.msra.mxu0 0
    %384 = vmatprep.subr.bf16.mxu0 0
    %385 = vmatpush2.bf16.msra.mxu0 0
    %386 = vmatprep.subr.bf16.mxu0 0
    %387 = vmatpush2.bf16.msra.mxu0 0
    %388 = vmatprep.subr.bf16.mxu0 0
    %389 = vmatpush2.bf16.msra.mxu0 0
    %390 = vmatprep.subr.bf16.mxu0 0
    %391 = vmatpush2.bf16.msra.mxu0 0
    %392 = vmatprep.subr.bf16.mxu0 0
    %393 = vmatpush2.bf16.msra.mxu0 0
    %394 = vmatprep.subr.bf16.mxu0 0
    %395 = vmatpush2.bf16.msra.mxu0 0
    %396 = vmatprep.subr.bf16.mxu0 0
    %397 = vmatpush2.bf16.msra.mxu0 0
    %398 = vmatprep.mubr.bf16.mxu0 0
    %399 = vmatmul.mubr.bf16.gmra.mxu0 %v364
    %v400 = vpop.f32.mrf.mxu0
    %v401 = vadd.f32 %v46, %v400
    %v402 = vpop.f32.mrf.mxu0
    %v403 = vpop.f32.mrf.mxu0
    %v404 = vpop.f32.mrf.mxu0
    %405 = vdwg.mxu0
    %v406 = vpack.c.bf16 %v361, %v361
    %v408 = vsel %vm180, %v406, 0
    %410 = vmatprep.subr.bf16.mxu0 0
    %411 = vmatpush1.bf16.msra.mxu0 0
    %412 = vmatprep.subr.bf16.mxu0 0
    %413 = vmatpush1.bf16.msra.mxu0 0
    %414 = vmatprep.subr.bf16.mxu0 0
    %415 = vmatpush1.bf16.msra.mxu0 0
    %416 = vmatprep.subr.bf16.mxu0 0
    %417 = vmatpush1.bf16.msra.mxu0 0
    %418 = vmatprep.subr.bf16.mxu0 0
    %419 = vmatpush1.bf16.msra.mxu0 %v175
    %420 = vmatprep.subr.bf16.mxu0 0
    %421 = vmatpush1.bf16.msra.mxu0 %v174
    %422 = vmatprep.subr.bf16.mxu0 0
    %423 = vmatpush1.bf16.msra.mxu0 %v173
    %424 = vmatprep.subr.bf16.mxu0 0
    %425 = vmatpush1.bf16.msra.mxu0 %v172
    %426 = vmatprep.subr.bf16.mxu0 0
    %427 = vmatpush2.bf16.msra.mxu0 0
    %428 = vmatprep.subr.bf16.mxu0 0
    %429 = vmatpush2.bf16.msra.mxu0 0
    %430 = vmatprep.subr.bf16.mxu0 0
    %431 = vmatpush2.bf16.msra.mxu0 0
    %432 = vmatprep.subr.bf16.mxu0 0
    %433 = vmatpush2.bf16.msra.mxu0 0
    %434 = vmatprep.subr.bf16.mxu0 0
    %435 = vmatpush2.bf16.msra.mxu0 0
    %436 = vmatprep.subr.bf16.mxu0 0
    %437 = vmatpush2.bf16.msra.mxu0 0
    %438 = vmatprep.subr.bf16.mxu0 0
    %439 = vmatpush2.bf16.msra.mxu0 0
    %440 = vmatprep.subr.bf16.mxu0 0
    %441 = vmatpush2.bf16.msra.mxu0 0
    %442 = vmatprep.mubr.bf16.mxu0 0
    %443 = vmatmul.mubr.bf16.gmra.mxu0 %v408
    %v444 = vpop.f32.mrf.mxu0
    %v445 = vadd.f32 %v46, %v444
    %v446 = vpop.f32.mrf.mxu0
    %v447 = vpop.f32.mrf.mxu0
    %v448 = vpop.f32.mrf.mxu0
    %449 = vdwg.mxu0
    %v450 = vmul.f32 %v401, 0.5
    %v451 = vadd.f32 %v48, %v450
    %v452 = vmul.f32 %v445, 0.5
    %v453 = vadd.f32 %v49, %v452
    %v454 = vpack.c.bf16 %v451, %v451
    %v455 = vpack.c.bf16 %v453, %v453
    %v457 = vsel %vm50, %v454, 0
    %459 = vmatprep.subr.bf16.mxu0 0
    %460 = vmatpush1.bf16.msra.mxu0 0
    %461 = vmatprep.subr.bf16.mxu0 0
    %462 = vmatpush1.bf16.msra.mxu0 0
    %463 = vmatprep.subr.bf16.mxu0 0
    %464 = vmatpush1.bf16.msra.mxu0 0
    %465 = vmatprep.subr.bf16.mxu0 0
    %466 = vmatpush1.bf16.msra.mxu0 0
    %467 = vmatprep.subr.bf16.mxu0 0
    %468 = vmatpush1.bf16.msra.mxu0 0
    %469 = vmatprep.subr.bf16.mxu0 0
    %470 = vmatpush1.bf16.msra.mxu0 0
    %471 = vmatprep.subr.bf16.mxu0 0
    %472 = vmatpush1.bf16.msra.mxu0 %v64
    %473 = vmatprep.subr.bf16.mxu0 0
    %474 = vmatpush1.bf16.msra.mxu0 %v63
    %475 = vmatprep.subr.bf16.mxu0 0
    %476 = vmatpush2.bf16.msra.mxu0 0
    %477 = vmatprep.subr.bf16.mxu0 0
    %478 = vmatpush2.bf16.msra.mxu0 0
    %479 = vmatprep.subr.bf16.mxu0 0
    %480 = vmatpush2.bf16.msra.mxu0 0
    %481 = vmatprep.subr.bf16.mxu0 0
    %482 = vmatpush2.bf16.msra.mxu0 0
    %483 = vmatprep.subr.bf16.mxu0 0
    %484 = vmatpush2.bf16.msra.mxu0 0
    %485 = vmatprep.subr.bf16.mxu0 0
    %486 = vmatpush2.bf16.msra.mxu0 0
    %487 = vmatprep.subr.bf16.mxu0 0
    %488 = vmatpush2.bf16.msra.mxu0 0
    %489 = vmatprep.subr.bf16.mxu0 0
    %490 = vmatpush2.bf16.msra.mxu0 0
    %491 = vmatprep.mubr.bf16.mxu0 0
    %492 = vmatmul.mubr.bf16.gmra.mxu0 %v457
    %v493 = vpop.f32.mrf.mxu0
    %v494 = vadd.f32 %v39, %v493
    %v495 = vpop.f32.mrf.mxu0
    %v496 = vpop.f32.mrf.mxu0
    %v497 = vpop.f32.mrf.mxu0
    %498 = vdwg.mxu0
    %v499 = vtanh.pop %v494
    %v501 = vsel %vm50, %v455, 0
    %503 = vmatprep.subr.bf16.mxu0 0
    %504 = vmatpush1.bf16.msra.mxu0 0
    %505 = vmatprep.subr.bf16.mxu0 0
    %506 = vmatpush1.bf16.msra.mxu0 0
    %507 = vmatprep.subr.bf16.mxu0 0
    %508 = vmatpush1.bf16.msra.mxu0 0
    %509 = vmatprep.subr.bf16.mxu0 0
    %510 = vmatpush1.bf16.msra.mxu0 0
    %511 = vmatprep.subr.bf16.mxu0 0
    %512 = vmatpush1.bf16.msra.mxu0 0
    %513 = vmatprep.subr.bf16.mxu0 0
    %514 = vmatpush1.bf16.msra.mxu0 0
    %515 = vmatprep.subr.bf16.mxu0 0
    %516 = vmatpush1.bf16.msra.mxu0 %v64
    %517 = vmatprep.subr.bf16.mxu0 0
    %518 = vmatpush1.bf16.msra.mxu0 %v63
    %519 = vmatprep.subr.bf16.mxu0 0
    %520 = vmatpush2.bf16.msra.mxu0 0
    %521 = vmatprep.subr.bf16.mxu0 0
    %522 = vmatpush2.bf16.msra.mxu0 0
    %523 = vmatprep.subr.bf16.mxu0 0
    %524 = vmatpush2.bf16.msra.mxu0 0
    %525 = vmatprep.subr.bf16.mxu0 0
    %526 = vmatpush2.bf16.msra.mxu0 0
    %527 = vmatprep.subr.bf16.mxu0 0
    %528 = vmatpush2.bf16.msra.mxu0 0
    %529 = vmatprep.subr.bf16.mxu0 0
    %530 = vmatpush2.bf16.msra.mxu0 0
    %531 = vmatprep.subr.bf16.mxu0 0
    %532 = vmatpush2.bf16.msra.mxu0 0
    %533 = vmatprep.subr.bf16.mxu0 0
    %534 = vmatpush2.bf16.msra.mxu0 0
    %535 = vmatprep.mubr.bf16.mxu0 0
    %536 = vmatmul.mubr.bf16.gmra.mxu0 %v501
    %v537 = vpop.f32.mrf.mxu0
    %v538 = vadd.f32 %v39, %v537
    %v539 = vpop.f32.mrf.mxu0
    %v540 = vpop.f32.mrf.mxu0
    %v541 = vpop.f32.mrf.mxu0
    %542 = vdwg.mxu0
    %v543 = vtanh.pop %v538
    %v544 = vpack.c.bf16 %v499, %v499
    %v546 = vsel %vm180, %v544, 0
    %548 = vmatprep.subr.bf16.mxu0 0
    %549 = vmatpush1.bf16.msra.mxu0 0
    %550 = vmatprep.subr.bf16.mxu0 0
    %551 = vmatpush1.bf16.msra.mxu0 0
    %552 = vmatprep.subr.bf16.mxu0 0
    %553 = vmatpush1.bf16.msra.mxu0 0
    %554 = vmatprep.subr.bf16.mxu0 0
    %555 = vmatpush1.bf16.msra.mxu0 0
    %556 = vmatprep.subr.bf16.mxu0 0
    %557 = vmatpush1.bf16.msra.mxu0 %v175
    %558 = vmatprep.subr.bf16.mxu0 0
    %559 = vmatpush1.bf16.msra.mxu0 %v174
    %560 = vmatprep.subr.bf16.mxu0 0
    %561 = vmatpush1.bf16.msra.mxu0 %v173
    %562 = vmatprep.subr.bf16.mxu0 0
    %563 = vmatpush1.bf16.msra.mxu0 %v172
    %564 = vmatprep.subr.bf16.mxu0 0
    %565 = vmatpush2.bf16.msra.mxu0 0
    %566 = vmatprep.subr.bf16.mxu0 0
    %567 = vmatpush2.bf16.msra.mxu0 0
    %568 = vmatprep.subr.bf16.mxu0 0
    %569 = vmatpush2.bf16.msra.mxu0 0
    %570 = vmatprep.subr.bf16.mxu0 0
    %571 = vmatpush2.bf16.msra.mxu0 0
    %572 = vmatprep.subr.bf16.mxu0 0
    %573 = vmatpush2.bf16.msra.mxu0 0
    %574 = vmatprep.subr.bf16.mxu0 0
    %575 = vmatpush2.bf16.msra.mxu0 0
    %576 = vmatprep.subr.bf16.mxu0 0
    %577 = vmatpush2.bf16.msra.mxu0 0
    %578 = vmatprep.subr.bf16.mxu0 0
    %579 = vmatpush2.bf16.msra.mxu0 0
    %580 = vmatprep.mubr.bf16.mxu0 0
    %581 = vmatmul.mubr.bf16.gmra.mxu0 %v546
    %v582 = vpop.f32.mrf.mxu0
    %v583 = vadd.f32 %v46, %v582
    %v584 = vpop.f32.mrf.mxu0
    %v585 = vpop.f32.mrf.mxu0
    %v586 = vpop.f32.mrf.mxu0
    %587 = vdwg.mxu0
    %v588 = vpack.c.bf16 %v543, %v543
    %v590 = vsel %vm180, %v588, 0
    %592 = vmatprep.subr.bf16.mxu0 0
    %593 = vmatpush1.bf16.msra.mxu0 0
    %594 = vmatprep.subr.bf16.mxu0 0
    %595 = vmatpush1.bf16.msra.mxu0 0
    %596 = vmatprep.subr.bf16.mxu0 0
    %597 = vmatpush1.bf16.msra.mxu0 0
    %598 = vmatprep.subr.bf16.mxu0 0
    %599 = vmatpush1.bf16.msra.mxu0 0
    %600 = vmatprep.subr.bf16.mxu0 0
    %601 = vmatpush1.bf16.msra.mxu0 %v175
    %602 = vmatprep.subr.bf16.mxu0 0
    %603 = vmatpush1.bf16.msra.mxu0 %v174
    %604 = vmatprep.subr.bf16.mxu0 0
    %605 = vmatpush1.bf16.msra.mxu0 %v173
    %606 = vmatprep.subr.bf16.mxu0 0
    %607 = vmatpush1.bf16.msra.mxu0 %v172
    %608 = vmatprep.subr.bf16.mxu0 0
    %609 = vmatpush2.bf16.msra.mxu0 0
    %610 = vmatprep.subr.bf16.mxu0 0
    %611 = vmatpush2.bf16.msra.mxu0 0
    %612 = vmatprep.subr.bf16.mxu0 0
    %613 = vmatpush2.bf16.msra.mxu0 0
    %614 = vmatprep.subr.bf16.mxu0 0
    %615 = vmatpush2.bf16.msra.mxu0 0
    %616 = vmatprep.subr.bf16.mxu0 0
    %617 = vmatpush2.bf16.msra.mxu0 0
    %618 = vmatprep.subr.bf16.mxu0 0
    %619 = vmatpush2.bf16.msra.mxu0 0
    %620 = vmatprep.subr.bf16.mxu0 0
    %621 = vmatpush2.bf16.msra.mxu0 0
    %622 = vmatprep.subr.bf16.mxu0 0
    %623 = vmatpush2.bf16.msra.mxu0 0
    %624 = vmatprep.mubr.bf16.mxu0 0
    %625 = vmatmul.mubr.bf16.gmra.mxu0 %v590
    %v626 = vpop.f32.mrf.mxu0
    %v627 = vadd.f32 %v46, %v626
    %v628 = vpop.f32.mrf.mxu0
    %v629 = vpop.f32.mrf.mxu0
    %v630 = vpop.f32.mrf.mxu0
    %631 = vdwg.mxu0
    %v632 = vadd.f32 %v48, %v583
    %v633 = vadd.f32 %v49, %v627
    %v634 = vpack.c.bf16 %v632, %v632
    %v635 = vpack.c.bf16 %v633, %v633
    %v637 = vsel %vm50, %v634, 0
    %639 = vmatprep.subr.bf16.mxu0 0
    %640 = vmatpush1.bf16.msra.mxu0 0
    %641 = vmatprep.subr.bf16.mxu0 0
    %642 = vmatpush1.bf16.msra.mxu0 0
    %643 = vmatprep.subr.bf16.mxu0 0
    %644 = vmatpush1.bf16.msra.mxu0 0
    %645 = vmatprep.subr.bf16.mxu0 0
    %646 = vmatpush1.bf16.msra.mxu0 0
    %647 = vmatprep.subr.bf16.mxu0 0
    %648 = vmatpush1.bf16.msra.mxu0 0
    %649 = vmatprep.subr.bf16.mxu0 0
    %650 = vmatpush1.bf16.msra.mxu0 0
    %651 = vmatprep.subr.bf16.mxu0 0
    %652 = vmatpush1.bf16.msra.mxu0 %v64
    %653 = vmatprep.subr.bf16.mxu0 0
    %654 = vmatpush1.bf16.msra.mxu0 %v63
    %655 = vmatprep.subr.bf16.mxu0 0
    %656 = vmatpush2.bf16.msra.mxu0 0
    %657 = vmatprep.subr.bf16.mxu0 0
    %658 = vmatpush2.bf16.msra.mxu0 0
    %659 = vmatprep.subr.bf16.mxu0 0
    %660 = vmatpush2.bf16.msra.mxu0 0
    %661 = vmatprep.subr.bf16.mxu0 0
    %662 = vmatpush2.bf16.msra.mxu0 0
    %663 = vmatprep.subr.bf16.mxu0 0
    %664 = vmatpush2.bf16.msra.mxu0 0
    %665 = vmatprep.subr.bf16.mxu0 0
    %666 = vmatpush2.bf16.msra.mxu0 0
    %667 = vmatprep.subr.bf16.mxu0 0
    %668 = vmatpush2.bf16.msra.mxu0 0
    %669 = vmatprep.subr.bf16.mxu0 0
    %670 = vmatpush2.bf16.msra.mxu0 0
    %671 = vmatprep.mubr.bf16.mxu0 0
    %672 = vmatmul.mubr.bf16.gmra.mxu0 %v637
    %v673 = vpop.f32.mrf.mxu0
    %v674 = vadd.f32 %v39, %v673
    %v675 = vpop.f32.mrf.mxu0
    %v676 = vpop.f32.mrf.mxu0
    %v677 = vpop.f32.mrf.mxu0
    %678 = vdwg.mxu0
    %v679 = vtanh.pop %v674
    %v681 = vsel %vm50, %v635, 0
    %683 = vmatprep.subr.bf16.mxu0 0
    %684 = vmatpush1.bf16.msra.mxu0 0
    %685 = vmatprep.subr.bf16.mxu0 0
    %686 = vmatpush1.bf16.msra.mxu0 0
    %687 = vmatprep.subr.bf16.mxu0 0
    %688 = vmatpush1.bf16.msra.mxu0 0
    %689 = vmatprep.subr.bf16.mxu0 0
    %690 = vmatpush1.bf16.msra.mxu0 0
    %691 = vmatprep.subr.bf16.mxu0 0
    %692 = vmatpush1.bf16.msra.mxu0 0
    %693 = vmatprep.subr.bf16.mxu0 0
    %694 = vmatpush1.bf16.msra.mxu0 0
    %695 = vmatprep.subr.bf16.mxu0 0
    %696 = vmatpush1.bf16.msra.mxu0 %v64
    %697 = vmatprep.subr.bf16.mxu0 0
    %698 = vmatpush1.bf16.msra.mxu0 %v63
    %699 = vmatprep.subr.bf16.mxu0 0
    %700 = vmatpush2.bf16.msra.mxu0 0
    %701 = vmatprep.subr.bf16.mxu0 0
    %702 = vmatpush2.bf16.msra.mxu0 0
    %703 = vmatprep.subr.bf16.mxu0 0
    %704 = vmatpush2.bf16.msra.mxu0 0
    %705 = vmatprep.subr.bf16.mxu0 0
    %706 = vmatpush2.bf16.msra.mxu0 0
    %707 = vmatprep.subr.bf16.mxu0 0
    %708 = vmatpush2.bf16.msra.mxu0 0
    %709 = vmatprep.subr.bf16.mxu0 0
    %710 = vmatpush2.bf16.msra.mxu0 0
    %711 = vmatprep.subr.bf16.mxu0 0
    %712 = vmatpush2.bf16.msra.mxu0 0
    %713 = vmatprep.subr.bf16.mxu0 0
    %714 = vmatpush2.bf16.msra.mxu0 0
    %715 = vmatprep.mubr.bf16.mxu0 0
    %716 = vmatmul.mubr.bf16.gmra.mxu0 %v681
    %v717 = vpop.f32.mrf.mxu0
    %v718 = vadd.f32 %v39, %v717
    %v719 = vpop.f32.mrf.mxu0
    %v720 = vpop.f32.mrf.mxu0
    %v721 = vpop.f32.mrf.mxu0
    %722 = vdwg.mxu0
    %v723 = vtanh.pop %v718
    %v724 = vpack.c.bf16 %v679, %v679
    %v726 = vsel %vm180, %v724, 0
    %728 = vmatprep.subr.bf16.mxu0 0
    %729 = vmatpush1.bf16.msra.mxu0 0
    %730 = vmatprep.subr.bf16.mxu0 0
    %731 = vmatpush1.bf16.msra.mxu0 0
    %732 = vmatprep.subr.bf16.mxu0 0
    %733 = vmatpush1.bf16.msra.mxu0 0
    %734 = vmatprep.subr.bf16.mxu0 0
    %735 = vmatpush1.bf16.msra.mxu0 0
    %736 = vmatprep.subr.bf16.mxu0 0
    %737 = vmatpush1.bf16.msra.mxu0 %v175
    %738 = vmatprep.subr.bf16.mxu0 0
    %739 = vmatpush1.bf16.msra.mxu0 %v174
    %740 = vmatprep.subr.bf16.mxu0 0
    %741 = vmatpush1.bf16.msra.mxu0 %v173
    %742 = vmatprep.subr.bf16.mxu0 0
    %743 = vmatpush1.bf16.msra.mxu0 %v172
    %744 = vmatprep.subr.bf16.mxu0 0
    %745 = vmatpush2.bf16.msra.mxu0 0
    %746 = vmatprep.subr.bf16.mxu0 0
    %747 = vmatpush2.bf16.msra.mxu0 0
    %748 = vmatprep.subr.bf16.mxu0 0
    %749 = vmatpush2.bf16.msra.mxu0 0
    %750 = vmatprep.subr.bf16.mxu0 0
    %751 = vmatpush2.bf16.msra.mxu0 0
    %752 = vmatprep.subr.bf16.mxu0 0
    %753 = vmatpush2.bf16.msra.mxu0 0
    %754 = vmatprep.subr.bf16.mxu0 0
    %755 = vmatpush2.bf16.msra.mxu0 0
    %756 = vmatprep.subr.bf16.mxu0 0
    %757 = vmatpush2.bf16.msra.mxu0 0
    %758 = vmatprep.subr.bf16.mxu0 0
    %759 = vmatpush2.bf16.msra.mxu0 0
    %760 = vmatprep.mubr.bf16.mxu0 0
    %761 = vmatmul.mubr.bf16.gmra.mxu0 %v726
    %v762 = vpop.f32.mrf.mxu0
    %v763 = vadd.f32 %v46, %v762
    %v764 = vpop.f32.mrf.mxu0
    %v765 = vpop.f32.mrf.mxu0
    %v766 = vpop.f32.mrf.mxu0
    %767 = vdwg.mxu0
    %v768 = vpack.c.bf16 %v723, %v723
    %v770 = vsel %vm180, %v768, 0
    %772 = vmatprep.subr.bf16.mxu0 0
    %773 = vmatpush1.bf16.msra.mxu0 0
    %774 = vmatprep.subr.bf16.mxu0 0
    %775 = vmatpush1.bf16.msra.mxu0 0
    %776 = vmatprep.subr.bf16.mxu0 0
    %777 = vmatpush1.bf16.msra.mxu0 0
    %778 = vmatprep.subr.bf16.mxu0 0
    %779 = vmatpush1.bf16.msra.mxu0 0
    %780 = vmatprep.subr.bf16.mxu0 0
    %781 = vmatpush1.bf16.msra.mxu0 %v175
    %782 = vmatprep.subr.bf16.mxu0 0
    %783 = vmatpush1.bf16.msra.mxu0 %v174
    %784 = vmatprep.subr.bf16.mxu0 0
    %785 = vmatpush1.bf16.msra.mxu0 %v173
    %786 = vmatprep.subr.bf16.mxu0 0
    %787 = vmatpush1.bf16.msra.mxu0 %v172
    %788 = vmatprep.subr.bf16.mxu0 0
    %789 = vmatpush2.bf16.msra.mxu0 0
    %790 = vmatprep.subr.bf16.mxu0 0
    %791 = vmatpush2.bf16.msra.mxu0 0
    %792 = vmatprep.subr.bf16.mxu0 0
    %793 = vmatpush2.bf16.msra.mxu0 0
    %794 = vmatprep.subr.bf16.mxu0 0
    %795 = vmatpush2.bf16.msra.mxu0 0
    %796 = vmatprep.subr.bf16.mxu0 0
    %797 = vmatpush2.bf16.msra.mxu0 0
    %798 = vmatprep.subr.bf16.mxu0 0
    %799 = vmatpush2.bf16.msra.mxu0 0
    %800 = vmatprep.subr.bf16.mxu0 0
    %801 = vmatpush2.bf16.msra.mxu0 0
    %802 = vmatprep.subr.bf16.mxu0 0
    %803 = vmatpush2.bf16.msra.mxu0 0
    %804 = vmatprep.mubr.bf16.mxu0 0
    %805 = vmatmul.mubr.bf16.gmra.mxu0 %v770
    %v806 = vpop.f32.mrf.mxu0
    %v807 = vadd.f32 %v46, %v806
    %v808 = vpop.f32.mrf.mxu0
    %v809 = vpop.f32.mrf.mxu0
    %v810 = vpop.f32.mrf.mxu0
    %811 = vdwg.mxu0
    %v812 = vadd.f32 %v401, %v583
    %v813 = vmul.f32 %v812, 2.0
    %v814 = vadd.f32 %v219, %v813
    %v815 = vadd.f32 %v814, %v763
    %v816 = vmul.f32 %v815, 0.16666667
    %v817 = vadd.f32 %v48, %v816
    %v818 = vadd.f32 %v445, %v627
    %v819 = vmul.f32 %v818, 2.0
    %v820 = vadd.f32 %v263, %v819
    %v821 = vadd.f32 %v820, %v807
    %v822 = vmul.f32 %v821, 0.16666667
    %v823 = vadd.f32 %v49, %v822
    %s824 = scalar_lea.vmem [#allocation2], 16
    %825 = vst.msk [vmem:[%s824] sm:$0xff] %vm50, %v817
    %826 = vst.msk [vmem:[%s824 + $0x8] sm:$0xff] %vm50, %v823
    %v827 = vpack.c.bf16 %v817, %v817
    %v828 = vpack.c.bf16 %v823, %v823
    %v830 = vsel %vm50, %v827, 0
    %832 = vmatprep.subr.bf16.mxu0 0
    %833 = vmatpush1.bf16.msra.mxu0 0
    %834 = vmatprep.subr.bf16.mxu0 0
    %835 = vmatpush1.bf16.msra.mxu0 0
    %836 = vmatprep.subr.bf16.mxu0 0
    %837 = vmatpush1.bf16.msra.mxu0 0
    %838 = vmatprep.subr.bf16.mxu0 0
    %839 = vmatpush1.bf16.msra.mxu0 0
    %840 = vmatprep.subr.bf16.mxu0 0
    %841 = vmatpush1.bf16.msra.mxu0 0
    %842 = vmatprep.subr.bf16.mxu0 0
    %843 = vmatpush1.bf16.msra.mxu0 0
    %844 = vmatprep.subr.bf16.mxu0 0
    %845 = vmatpush1.bf16.msra.mxu0 %v64
    %846 = vmatprep.subr.bf16.mxu0 0
    %847 = vmatpush1.bf16.msra.mxu0 %v63
    %848 = vmatprep.subr.bf16.mxu0 0
    %849 = vmatpush2.bf16.msra.mxu0 0
    %850 = vmatprep.subr.bf16.mxu0 0
    %851 = vmatpush2.bf16.msra.mxu0 0
    %852 = vmatprep.subr.bf16.mxu0 0
    %853 = vmatpush2.bf16.msra.mxu0 0
    %854 = vmatprep.subr.bf16.mxu0 0
    %855 = vmatpush2.bf16.msra.mxu0 0
    %856 = vmatprep.subr.bf16.mxu0 0
    %857 = vmatpush2.bf16.msra.mxu0 0
    %858 = vmatprep.subr.bf16.mxu0 0
    %859 = vmatpush2.bf16.msra.mxu0 0
    %860 = vmatprep.subr.bf16.mxu0 0
    %861 = vmatpush2.bf16.msra.mxu0 0
    %862 = vmatprep.subr.bf16.mxu0 0
    %863 = vmatpush2.bf16.msra.mxu0 0
    %864 = vmatprep.mubr.bf16.mxu0 0
    %865 = vmatmul.mubr.bf16.gmra.mxu0 %v830
    %v866 = vpop.f32.mrf.mxu0
    %v867 = vadd.f32 %v39, %v866
    %v868 = vpop.f32.mrf.mxu0
    %v869 = vpop.f32.mrf.mxu0
    %v870 = vpop.f32.mrf.mxu0
    %871 = vdwg.mxu0
    %v872 = vtanh.pop %v867
    %v874 = vsel %vm50, %v828, 0
    %876 = vmatprep.subr.bf16.mxu0 0
    %877 = vmatpush1.bf16.msra.mxu0 0
    %878 = vmatprep.subr.bf16.mxu0 0
    %879 = vmatpush1.bf16.msra.mxu0 0
    %880 = vmatprep.subr.bf16.mxu0 0
    %881 = vmatpush1.bf16.msra.mxu0 0
    %882 = vmatprep.subr.bf16.mxu0 0
    %883 = vmatpush1.bf16.msra.mxu0 0
    %884 = vmatprep.subr.bf16.mxu0 0
    %885 = vmatpush1.bf16.msra.mxu0 0
    %886 = vmatprep.subr.bf16.mxu0 0
    %887 = vmatpush1.bf16.msra.mxu0 0
    %888 = vmatprep.subr.bf16.mxu0 0
    %889 = vmatpush1.bf16.msra.mxu0 %v64
    %890 = vmatprep.subr.bf16.mxu0 0
    %891 = vmatpush1.bf16.msra.mxu0 %v63
    %892 = vmatprep.subr.bf16.mxu0 0
    %893 = vmatpush2.bf16.msra.mxu0 0
    %894 = vmatprep.subr.bf16.mxu0 0
    %895 = vmatpush2.bf16.msra.mxu0 0
    %896 = vmatprep.subr.bf16.mxu0 0
    %897 = vmatpush2.bf16.msra.mxu0 0
    %898 = vmatprep.subr.bf16.mxu0 0
    %899 = vmatpush2.bf16.msra.mxu0 0
    %900 = vmatprep.subr.bf16.mxu0 0
    %901 = vmatpush2.bf16.msra.mxu0 0
    %902 = vmatprep.subr.bf16.mxu0 0
    %903 = vmatpush2.bf16.msra.mxu0 0
    %904 = vmatprep.subr.bf16.mxu0 0
    %905 = vmatpush2.bf16.msra.mxu0 0
    %906 = vmatprep.subr.bf16.mxu0 0
    %907 = vmatpush2.bf16.msra.mxu0 0
    %908 = vmatprep.mubr.bf16.mxu0 0
    %909 = vmatmul.mubr.bf16.gmra.mxu0 %v874
    %v910 = vpop.f32.mrf.mxu0
    %v911 = vadd.f32 %v39, %v910
    %v912 = vpop.f32.mrf.mxu0
    %v913 = vpop.f32.mrf.mxu0
    %v914 = vpop.f32.mrf.mxu0
    %915 = vdwg.mxu0
    %v916 = vtanh.pop %v911
    %v917 = vpack.c.bf16 %v872, %v872
    %v919 = vsel %vm180, %v917, 0
    %921 = vmatprep.subr.bf16.mxu0 0
    %922 = vmatpush1.bf16.msra.mxu0 0
    %923 = vmatprep.subr.bf16.mxu0 0
    %924 = vmatpush1.bf16.msra.mxu0 0
    %925 = vmatprep.subr.bf16.mxu0 0
    %926 = vmatpush1.bf16.msra.mxu0 0
    %927 = vmatprep.subr.bf16.mxu0 0
    %928 = vmatpush1.bf16.msra.mxu0 0
    %929 = vmatprep.subr.bf16.mxu0 0
    %930 = vmatpush1.bf16.msra.mxu0 %v175
    %931 = vmatprep.subr.bf16.mxu0 0
    %932 = vmatpush1.bf16.msra.mxu0 %v174
    %933 = vmatprep.subr.bf16.mxu0 0
    %934 = vmatpush1.bf16.msra.mxu0 %v173
    %935 = vmatprep.subr.bf16.mxu0 0
    %936 = vmatpush1.bf16.msra.mxu0 %v172
    %937 = vmatprep.subr.bf16.mxu0 0
    %938 = vmatpush2.bf16.msra.mxu0 0
    %939 = vmatprep.subr.bf16.mxu0 0
    %940 = vmatpush2.bf16.msra.mxu0 0
    %941 = vmatprep.subr.bf16.mxu0 0
    %942 = vmatpush2.bf16.msra.mxu0 0
    %943 = vmatprep.subr.bf16.mxu0 0
    %944 = vmatpush2.bf16.msra.mxu0 0
    %945 = vmatprep.subr.bf16.mxu0 0
    %946 = vmatpush2.bf16.msra.mxu0 0
    %947 = vmatprep.subr.bf16.mxu0 0
    %948 = vmatpush2.bf16.msra.mxu0 0
    %949 = vmatprep.subr.bf16.mxu0 0
    %950 = vmatpush2.bf16.msra.mxu0 0
    %951 = vmatprep.subr.bf16.mxu0 0
    %952 = vmatpush2.bf16.msra.mxu0 0
    %953 = vmatprep.mubr.bf16.mxu0 0
    %954 = vmatmul.mubr.bf16.gmra.mxu0 %v919
    %v955 = vpop.f32.mrf.mxu0
    %v956 = vadd.f32 %v46, %v955
    %v957 = vpop.f32.mrf.mxu0
    %v958 = vpop.f32.mrf.mxu0
    %v959 = vpop.f32.mrf.mxu0
    %960 = vdwg.mxu0
    %v961 = vpack.c.bf16 %v916, %v916
    %v963 = vsel %vm180, %v961, 0
    %965 = vmatprep.subr.bf16.mxu0 0
    %966 = vmatpush1.bf16.msra.mxu0 0
    %967 = vmatprep.subr.bf16.mxu0 0
    %968 = vmatpush1.bf16.msra.mxu0 0
    %969 = vmatprep.subr.bf16.mxu0 0
    %970 = vmatpush1.bf16.msra.mxu0 0
    %971 = vmatprep.subr.bf16.mxu0 0
    %972 = vmatpush1.bf16.msra.mxu0 0
    %973 = vmatprep.subr.bf16.mxu0 0
    %974 = vmatpush1.bf16.msra.mxu0 %v175
    %975 = vmatprep.subr.bf16.mxu0 0
    %976 = vmatpush1.bf16.msra.mxu0 %v174
    %977 = vmatprep.subr.bf16.mxu0 0
    %978 = vmatpush1.bf16.msra.mxu0 %v173
    %979 = vmatprep.subr.bf16.mxu0 0
    %980 = vmatpush1.bf16.msra.mxu0 %v172
    %981 = vmatprep.subr.bf16.mxu0 0
    %982 = vmatpush2.bf16.msra.mxu0 0
    %983 = vmatprep.subr.bf16.mxu0 0
    %984 = vmatpush2.bf16.msra.mxu0 0
    %985 = vmatprep.subr.bf16.mxu0 0
    %986 = vmatpush2.bf16.msra.mxu0 0
    %987 = vmatprep.subr.bf16.mxu0 0
    %988 = vmatpush2.bf16.msra.mxu0 0
    %989 = vmatprep.subr.bf16.mxu0 0
    %990 = vmatpush2.bf16.msra.mxu0 0
    %991 = vmatprep.subr.bf16.mxu0 0
    %992 = vmatpush2.bf16.msra.mxu0 0
    %993 = vmatprep.subr.bf16.mxu0 0
    %994 = vmatpush2.bf16.msra.mxu0 0
    %995 = vmatprep.subr.bf16.mxu0 0
    %996 = vmatpush2.bf16.msra.mxu0 0
    %997 = vmatprep.mubr.bf16.mxu0 0
    %998 = vmatmul.mubr.bf16.gmra.mxu0 %v963
    %v999 = vpop.f32.mrf.mxu0
    %v1000 = vadd.f32 %v46, %v999
    %v1001 = vpop.f32.mrf.mxu0
    %v1002 = vpop.f32.mrf.mxu0
    %v1003 = vpop.f32.mrf.mxu0
    %1004 = vdwg.mxu0
    %v1005 = vmul.f32 %v956, 0.5
    %v1006 = vadd.f32 %v817, %v1005
    %v1007 = vmul.f32 %v1000, 0.5
    %v1008 = vadd.f32 %v823, %v1007
    %v1009 = vpack.c.bf16 %v1006, %v1006
    %v1010 = vpack.c.bf16 %v1008, %v1008
    %v1012 = vsel %vm50, %v1009, 0
    %1014 = vmatprep.subr.bf16.mxu0 0
    %1015 = vmatpush1.bf16.msra.mxu0 0
    %1016 = vmatprep.subr.bf16.mxu0 0
    %1017 = vmatpush1.bf16.msra.mxu0 0
    %1018 = vmatprep.subr.bf16.mxu0 0
    %1019 = vmatpush1.bf16.msra.mxu0 0
    %1020 = vmatprep.subr.bf16.mxu0 0
    %1021 = vmatpush1.bf16.msra.mxu0 0
    %1022 = vmatprep.subr.bf16.mxu0 0
    %1023 = vmatpush1.bf16.msra.mxu0 0
    %1024 = vmatprep.subr.bf16.mxu0 0
    %1025 = vmatpush1.bf16.msra.mxu0 0
    %1026 = vmatprep.subr.bf16.mxu0 0
    %1027 = vmatpush1.bf16.msra.mxu0 %v64
    %1028 = vmatprep.subr.bf16.mxu0 0
    %1029 = vmatpush1.bf16.msra.mxu0 %v63
    %1030 = vmatprep.subr.bf16.mxu0 0
    %1031 = vmatpush2.bf16.msra.mxu0 0
    %1032 = vmatprep.subr.bf16.mxu0 0
    %1033 = vmatpush2.bf16.msra.mxu0 0
    %1034 = vmatprep.subr.bf16.mxu0 0
    %1035 = vmatpush2.bf16.msra.mxu0 0
    %1036 = vmatprep.subr.bf16.mxu0 0
    %1037 = vmatpush2.bf16.msra.mxu0 0
    %1038 = vmatprep.subr.bf16.mxu0 0
    %1039 = vmatpush2.bf16.msra.mxu0 0
    %1040 = vmatprep.subr.bf16.mxu0 0
    %1041 = vmatpush2.bf16.msra.mxu0 0
    %1042 = vmatprep.subr.bf16.mxu0 0
    %1043 = vmatpush2.bf16.msra.mxu0 0
    %1044 = vmatprep.subr.bf16.mxu0 0
    %1045 = vmatpush2.bf16.msra.mxu0 0
    %1046 = vmatprep.mubr.bf16.mxu0 0
    %1047 = vmatmul.mubr.bf16.gmra.mxu0 %v1012
    %v1048 = vpop.f32.mrf.mxu0
    %v1049 = vadd.f32 %v39, %v1048
    %v1050 = vpop.f32.mrf.mxu0
    %v1051 = vpop.f32.mrf.mxu0
    %v1052 = vpop.f32.mrf.mxu0
    %1053 = vdwg.mxu0
    %v1054 = vtanh.pop %v1049
    %v1056 = vsel %vm50, %v1010, 0
    %1058 = vmatprep.subr.bf16.mxu0 0
    %1059 = vmatpush1.bf16.msra.mxu0 0
    %1060 = vmatprep.subr.bf16.mxu0 0
    %1061 = vmatpush1.bf16.msra.mxu0 0
    %1062 = vmatprep.subr.bf16.mxu0 0
    %1063 = vmatpush1.bf16.msra.mxu0 0
    %1064 = vmatprep.subr.bf16.mxu0 0
    %1065 = vmatpush1.bf16.msra.mxu0 0
    %1066 = vmatprep.subr.bf16.mxu0 0
    %1067 = vmatpush1.bf16.msra.mxu0 0
    %1068 = vmatprep.subr.bf16.mxu0 0
    %1069 = vmatpush1.bf16.msra.mxu0 0
    %1070 = vmatprep.subr.bf16.mxu0 0
    %1071 = vmatpush1.bf16.msra.mxu0 %v64
    %1072 = vmatprep.subr.bf16.mxu0 0
    %1073 = vmatpush1.bf16.msra.mxu0 %v63
    %1074 = vmatprep.subr.bf16.mxu0 0
    %1075 = vmatpush2.bf16.msra.mxu0 0
    %1076 = vmatprep.subr.bf16.mxu0 0
    %1077 = vmatpush2.bf16.msra.mxu0 0
    %1078 = vmatprep.subr.bf16.mxu0 0
    %1079 = vmatpush2.bf16.msra.mxu0 0
    %1080 = vmatprep.subr.bf16.mxu0 0
    %1081 = vmatpush2.bf16.msra.mxu0 0
    %1082 = vmatprep.subr.bf16.mxu0 0
    %1083 = vmatpush2.bf16.msra.mxu0 0
    %1084 = vmatprep.subr.bf16.mxu0 0
    %1085 = vmatpush2.bf16.msra.mxu0 0
    %1086 = vmatprep.subr.bf16.mxu0 0
    %1087 = vmatpush2.bf16.msra.mxu0 0
    %1088 = vmatprep.subr.bf16.mxu0 0
    %1089 = vmatpush2.bf16.msra.mxu0 0
    %1090 = vmatprep.mubr.bf16.mxu0 0
    %1091 = vmatmul.mubr.bf16.gmra.mxu0 %v1056
    %v1092 = vpop.f32.mrf.mxu0
    %v1093 = vadd.f32 %v39, %v1092
    %v1094 = vpop.f32.mrf.mxu0
    %v1095 = vpop.f32.mrf.mxu0
    %v1096 = vpop.f32.mrf.mxu0
    %1097 = vdwg.mxu0
    %v1098 = vtanh.pop %v1093
    %v1099 = vpack.c.bf16 %v1054, %v1054
    %v1101 = vsel %vm180, %v1099, 0
    %1103 = vmatprep.subr.bf16.mxu0 0
    %1104 = vmatpush1.bf16.msra.mxu0 0
    %1105 = vmatprep.subr.bf16.mxu0 0
    %1106 = vmatpush1.bf16.msra.mxu0 0
    %1107 = vmatprep.subr.bf16.mxu0 0
    %1108 = vmatpush1.bf16.msra.mxu0 0
    %1109 = vmatprep.subr.bf16.mxu0 0
    %1110 = vmatpush1.bf16.msra.mxu0 0
    %1111 = vmatprep.subr.bf16.mxu0 0
    %1112 = vmatpush1.bf16.msra.mxu0 %v175
    %1113 = vmatprep.subr.bf16.mxu0 0
    %1114 = vmatpush1.bf16.msra.mxu0 %v174
    %1115 = vmatprep.subr.bf16.mxu0 0
    %1116 = vmatpush1.bf16.msra.mxu0 %v173
    %1117 = vmatprep.subr.bf16.mxu0 0
    %1118 = vmatpush1.bf16.msra.mxu0 %v172
    %1119 = vmatprep.subr.bf16.mxu0 0
    %1120 = vmatpush2.bf16.msra.mxu0 0
    %1121 = vmatprep.subr.bf16.mxu0 0
    %1122 = vmatpush2.bf16.msra.mxu0 0
    %1123 = vmatprep.subr.bf16.mxu0 0
    %1124 = vmatpush2.bf16.msra.mxu0 0
    %1125 = vmatprep.subr.bf16.mxu0 0
    %1126 = vmatpush2.bf16.msra.mxu0 0
    %1127 = vmatprep.subr.bf16.mxu0 0
    %1128 = vmatpush2.bf16.msra.mxu0 0
    %1129 = vmatprep.subr.bf16.mxu0 0
    %1130 = vmatpush2.bf16.msra.mxu0 0
    %1131 = vmatprep.subr.bf16.mxu0 0
    %1132 = vmatpush2.bf16.msra.mxu0 0
    %1133 = vmatprep.subr.bf16.mxu0 0
    %1134 = vmatpush2.bf16.msra.mxu0 0
    %1135 = vmatprep.mubr.bf16.mxu0 0
    %1136 = vmatmul.mubr.bf16.gmra.mxu0 %v1101
    %v1137 = vpop.f32.mrf.mxu0
    %v1138 = vadd.f32 %v46, %v1137
    %v1139 = vpop.f32.mrf.mxu0
    %v1140 = vpop.f32.mrf.mxu0
    %v1141 = vpop.f32.mrf.mxu0
    %1142 = vdwg.mxu0
    %v1143 = vpack.c.bf16 %v1098, %v1098
    %v1145 = vsel %vm180, %v1143, 0
    %1147 = vmatprep.subr.bf16.mxu0 0
    %1148 = vmatpush1.bf16.msra.mxu0 0
    %1149 = vmatprep.subr.bf16.mxu0 0
    %1150 = vmatpush1.bf16.msra.mxu0 0
    %1151 = vmatprep.subr.bf16.mxu0 0
    %1152 = vmatpush1.bf16.msra.mxu0 0
    %1153 = vmatprep.subr.bf16.mxu0 0
    %1154 = vmatpush1.bf16.msra.mxu0 0
    %1155 = vmatprep.subr.bf16.mxu0 0
    %1156 = vmatpush1.bf16.msra.mxu0 %v175
    %1157 = vmatprep.subr.bf16.mxu0 0
    %1158 = vmatpush1.bf16.msra.mxu0 %v174
    %1159 = vmatprep.subr.bf16.mxu0 0
    %1160 = vmatpush1.bf16.msra.mxu0 %v173
    %1161 = vmatprep.subr.bf16.mxu0 0
    %1162 = vmatpush1.bf16.msra.mxu0 %v172
    %1163 = vmatprep.subr.bf16.mxu0 0
    %1164 = vmatpush2.bf16.msra.mxu0 0
    %1165 = vmatprep.subr.bf16.mxu0 0
    %1166 = vmatpush2.bf16.msra.mxu0 0
    %1167 = vmatprep.subr.bf16.mxu0 0
    %1168 = vmatpush2.bf16.msra.mxu0 0
    %1169 = vmatprep.subr.bf16.mxu0 0
    %1170 = vmatpush2.bf16.msra.mxu0 0
    %1171 = vmatprep.subr.bf16.mxu0 0
    %1172 = vmatpush2.bf16.msra.mxu0 0
    %1173 = vmatprep.subr.bf16.mxu0 0
    %1174 = vmatpush2.bf16.msra.mxu0 0
    %1175 = vmatprep.subr.bf16.mxu0 0
    %1176 = vmatpush2.bf16.msra.mxu0 0
    %1177 = vmatprep.subr.bf16.mxu0 0
    %1178 = vmatpush2.bf16.msra.mxu0 0
    %1179 = vmatprep.mubr.bf16.mxu0 0
    %1180 = vmatmul.mubr.bf16.gmra.mxu0 %v1145
    %v1181 = vpop.f32.mrf.mxu0
    %v1182 = vadd.f32 %v46, %v1181
    %v1183 = vpop.f32.mrf.mxu0
    %v1184 = vpop.f32.mrf.mxu0
    %v1185 = vpop.f32.mrf.mxu0
    %1186 = vdwg.mxu0
    %v1187 = vmul.f32 %v1138, 0.5
    %v1188 = vadd.f32 %v817, %v1187
    %v1189 = vmul.f32 %v1182, 0.5
    %v1190 = vadd.f32 %v823, %v1189
    %v1191 = vpack.c.bf16 %v1188, %v1188
    %v1192 = vpack.c.bf16 %v1190, %v1190
    %v1194 = vsel %vm50, %v1191, 0
    %1196 = vmatprep.subr.bf16.mxu0 0
    %1197 = vmatpush1.bf16.msra.mxu0 0
    %1198 = vmatprep.subr.bf16.mxu0 0
    %1199 = vmatpush1.bf16.msra.mxu0 0
    %1200 = vmatprep.subr.bf16.mxu0 0
    %1201 = vmatpush1.bf16.msra.mxu0 0
    %1202 = vmatprep.subr.bf16.mxu0 0
    %1203 = vmatpush1.bf16.msra.mxu0 0
    %1204 = vmatprep.subr.bf16.mxu0 0
    %1205 = vmatpush1.bf16.msra.mxu0 0
    %1206 = vmatprep.subr.bf16.mxu0 0
    %1207 = vmatpush1.bf16.msra.mxu0 0
    %1208 = vmatprep.subr.bf16.mxu0 0
    %1209 = vmatpush1.bf16.msra.mxu0 %v64
    %1210 = vmatprep.subr.bf16.mxu0 0
    %1211 = vmatpush1.bf16.msra.mxu0 %v63
    %1212 = vmatprep.subr.bf16.mxu0 0
    %1213 = vmatpush2.bf16.msra.mxu0 0
    %1214 = vmatprep.subr.bf16.mxu0 0
    %1215 = vmatpush2.bf16.msra.mxu0 0
    %1216 = vmatprep.subr.bf16.mxu0 0
    %1217 = vmatpush2.bf16.msra.mxu0 0
    %1218 = vmatprep.subr.bf16.mxu0 0
    %1219 = vmatpush2.bf16.msra.mxu0 0
    %1220 = vmatprep.subr.bf16.mxu0 0
    %1221 = vmatpush2.bf16.msra.mxu0 0
    %1222 = vmatprep.subr.bf16.mxu0 0
    %1223 = vmatpush2.bf16.msra.mxu0 0
    %1224 = vmatprep.subr.bf16.mxu0 0
    %1225 = vmatpush2.bf16.msra.mxu0 0
    %1226 = vmatprep.subr.bf16.mxu0 0
    %1227 = vmatpush2.bf16.msra.mxu0 0
    %1228 = vmatprep.mubr.bf16.mxu0 0
    %1229 = vmatmul.mubr.bf16.gmra.mxu0 %v1194
    %v1230 = vpop.f32.mrf.mxu0
    %v1231 = vadd.f32 %v39, %v1230
    %v1232 = vpop.f32.mrf.mxu0
    %v1233 = vpop.f32.mrf.mxu0
    %v1234 = vpop.f32.mrf.mxu0
    %1235 = vdwg.mxu0
    %v1236 = vtanh.pop %v1231
    %v1238 = vsel %vm50, %v1192, 0
    %1240 = vmatprep.subr.bf16.mxu0 0
    %1241 = vmatpush1.bf16.msra.mxu0 0
    %1242 = vmatprep.subr.bf16.mxu0 0
    %1243 = vmatpush1.bf16.msra.mxu0 0
    %1244 = vmatprep.subr.bf16.mxu0 0
    %1245 = vmatpush1.bf16.msra.mxu0 0
    %1246 = vmatprep.subr.bf16.mxu0 0
    %1247 = vmatpush1.bf16.msra.mxu0 0
    %1248 = vmatprep.subr.bf16.mxu0 0
    %1249 = vmatpush1.bf16.msra.mxu0 0
    %1250 = vmatprep.subr.bf16.mxu0 0
    %1251 = vmatpush1.bf16.msra.mxu0 0
    %1252 = vmatprep.subr.bf16.mxu0 0
    %1253 = vmatpush1.bf16.msra.mxu0 %v64
    %1254 = vmatprep.subr.bf16.mxu0 0
    %1255 = vmatpush1.bf16.msra.mxu0 %v63
    %1256 = vmatprep.subr.bf16.mxu0 0
    %1257 = vmatpush2.bf16.msra.mxu0 0
    %1258 = vmatprep.subr.bf16.mxu0 0
    %1259 = vmatpush2.bf16.msra.mxu0 0
    %1260 = vmatprep.subr.bf16.mxu0 0
    %1261 = vmatpush2.bf16.msra.mxu0 0
    %1262 = vmatprep.subr.bf16.mxu0 0
    %1263 = vmatpush2.bf16.msra.mxu0 0
    %1264 = vmatprep.subr.bf16.mxu0 0
    %1265 = vmatpush2.bf16.msra.mxu0 0
    %1266 = vmatprep.subr.bf16.mxu0 0
    %1267 = vmatpush2.bf16.msra.mxu0 0
    %1268 = vmatprep.subr.bf16.mxu0 0
    %1269 = vmatpush2.bf16.msra.mxu0 0
    %1270 = vmatprep.subr.bf16.mxu0 0
    %1271 = vmatpush2.bf16.msra.mxu0 0
    %1272 = vmatprep.mubr.bf16.mxu0 0
    %1273 = vmatmul.mubr.bf16.gmra.mxu0 %v1238
    %v1274 = vpop.f32.mrf.mxu0
    %v1275 = vadd.f32 %v39, %v1274
    %v1276 = vpop.f32.mrf.mxu0
    %v1277 = vpop.f32.mrf.mxu0
    %v1278 = vpop.f32.mrf.mxu0
    %1279 = vdwg.mxu0
    %v1280 = vtanh.pop %v1275
    %v1281 = vpack.c.bf16 %v1236, %v1236
    %v1283 = vsel %vm180, %v1281, 0
    %1285 = vmatprep.subr.bf16.mxu0 0
    %1286 = vmatpush1.bf16.msra.mxu0 0
    %1287 = vmatprep.subr.bf16.mxu0 0
    %1288 = vmatpush1.bf16.msra.mxu0 0
    %1289 = vmatprep.subr.bf16.mxu0 0
    %1290 = vmatpush1.bf16.msra.mxu0 0
    %1291 = vmatprep.subr.bf16.mxu0 0
    %1292 = vmatpush1.bf16.msra.mxu0 0
    %1293 = vmatprep.subr.bf16.mxu0 0
    %1294 = vmatpush1.bf16.msra.mxu0 %v175
    %1295 = vmatprep.subr.bf16.mxu0 0
    %1296 = vmatpush1.bf16.msra.mxu0 %v174
    %1297 = vmatprep.subr.bf16.mxu0 0
    %1298 = vmatpush1.bf16.msra.mxu0 %v173
    %1299 = vmatprep.subr.bf16.mxu0 0
    %1300 = vmatpush1.bf16.msra.mxu0 %v172
    %1301 = vmatprep.subr.bf16.mxu0 0
    %1302 = vmatpush2.bf16.msra.mxu0 0
    %1303 = vmatprep.subr.bf16.mxu0 0
    %1304 = vmatpush2.bf16.msra.mxu0 0
    %1305 = vmatprep.subr.bf16.mxu0 0
    %1306 = vmatpush2.bf16.msra.mxu0 0
    %1307 = vmatprep.subr.bf16.mxu0 0
    %1308 = vmatpush2.bf16.msra.mxu0 0
    %1309 = vmatprep.subr.bf16.mxu0 0
    %1310 = vmatpush2.bf16.msra.mxu0 0
    %1311 = vmatprep.subr.bf16.mxu0 0
    %1312 = vmatpush2.bf16.msra.mxu0 0
    %1313 = vmatprep.subr.bf16.mxu0 0
    %1314 = vmatpush2.bf16.msra.mxu0 0
    %1315 = vmatprep.subr.bf16.mxu0 0
    %1316 = vmatpush2.bf16.msra.mxu0 0
    %1317 = vmatprep.mubr.bf16.mxu0 0
    %1318 = vmatmul.mubr.bf16.gmra.mxu0 %v1283
    %v1319 = vpop.f32.mrf.mxu0
    %v1320 = vadd.f32 %v46, %v1319
    %v1321 = vpop.f32.mrf.mxu0
    %v1322 = vpop.f32.mrf.mxu0
    %v1323 = vpop.f32.mrf.mxu0
    %1324 = vdwg.mxu0
    %v1325 = vpack.c.bf16 %v1280, %v1280
    %v1327 = vsel %vm180, %v1325, 0
    %1329 = vmatprep.subr.bf16.mxu0 0
    %1330 = vmatpush1.bf16.msra.mxu0 0
    %1331 = vmatprep.subr.bf16.mxu0 0
    %1332 = vmatpush1.bf16.msra.mxu0 0
    %1333 = vmatprep.subr.bf16.mxu0 0
    %1334 = vmatpush1.bf16.msra.mxu0 0
    %1335 = vmatprep.subr.bf16.mxu0 0
    %1336 = vmatpush1.bf16.msra.mxu0 0
    %1337 = vmatprep.subr.bf16.mxu0 0
    %1338 = vmatpush1.bf16.msra.mxu0 %v175
    %1339 = vmatprep.subr.bf16.mxu0 0
    %1340 = vmatpush1.bf16.msra.mxu0 %v174
    %1341 = vmatprep.subr.bf16.mxu0 0
    %1342 = vmatpush1.bf16.msra.mxu0 %v173
    %1343 = vmatprep.subr.bf16.mxu0 0
    %1344 = vmatpush1.bf16.msra.mxu0 %v172
    %1345 = vmatprep.subr.bf16.mxu0 0
    %1346 = vmatpush2.bf16.msra.mxu0 0
    %1347 = vmatprep.subr.bf16.mxu0 0
    %1348 = vmatpush2.bf16.msra.mxu0 0
    %1349 = vmatprep.subr.bf16.mxu0 0
    %1350 = vmatpush2.bf16.msra.mxu0 0
    %1351 = vmatprep.subr.bf16.mxu0 0
    %1352 = vmatpush2.bf16.msra.mxu0 0
    %1353 = vmatprep.subr.bf16.mxu0 0
    %1354 = vmatpush2.bf16.msra.mxu0 0
    %1355 = vmatprep.subr.bf16.mxu0 0
    %1356 = vmatpush2.bf16.msra.mxu0 0
    %1357 = vmatprep.subr.bf16.mxu0 0
    %1358 = vmatpush2.bf16.msra.mxu0 0
    %1359 = vmatprep.subr.bf16.mxu0 0
    %1360 = vmatpush2.bf16.msra.mxu0 0
    %1361 = vmatprep.mubr.bf16.mxu0 0
    %1362 = vmatmul.mubr.bf16.gmra.mxu0 %v1327
    %v1363 = vpop.f32.mrf.mxu0
    %v1364 = vadd.f32 %v46, %v1363
    %v1365 = vpop.f32.mrf.mxu0
    %v1366 = vpop.f32.mrf.mxu0
    %v1367 = vpop.f32.mrf.mxu0
    %1368 = vdwg.mxu0
    %v1369 = vadd.f32 %v817, %v1320
    %v1370 = vadd.f32 %v823, %v1364
    %v1371 = vpack.c.bf16 %v1369, %v1369
    %v1372 = vpack.c.bf16 %v1370, %v1370
    %v1374 = vsel %vm50, %v1371, 0
    %1376 = vmatprep.subr.bf16.mxu0 0
    %1377 = vmatpush1.bf16.msra.mxu0 0
    %1378 = vmatprep.subr.bf16.mxu0 0
    %1379 = vmatpush1.bf16.msra.mxu0 0
    %1380 = vmatprep.subr.bf16.mxu0 0
    %1381 = vmatpush1.bf16.msra.mxu0 0
    %1382 = vmatprep.subr.bf16.mxu0 0
    %1383 = vmatpush1.bf16.msra.mxu0 0
    %1384 = vmatprep.subr.bf16.mxu0 0
    %1385 = vmatpush1.bf16.msra.mxu0 0
    %1386 = vmatprep.subr.bf16.mxu0 0
    %1387 = vmatpush1.bf16.msra.mxu0 0
    %1388 = vmatprep.subr.bf16.mxu0 0
    %1389 = vmatpush1.bf16.msra.mxu0 %v64
    %1390 = vmatprep.subr.bf16.mxu0 0
    %1391 = vmatpush1.bf16.msra.mxu0 %v63
    %1392 = vmatprep.subr.bf16.mxu0 0
    %1393 = vmatpush2.bf16.msra.mxu0 0
    %1394 = vmatprep.subr.bf16.mxu0 0
    %1395 = vmatpush2.bf16.msra.mxu0 0
    %1396 = vmatprep.subr.bf16.mxu0 0
    %1397 = vmatpush2.bf16.msra.mxu0 0
    %1398 = vmatprep.subr.bf16.mxu0 0
    %1399 = vmatpush2.bf16.msra.mxu0 0
    %1400 = vmatprep.subr.bf16.mxu0 0
    %1401 = vmatpush2.bf16.msra.mxu0 0
    %1402 = vmatprep.subr.bf16.mxu0 0
    %1403 = vmatpush2.bf16.msra.mxu0 0
    %1404 = vmatprep.subr.bf16.mxu0 0
    %1405 = vmatpush2.bf16.msra.mxu0 0
    %1406 = vmatprep.subr.bf16.mxu0 0
    %1407 = vmatpush2.bf16.msra.mxu0 0
    %1408 = vmatprep.mubr.bf16.mxu0 0
    %1409 = vmatmul.mubr.bf16.gmra.mxu0 %v1374
    %v1410 = vpop.f32.mrf.mxu0
    %v1411 = vadd.f32 %v39, %v1410
    %v1412 = vpop.f32.mrf.mxu0
    %v1413 = vpop.f32.mrf.mxu0
    %v1414 = vpop.f32.mrf.mxu0
    %1415 = vdwg.mxu0
    %v1416 = vtanh.pop %v1411
    %v1418 = vsel %vm50, %v1372, 0
    %1420 = vmatprep.subr.bf16.mxu0 0
    %1421 = vmatpush1.bf16.msra.mxu0 0
    %1422 = vmatprep.subr.bf16.mxu0 0
    %1423 = vmatpush1.bf16.msra.mxu0 0
    %1424 = vmatprep.subr.bf16.mxu0 0
    %1425 = vmatpush1.bf16.msra.mxu0 0
    %1426 = vmatprep.subr.bf16.mxu0 0
    %1427 = vmatpush1.bf16.msra.mxu0 0
    %1428 = vmatprep.subr.bf16.mxu0 0
    %1429 = vmatpush1.bf16.msra.mxu0 0
    %1430 = vmatprep.subr.bf16.mxu0 0
    %1431 = vmatpush1.bf16.msra.mxu0 0
    %1432 = vmatprep.subr.bf16.mxu0 0
    %1433 = vmatpush1.bf16.msra.mxu0 %v64
    %1434 = vmatprep.subr.bf16.mxu0 0
    %1435 = vmatpush1.bf16.msra.mxu0 %v63
    %1436 = vmatprep.subr.bf16.mxu0 0
    %1437 = vmatpush2.bf16.msra.mxu0 0
    %1438 = vmatprep.subr.bf16.mxu0 0
    %1439 = vmatpush2.bf16.msra.mxu0 0
    %1440 = vmatprep.subr.bf16.mxu0 0
    %1441 = vmatpush2.bf16.msra.mxu0 0
    %1442 = vmatprep.subr.bf16.mxu0 0
    %1443 = vmatpush2.bf16.msra.mxu0 0
    %1444 = vmatprep.subr.bf16.mxu0 0
    %1445 = vmatpush2.bf16.msra.mxu0 0
    %1446 = vmatprep.subr.bf16.mxu0 0
    %1447 = vmatpush2.bf16.msra.mxu0 0
    %1448 = vmatprep.subr.bf16.mxu0 0
    %1449 = vmatpush2.bf16.msra.mxu0 0
    %1450 = vmatprep.subr.bf16.mxu0 0
    %1451 = vmatpush2.bf16.msra.mxu0 0
    %1452 = vmatprep.mubr.bf16.mxu0 0
    %1453 = vmatmul.mubr.bf16.gmra.mxu0 %v1418
    %v1454 = vpop.f32.mrf.mxu0
    %v1455 = vadd.f32 %v39, %v1454
    %v1456 = vpop.f32.mrf.mxu0
    %v1457 = vpop.f32.mrf.mxu0
    %v1458 = vpop.f32.mrf.mxu0
    %1459 = vdwg.mxu0
    %v1460 = vtanh.pop %v1455
    %v1461 = vpack.c.bf16 %v1416, %v1416
    %v1463 = vsel %vm180, %v1461, 0
    %1465 = vmatprep.subr.bf16.mxu0 0
    %1466 = vmatpush1.bf16.msra.mxu0 0
    %1467 = vmatprep.subr.bf16.mxu0 0
    %1468 = vmatpush1.bf16.msra.mxu0 0
    %1469 = vmatprep.subr.bf16.mxu0 0
    %1470 = vmatpush1.bf16.msra.mxu0 0
    %1471 = vmatprep.subr.bf16.mxu0 0
    %1472 = vmatpush1.bf16.msra.mxu0 0
    %1473 = vmatprep.subr.bf16.mxu0 0
    %1474 = vmatpush1.bf16.msra.mxu0 %v175
    %1475 = vmatprep.subr.bf16.mxu0 0
    %1476 = vmatpush1.bf16.msra.mxu0 %v174
    %1477 = vmatprep.subr.bf16.mxu0 0
    %1478 = vmatpush1.bf16.msra.mxu0 %v173
    %1479 = vmatprep.subr.bf16.mxu0 0
    %1480 = vmatpush1.bf16.msra.mxu0 %v172
    %1481 = vmatprep.subr.bf16.mxu0 0
    %1482 = vmatpush2.bf16.msra.mxu0 0
    %1483 = vmatprep.subr.bf16.mxu0 0
    %1484 = vmatpush2.bf16.msra.mxu0 0
    %1485 = vmatprep.subr.bf16.mxu0 0
    %1486 = vmatpush2.bf16.msra.mxu0 0
    %1487 = vmatprep.subr.bf16.mxu0 0
    %1488 = vmatpush2.bf16.msra.mxu0 0
    %1489 = vmatprep.subr.bf16.mxu0 0
    %1490 = vmatpush2.bf16.msra.mxu0 0
    %1491 = vmatprep.subr.bf16.mxu0 0
    %1492 = vmatpush2.bf16.msra.mxu0 0
    %1493 = vmatprep.subr.bf16.mxu0 0
    %1494 = vmatpush2.bf16.msra.mxu0 0
    %1495 = vmatprep.subr.bf16.mxu0 0
    %1496 = vmatpush2.bf16.msra.mxu0 0
    %1497 = vmatprep.mubr.bf16.mxu0 0
    %1498 = vmatmul.mubr.bf16.gmra.mxu0 %v1463
    %v1499 = vpop.f32.mrf.mxu0
    %v1500 = vadd.f32 %v46, %v1499
    %v1501 = vpop.f32.mrf.mxu0
    %v1502 = vpop.f32.mrf.mxu0
    %v1503 = vpop.f32.mrf.mxu0
    %1504 = vdwg.mxu0
    %v1505 = vpack.c.bf16 %v1460, %v1460
    %v1507 = vsel %vm180, %v1505, 0
    %1509 = vmatprep.subr.bf16.mxu0 0
    %1510 = vmatpush1.bf16.msra.mxu0 0
    %1511 = vmatprep.subr.bf16.mxu0 0
    %1512 = vmatpush1.bf16.msra.mxu0 0
    %1513 = vmatprep.subr.bf16.mxu0 0
    %1514 = vmatpush1.bf16.msra.mxu0 0
    %1515 = vmatprep.subr.bf16.mxu0 0
    %1516 = vmatpush1.bf16.msra.mxu0 0
    %1517 = vmatprep.subr.bf16.mxu0 0
    %1518 = vmatpush1.bf16.msra.mxu0 %v175
    %1519 = vmatprep.subr.bf16.mxu0 0
    %1520 = vmatpush1.bf16.msra.mxu0 %v174
    %1521 = vmatprep.subr.bf16.mxu0 0
    %1522 = vmatpush1.bf16.msra.mxu0 %v173
    %1523 = vmatprep.subr.bf16.mxu0 0
    %1524 = vmatpush1.bf16.msra.mxu0 %v172
    %1525 = vmatprep.subr.bf16.mxu0 0
    %1526 = vmatpush2.bf16.msra.mxu0 0
    %1527 = vmatprep.subr.bf16.mxu0 0
    %1528 = vmatpush2.bf16.msra.mxu0 0
    %1529 = vmatprep.subr.bf16.mxu0 0
    %1530 = vmatpush2.bf16.msra.mxu0 0
    %1531 = vmatprep.subr.bf16.mxu0 0
    %1532 = vmatpush2.bf16.msra.mxu0 0
    %1533 = vmatprep.subr.bf16.mxu0 0
    %1534 = vmatpush2.bf16.msra.mxu0 0
    %1535 = vmatprep.subr.bf16.mxu0 0
    %1536 = vmatpush2.bf16.msra.mxu0 0
    %1537 = vmatprep.subr.bf16.mxu0 0
    %1538 = vmatpush2.bf16.msra.mxu0 0
    %1539 = vmatprep.subr.bf16.mxu0 0
    %1540 = vmatpush2.bf16.msra.mxu0 0
    %1541 = vmatprep.mubr.bf16.mxu0 0
    %1542 = vmatmul.mubr.bf16.gmra.mxu0 %v1507
    %v1543 = vpop.f32.mrf.mxu0
    %v1544 = vadd.f32 %v46, %v1543
    %v1545 = vpop.f32.mrf.mxu0
    %v1546 = vpop.f32.mrf.mxu0
    %v1547 = vpop.f32.mrf.mxu0
    %1548 = vdwg.mxu0
    %v1549 = vadd.f32 %v1138, %v1320
    %v1550 = vmul.f32 %v1549, 2.0
    %v1551 = vadd.f32 %v956, %v1550
    %v1552 = vadd.f32 %v1551, %v1500
    %v1553 = vmul.f32 %v1552, 0.16666667
    %v1554 = vadd.f32 %v817, %v1553
    %v1555 = vadd.f32 %v1182, %v1364
    %v1556 = vmul.f32 %v1555, 2.0
    %v1557 = vadd.f32 %v1000, %v1556
    %v1558 = vadd.f32 %v1557, %v1544
    %v1559 = vmul.f32 %v1558, 0.16666667
    %v1560 = vadd.f32 %v823, %v1559
    %s1561 = scalar_lea.vmem [#allocation2], 32
    %1562 = vst.msk [vmem:[%s1561] sm:$0xff] %vm50, %v1554
    %1563 = vst.msk [vmem:[%s1561 + $0x8] sm:$0xff] %vm50, %v1560
    %v1564 = vpack.c.bf16 %v1554, %v1554
    %v1565 = vpack.c.bf16 %v1560, %v1560
    %v1567 = vsel %vm50, %v1564, 0
    %1569 = vmatprep.subr.bf16.mxu0 0
    %1570 = vmatpush1.bf16.msra.mxu0 0
    %1571 = vmatprep.subr.bf16.mxu0 0
    %1572 = vmatpush1.bf16.msra.mxu0 0
    %1573 = vmatprep.subr.bf16.mxu0 0
    %1574 = vmatpush1.bf16.msra.mxu0 0
    %1575 = vmatprep.subr.bf16.mxu0 0
    %1576 = vmatpush1.bf16.msra.mxu0 0
    %1577 = vmatprep.subr.bf16.mxu0 0
    %1578 = vmatpush1.bf16.msra.mxu0 0
    %1579 = vmatprep.subr.bf16.mxu0 0
    %1580 = vmatpush1.bf16.msra.mxu0 0
    %1581 = vmatprep.subr.bf16.mxu0 0
    %1582 = vmatpush1.bf16.msra.mxu0 %v64
    %1583 = vmatprep.subr.bf16.mxu0 0
    %1584 = vmatpush1.bf16.msra.mxu0 %v63
    %1585 = vmatprep.subr.bf16.mxu0 0
    %1586 = vmatpush2.bf16.msra.mxu0 0
    %1587 = vmatprep.subr.bf16.mxu0 0
    %1588 = vmatpush2.bf16.msra.mxu0 0
    %1589 = vmatprep.subr.bf16.mxu0 0
    %1590 = vmatpush2.bf16.msra.mxu0 0
    %1591 = vmatprep.subr.bf16.mxu0 0
    %1592 = vmatpush2.bf16.msra.mxu0 0
    %1593 = vmatprep.subr.bf16.mxu0 0
    %1594 = vmatpush2.bf16.msra.mxu0 0
    %1595 = vmatprep.subr.bf16.mxu0 0
    %1596 = vmatpush2.bf16.msra.mxu0 0
    %1597 = vmatprep.subr.bf16.mxu0 0
    %1598 = vmatpush2.bf16.msra.mxu0 0
    %1599 = vmatprep.subr.bf16.mxu0 0
    %1600 = vmatpush2.bf16.msra.mxu0 0
    %1601 = vmatprep.mubr.bf16.mxu0 0
    %1602 = vmatmul.mubr.bf16.gmra.mxu0 %v1567
    %v1603 = vpop.f32.mrf.mxu0
    %v1604 = vadd.f32 %v39, %v1603
    %v1605 = vpop.f32.mrf.mxu0
    %v1606 = vpop.f32.mrf.mxu0
    %v1607 = vpop.f32.mrf.mxu0
    %1608 = vdwg.mxu0
    %v1609 = vtanh.pop %v1604
    %v1611 = vsel %vm50, %v1565, 0
    %1613 = vmatprep.subr.bf16.mxu0 0
    %1614 = vmatpush1.bf16.msra.mxu0 0
    %1615 = vmatprep.subr.bf16.mxu0 0
    %1616 = vmatpush1.bf16.msra.mxu0 0
    %1617 = vmatprep.subr.bf16.mxu0 0
    %1618 = vmatpush1.bf16.msra.mxu0 0
    %1619 = vmatprep.subr.bf16.mxu0 0
    %1620 = vmatpush1.bf16.msra.mxu0 0
    %1621 = vmatprep.subr.bf16.mxu0 0
    %1622 = vmatpush1.bf16.msra.mxu0 0
    %1623 = vmatprep.subr.bf16.mxu0 0
    %1624 = vmatpush1.bf16.msra.mxu0 0
    %1625 = vmatprep.subr.bf16.mxu0 0
    %1626 = vmatpush1.bf16.msra.mxu0 %v64
    %1627 = vmatprep.subr.bf16.mxu0 0
    %1628 = vmatpush1.bf16.msra.mxu0 %v63
    %1629 = vmatprep.subr.bf16.mxu0 0
    %1630 = vmatpush2.bf16.msra.mxu0 0
    %1631 = vmatprep.subr.bf16.mxu0 0
    %1632 = vmatpush2.bf16.msra.mxu0 0
    %1633 = vmatprep.subr.bf16.mxu0 0
    %1634 = vmatpush2.bf16.msra.mxu0 0
    %1635 = vmatprep.subr.bf16.mxu0 0
    %1636 = vmatpush2.bf16.msra.mxu0 0
    %1637 = vmatprep.subr.bf16.mxu0 0
    %1638 = vmatpush2.bf16.msra.mxu0 0
    %1639 = vmatprep.subr.bf16.mxu0 0
    %1640 = vmatpush2.bf16.msra.mxu0 0
    %1641 = vmatprep.subr.bf16.mxu0 0
    %1642 = vmatpush2.bf16.msra.mxu0 0
    %1643 = vmatprep.subr.bf16.mxu0 0
    %1644 = vmatpush2.bf16.msra.mxu0 0
    %1645 = vmatprep.mubr.bf16.mxu0 0
    %1646 = vmatmul.mubr.bf16.gmra.mxu0 %v1611
    %v1647 = vpop.f32.mrf.mxu0
    %v1648 = vadd.f32 %v39, %v1647
    %v1649 = vpop.f32.mrf.mxu0
    %v1650 = vpop.f32.mrf.mxu0
    %v1651 = vpop.f32.mrf.mxu0
    %1652 = vdwg.mxu0
    %v1653 = vtanh.pop %v1648
    %v1654 = vpack.c.bf16 %v1609, %v1609
    %v1656 = vsel %vm180, %v1654, 0
    %1658 = vmatprep.subr.bf16.mxu0 0
    %1659 = vmatpush1.bf16.msra.mxu0 0
    %1660 = vmatprep.subr.bf16.mxu0 0
    %1661 = vmatpush1.bf16.msra.mxu0 0
    %1662 = vmatprep.subr.bf16.mxu0 0
    %1663 = vmatpush1.bf16.msra.mxu0 0
    %1664 = vmatprep.subr.bf16.mxu0 0
    %1665 = vmatpush1.bf16.msra.mxu0 0
    %1666 = vmatprep.subr.bf16.mxu0 0
    %1667 = vmatpush1.bf16.msra.mxu0 %v175
    %1668 = vmatprep.subr.bf16.mxu0 0
    %1669 = vmatpush1.bf16.msra.mxu0 %v174
    %1670 = vmatprep.subr.bf16.mxu0 0
    %1671 = vmatpush1.bf16.msra.mxu0 %v173
    %1672 = vmatprep.subr.bf16.mxu0 0
    %1673 = vmatpush1.bf16.msra.mxu0 %v172
    %1674 = vmatprep.subr.bf16.mxu0 0
    %1675 = vmatpush2.bf16.msra.mxu0 0
    %1676 = vmatprep.subr.bf16.mxu0 0
    %1677 = vmatpush2.bf16.msra.mxu0 0
    %1678 = vmatprep.subr.bf16.mxu0 0
    %1679 = vmatpush2.bf16.msra.mxu0 0
    %1680 = vmatprep.subr.bf16.mxu0 0
    %1681 = vmatpush2.bf16.msra.mxu0 0
    %1682 = vmatprep.subr.bf16.mxu0 0
    %1683 = vmatpush2.bf16.msra.mxu0 0
    %1684 = vmatprep.subr.bf16.mxu0 0
    %1685 = vmatpush2.bf16.msra.mxu0 0
    %1686 = vmatprep.subr.bf16.mxu0 0
    %1687 = vmatpush2.bf16.msra.mxu0 0
    %1688 = vmatprep.subr.bf16.mxu0 0
    %1689 = vmatpush2.bf16.msra.mxu0 0
    %1690 = vmatprep.mubr.bf16.mxu0 0
    %1691 = vmatmul.mubr.bf16.gmra.mxu0 %v1656
    %v1692 = vpop.f32.mrf.mxu0
    %v1693 = vadd.f32 %v46, %v1692
    %v1694 = vpop.f32.mrf.mxu0
    %v1695 = vpop.f32.mrf.mxu0
    %v1696 = vpop.f32.mrf.mxu0
    %1697 = vdwg.mxu0
    %v1698 = vpack.c.bf16 %v1653, %v1653
    %v1700 = vsel %vm180, %v1698, 0
    %1702 = vmatprep.subr.bf16.mxu0 0
    %1703 = vmatpush1.bf16.msra.mxu0 0
    %1704 = vmatprep.subr.bf16.mxu0 0
    %1705 = vmatpush1.bf16.msra.mxu0 0
    %1706 = vmatprep.subr.bf16.mxu0 0
    %1707 = vmatpush1.bf16.msra.mxu0 0
    %1708 = vmatprep.subr.bf16.mxu0 0
    %1709 = vmatpush1.bf16.msra.mxu0 0
    %1710 = vmatprep.subr.bf16.mxu0 0
    %1711 = vmatpush1.bf16.msra.mxu0 %v175
    %1712 = vmatprep.subr.bf16.mxu0 0
    %1713 = vmatpush1.bf16.msra.mxu0 %v174
    %1714 = vmatprep.subr.bf16.mxu0 0
    %1715 = vmatpush1.bf16.msra.mxu0 %v173
    %1716 = vmatprep.subr.bf16.mxu0 0
    %1717 = vmatpush1.bf16.msra.mxu0 %v172
    %1718 = vmatprep.subr.bf16.mxu0 0
    %1719 = vmatpush2.bf16.msra.mxu0 0
    %1720 = vmatprep.subr.bf16.mxu0 0
    %1721 = vmatpush2.bf16.msra.mxu0 0
    %1722 = vmatprep.subr.bf16.mxu0 0
    %1723 = vmatpush2.bf16.msra.mxu0 0
    %1724 = vmatprep.subr.bf16.mxu0 0
    %1725 = vmatpush2.bf16.msra.mxu0 0
    %1726 = vmatprep.subr.bf16.mxu0 0
    %1727 = vmatpush2.bf16.msra.mxu0 0
    %1728 = vmatprep.subr.bf16.mxu0 0
    %1729 = vmatpush2.bf16.msra.mxu0 0
    %1730 = vmatprep.subr.bf16.mxu0 0
    %1731 = vmatpush2.bf16.msra.mxu0 0
    %1732 = vmatprep.subr.bf16.mxu0 0
    %1733 = vmatpush2.bf16.msra.mxu0 0
    %1734 = vmatprep.mubr.bf16.mxu0 0
    %1735 = vmatmul.mubr.bf16.gmra.mxu0 %v1700
    %v1736 = vpop.f32.mrf.mxu0
    %v1737 = vadd.f32 %v46, %v1736
    %v1738 = vpop.f32.mrf.mxu0
    %v1739 = vpop.f32.mrf.mxu0
    %v1740 = vpop.f32.mrf.mxu0
    %1741 = vdwg.mxu0
    %v1742 = vmul.f32 %v1693, 0.5
    %v1743 = vadd.f32 %v1554, %v1742
    %v1744 = vmul.f32 %v1737, 0.5
    %v1745 = vadd.f32 %v1560, %v1744
    %v1746 = vpack.c.bf16 %v1743, %v1743
    %v1747 = vpack.c.bf16 %v1745, %v1745
    %v1749 = vsel %vm50, %v1746, 0
    %1751 = vmatprep.subr.bf16.mxu0 0
    %1752 = vmatpush1.bf16.msra.mxu0 0
    %1753 = vmatprep.subr.bf16.mxu0 0
    %1754 = vmatpush1.bf16.msra.mxu0 0
    %1755 = vmatprep.subr.bf16.mxu0 0
    %1756 = vmatpush1.bf16.msra.mxu0 0
    %1757 = vmatprep.subr.bf16.mxu0 0
    %1758 = vmatpush1.bf16.msra.mxu0 0
    %1759 = vmatprep.subr.bf16.mxu0 0
    %1760 = vmatpush1.bf16.msra.mxu0 0
    %1761 = vmatprep.subr.bf16.mxu0 0
    %1762 = vmatpush1.bf16.msra.mxu0 0
    %1763 = vmatprep.subr.bf16.mxu0 0
    %1764 = vmatpush1.bf16.msra.mxu0 %v64
    %1765 = vmatprep.subr.bf16.mxu0 0
    %1766 = vmatpush1.bf16.msra.mxu0 %v63
    %1767 = vmatprep.subr.bf16.mxu0 0
    %1768 = vmatpush2.bf16.msra.mxu0 0
    %1769 = vmatprep.subr.bf16.mxu0 0
    %1770 = vmatpush2.bf16.msra.mxu0 0
    %1771 = vmatprep.subr.bf16.mxu0 0
    %1772 = vmatpush2.bf16.msra.mxu0 0
    %1773 = vmatprep.subr.bf16.mxu0 0
    %1774 = vmatpush2.bf16.msra.mxu0 0
    %1775 = vmatprep.subr.bf16.mxu0 0
    %1776 = vmatpush2.bf16.msra.mxu0 0
    %1777 = vmatprep.subr.bf16.mxu0 0
    %1778 = vmatpush2.bf16.msra.mxu0 0
    %1779 = vmatprep.subr.bf16.mxu0 0
    %1780 = vmatpush2.bf16.msra.mxu0 0
    %1781 = vmatprep.subr.bf16.mxu0 0
    %1782 = vmatpush2.bf16.msra.mxu0 0
    %1783 = vmatprep.mubr.bf16.mxu0 0
    %1784 = vmatmul.mubr.bf16.gmra.mxu0 %v1749
    %v1785 = vpop.f32.mrf.mxu0
    %v1786 = vadd.f32 %v39, %v1785
    %v1787 = vpop.f32.mrf.mxu0
    %v1788 = vpop.f32.mrf.mxu0
    %v1789 = vpop.f32.mrf.mxu0
    %1790 = vdwg.mxu0
    %v1791 = vtanh.pop %v1786
    %v1793 = vsel %vm50, %v1747, 0
    %1795 = vmatprep.subr.bf16.mxu0 0
    %1796 = vmatpush1.bf16.msra.mxu0 0
    %1797 = vmatprep.subr.bf16.mxu0 0
    %1798 = vmatpush1.bf16.msra.mxu0 0
    %1799 = vmatprep.subr.bf16.mxu0 0
    %1800 = vmatpush1.bf16.msra.mxu0 0
    %1801 = vmatprep.subr.bf16.mxu0 0
    %1802 = vmatpush1.bf16.msra.mxu0 0
    %1803 = vmatprep.subr.bf16.mxu0 0
    %1804 = vmatpush1.bf16.msra.mxu0 0
    %1805 = vmatprep.subr.bf16.mxu0 0
    %1806 = vmatpush1.bf16.msra.mxu0 0
    %1807 = vmatprep.subr.bf16.mxu0 0
    %1808 = vmatpush1.bf16.msra.mxu0 %v64
    %1809 = vmatprep.subr.bf16.mxu0 0
    %1810 = vmatpush1.bf16.msra.mxu0 %v63
    %1811 = vmatprep.subr.bf16.mxu0 0
    %1812 = vmatpush2.bf16.msra.mxu0 0
    %1813 = vmatprep.subr.bf16.mxu0 0
    %1814 = vmatpush2.bf16.msra.mxu0 0
    %1815 = vmatprep.subr.bf16.mxu0 0
    %1816 = vmatpush2.bf16.msra.mxu0 0
    %1817 = vmatprep.subr.bf16.mxu0 0
    %1818 = vmatpush2.bf16.msra.mxu0 0
    %1819 = vmatprep.subr.bf16.mxu0 0
    %1820 = vmatpush2.bf16.msra.mxu0 0
    %1821 = vmatprep.subr.bf16.mxu0 0
    %1822 = vmatpush2.bf16.msra.mxu0 0
    %1823 = vmatprep.subr.bf16.mxu0 0
    %1824 = vmatpush2.bf16.msra.mxu0 0
    %1825 = vmatprep.subr.bf16.mxu0 0
    %1826 = vmatpush2.bf16.msra.mxu0 0
    %1827 = vmatprep.mubr.bf16.mxu0 0
    %1828 = vmatmul.mubr.bf16.gmra.mxu0 %v1793
    %v1829 = vpop.f32.mrf.mxu0
    %v1830 = vadd.f32 %v39, %v1829
    %v1831 = vpop.f32.mrf.mxu0
    %v1832 = vpop.f32.mrf.mxu0
    %v1833 = vpop.f32.mrf.mxu0
    %1834 = vdwg.mxu0
    %v1835 = vtanh.pop %v1830
    %v1836 = vpack.c.bf16 %v1791, %v1791
    %v1838 = vsel %vm180, %v1836, 0
    %1840 = vmatprep.subr.bf16.mxu0 0
    %1841 = vmatpush1.bf16.msra.mxu0 0
    %1842 = vmatprep.subr.bf16.mxu0 0
    %1843 = vmatpush1.bf16.msra.mxu0 0
    %1844 = vmatprep.subr.bf16.mxu0 0
    %1845 = vmatpush1.bf16.msra.mxu0 0
    %1846 = vmatprep.subr.bf16.mxu0 0
    %1847 = vmatpush1.bf16.msra.mxu0 0
    %1848 = vmatprep.subr.bf16.mxu0 0
    %1849 = vmatpush1.bf16.msra.mxu0 %v175
    %1850 = vmatprep.subr.bf16.mxu0 0
    %1851 = vmatpush1.bf16.msra.mxu0 %v174
    %1852 = vmatprep.subr.bf16.mxu0 0
    %1853 = vmatpush1.bf16.msra.mxu0 %v173
    %1854 = vmatprep.subr.bf16.mxu0 0
    %1855 = vmatpush1.bf16.msra.mxu0 %v172
    %1856 = vmatprep.subr.bf16.mxu0 0
    %1857 = vmatpush2.bf16.msra.mxu0 0
    %1858 = vmatprep.subr.bf16.mxu0 0
    %1859 = vmatpush2.bf16.msra.mxu0 0
    %1860 = vmatprep.subr.bf16.mxu0 0
    %1861 = vmatpush2.bf16.msra.mxu0 0
    %1862 = vmatprep.subr.bf16.mxu0 0
    %1863 = vmatpush2.bf16.msra.mxu0 0
    %1864 = vmatprep.subr.bf16.mxu0 0
    %1865 = vmatpush2.bf16.msra.mxu0 0
    %1866 = vmatprep.subr.bf16.mxu0 0
    %1867 = vmatpush2.bf16.msra.mxu0 0
    %1868 = vmatprep.subr.bf16.mxu0 0
    %1869 = vmatpush2.bf16.msra.mxu0 0
    %1870 = vmatprep.subr.bf16.mxu0 0
    %1871 = vmatpush2.bf16.msra.mxu0 0
    %1872 = vmatprep.mubr.bf16.mxu0 0
    %1873 = vmatmul.mubr.bf16.gmra.mxu0 %v1838
    %v1874 = vpop.f32.mrf.mxu0
    %v1875 = vadd.f32 %v46, %v1874
    %v1876 = vpop.f32.mrf.mxu0
    %v1877 = vpop.f32.mrf.mxu0
    %v1878 = vpop.f32.mrf.mxu0
    %1879 = vdwg.mxu0
    %v1880 = vpack.c.bf16 %v1835, %v1835
    %v1882 = vsel %vm180, %v1880, 0
    %1884 = vmatprep.subr.bf16.mxu0 0
    %1885 = vmatpush1.bf16.msra.mxu0 0
    %1886 = vmatprep.subr.bf16.mxu0 0
    %1887 = vmatpush1.bf16.msra.mxu0 0
    %1888 = vmatprep.subr.bf16.mxu0 0
    %1889 = vmatpush1.bf16.msra.mxu0 0
    %1890 = vmatprep.subr.bf16.mxu0 0
    %1891 = vmatpush1.bf16.msra.mxu0 0
    %1892 = vmatprep.subr.bf16.mxu0 0
    %1893 = vmatpush1.bf16.msra.mxu0 %v175
    %1894 = vmatprep.subr.bf16.mxu0 0
    %1895 = vmatpush1.bf16.msra.mxu0 %v174
    %1896 = vmatprep.subr.bf16.mxu0 0
    %1897 = vmatpush1.bf16.msra.mxu0 %v173
    %1898 = vmatprep.subr.bf16.mxu0 0
    %1899 = vmatpush1.bf16.msra.mxu0 %v172
    %1900 = vmatprep.subr.bf16.mxu0 0
    %1901 = vmatpush2.bf16.msra.mxu0 0
    %1902 = vmatprep.subr.bf16.mxu0 0
    %1903 = vmatpush2.bf16.msra.mxu0 0
    %1904 = vmatprep.subr.bf16.mxu0 0
    %1905 = vmatpush2.bf16.msra.mxu0 0
    %1906 = vmatprep.subr.bf16.mxu0 0
    %1907 = vmatpush2.bf16.msra.mxu0 0
    %1908 = vmatprep.subr.bf16.mxu0 0
    %1909 = vmatpush2.bf16.msra.mxu0 0
    %1910 = vmatprep.subr.bf16.mxu0 0
    %1911 = vmatpush2.bf16.msra.mxu0 0
    %1912 = vmatprep.subr.bf16.mxu0 0
    %1913 = vmatpush2.bf16.msra.mxu0 0
    %1914 = vmatprep.subr.bf16.mxu0 0
    %1915 = vmatpush2.bf16.msra.mxu0 0
    %1916 = vmatprep.mubr.bf16.mxu0 0
    %1917 = vmatmul.mubr.bf16.gmra.mxu0 %v1882
    %v1918 = vpop.f32.mrf.mxu0
    %v1919 = vadd.f32 %v46, %v1918
    %v1920 = vpop.f32.mrf.mxu0
    %v1921 = vpop.f32.mrf.mxu0
    %v1922 = vpop.f32.mrf.mxu0
    %1923 = vdwg.mxu0
    %v1924 = vmul.f32 %v1875, 0.5
    %v1925 = vadd.f32 %v1554, %v1924
    %v1926 = vmul.f32 %v1919, 0.5
    %v1927 = vadd.f32 %v1560, %v1926
    %v1928 = vpack.c.bf16 %v1925, %v1925
    %v1929 = vpack.c.bf16 %v1927, %v1927
    %v1931 = vsel %vm50, %v1928, 0
    %1933 = vmatprep.subr.bf16.mxu0 0
    %1934 = vmatpush1.bf16.msra.mxu0 0
    %1935 = vmatprep.subr.bf16.mxu0 0
    %1936 = vmatpush1.bf16.msra.mxu0 0
    %1937 = vmatprep.subr.bf16.mxu0 0
    %1938 = vmatpush1.bf16.msra.mxu0 0
    %1939 = vmatprep.subr.bf16.mxu0 0
    %1940 = vmatpush1.bf16.msra.mxu0 0
    %1941 = vmatprep.subr.bf16.mxu0 0
    %1942 = vmatpush1.bf16.msra.mxu0 0
    %1943 = vmatprep.subr.bf16.mxu0 0
    %1944 = vmatpush1.bf16.msra.mxu0 0
    %1945 = vmatprep.subr.bf16.mxu0 0
    %1946 = vmatpush1.bf16.msra.mxu0 %v64
    %1947 = vmatprep.subr.bf16.mxu0 0
    %1948 = vmatpush1.bf16.msra.mxu0 %v63
    %1949 = vmatprep.subr.bf16.mxu0 0
    %1950 = vmatpush2.bf16.msra.mxu0 0
    %1951 = vmatprep.subr.bf16.mxu0 0
    %1952 = vmatpush2.bf16.msra.mxu0 0
    %1953 = vmatprep.subr.bf16.mxu0 0
    %1954 = vmatpush2.bf16.msra.mxu0 0
    %1955 = vmatprep.subr.bf16.mxu0 0
    %1956 = vmatpush2.bf16.msra.mxu0 0
    %1957 = vmatprep.subr.bf16.mxu0 0
    %1958 = vmatpush2.bf16.msra.mxu0 0
    %1959 = vmatprep.subr.bf16.mxu0 0
    %1960 = vmatpush2.bf16.msra.mxu0 0
    %1961 = vmatprep.subr.bf16.mxu0 0
    %1962 = vmatpush2.bf16.msra.mxu0 0
    %1963 = vmatprep.subr.bf16.mxu0 0
    %1964 = vmatpush2.bf16.msra.mxu0 0
    %1965 = vmatprep.mubr.bf16.mxu0 0
    %1966 = vmatmul.mubr.bf16.gmra.mxu0 %v1931
    %v1967 = vpop.f32.mrf.mxu0
    %v1968 = vadd.f32 %v39, %v1967
    %v1969 = vpop.f32.mrf.mxu0
    %v1970 = vpop.f32.mrf.mxu0
    %v1971 = vpop.f32.mrf.mxu0
    %1972 = vdwg.mxu0
    %v1973 = vtanh.pop %v1968
    %v1975 = vsel %vm50, %v1929, 0
    %1977 = vmatprep.subr.bf16.mxu0 0
    %1978 = vmatpush1.bf16.msra.mxu0 0
    %1979 = vmatprep.subr.bf16.mxu0 0
    %1980 = vmatpush1.bf16.msra.mxu0 0
    %1981 = vmatprep.subr.bf16.mxu0 0
    %1982 = vmatpush1.bf16.msra.mxu0 0
    %1983 = vmatprep.subr.bf16.mxu0 0
    %1984 = vmatpush1.bf16.msra.mxu0 0
    %1985 = vmatprep.subr.bf16.mxu0 0
    %1986 = vmatpush1.bf16.msra.mxu0 0
    %1987 = vmatprep.subr.bf16.mxu0 0
    %1988 = vmatpush1.bf16.msra.mxu0 0
    %1989 = vmatprep.subr.bf16.mxu0 0
    %1990 = vmatpush1.bf16.msra.mxu0 %v64
    %1991 = vmatprep.subr.bf16.mxu0 0
    %1992 = vmatpush1.bf16.msra.mxu0 %v63
    %1993 = vmatprep.subr.bf16.mxu0 0
    %1994 = vmatpush2.bf16.msra.mxu0 0
    %1995 = vmatprep.subr.bf16.mxu0 0
    %1996 = vmatpush2.bf16.msra.mxu0 0
    %1997 = vmatprep.subr.bf16.mxu0 0
    %1998 = vmatpush2.bf16.msra.mxu0 0
    %1999 = vmatprep.subr.bf16.mxu0 0
    %2000 = vmatpush2.bf16.msra.mxu0 0
    %2001 = vmatprep.subr.bf16.mxu0 0
    %2002 = vmatpush2.bf16.msra.mxu0 0
    %2003 = vmatprep.subr.bf16.mxu0 0
    %2004 = vmatpush2.bf16.msra.mxu0 0
    %2005 = vmatprep.subr.bf16.mxu0 0
    %2006 = vmatpush2.bf16.msra.mxu0 0
    %2007 = vmatprep.subr.bf16.mxu0 0
    %2008 = vmatpush2.bf16.msra.mxu0 0
    %2009 = vmatprep.mubr.bf16.mxu0 0
    %2010 = vmatmul.mubr.bf16.gmra.mxu0 %v1975
    %v2011 = vpop.f32.mrf.mxu0
    %v2012 = vadd.f32 %v39, %v2011
    %v2013 = vpop.f32.mrf.mxu0
    %v2014 = vpop.f32.mrf.mxu0
    %v2015 = vpop.f32.mrf.mxu0
    %2016 = vdwg.mxu0
    %v2017 = vtanh.pop %v2012
    %v2018 = vpack.c.bf16 %v1973, %v1973
    %v2020 = vsel %vm180, %v2018, 0
    %2022 = vmatprep.subr.bf16.mxu0 0
    %2023 = vmatpush1.bf16.msra.mxu0 0
    %2024 = vmatprep.subr.bf16.mxu0 0
    %2025 = vmatpush1.bf16.msra.mxu0 0
    %2026 = vmatprep.subr.bf16.mxu0 0
    %2027 = vmatpush1.bf16.msra.mxu0 0
    %2028 = vmatprep.subr.bf16.mxu0 0
    %2029 = vmatpush1.bf16.msra.mxu0 0
    %2030 = vmatprep.subr.bf16.mxu0 0
    %2031 = vmatpush1.bf16.msra.mxu0 %v175
    %2032 = vmatprep.subr.bf16.mxu0 0
    %2033 = vmatpush1.bf16.msra.mxu0 %v174
    %2034 = vmatprep.subr.bf16.mxu0 0
    %2035 = vmatpush1.bf16.msra.mxu0 %v173
    %2036 = vmatprep.subr.bf16.mxu0 0
    %2037 = vmatpush1.bf16.msra.mxu0 %v172
    %2038 = vmatprep.subr.bf16.mxu0 0
    %2039 = vmatpush2.bf16.msra.mxu0 0
    %2040 = vmatprep.subr.bf16.mxu0 0
    %2041 = vmatpush2.bf16.msra.mxu0 0
    %2042 = vmatprep.subr.bf16.mxu0 0
    %2043 = vmatpush2.bf16.msra.mxu0 0
    %2044 = vmatprep.subr.bf16.mxu0 0
    %2045 = vmatpush2.bf16.msra.mxu0 0
    %2046 = vmatprep.subr.bf16.mxu0 0
    %2047 = vmatpush2.bf16.msra.mxu0 0
    %2048 = vmatprep.subr.bf16.mxu0 0
    %2049 = vmatpush2.bf16.msra.mxu0 0
    %2050 = vmatprep.subr.bf16.mxu0 0
    %2051 = vmatpush2.bf16.msra.mxu0 0
    %2052 = vmatprep.subr.bf16.mxu0 0
    %2053 = vmatpush2.bf16.msra.mxu0 0
    %2054 = vmatprep.mubr.bf16.mxu0 0
    %2055 = vmatmul.mubr.bf16.gmra.mxu0 %v2020
    %v2056 = vpop.f32.mrf.mxu0
    %v2057 = vadd.f32 %v46, %v2056
    %v2058 = vpop.f32.mrf.mxu0
    %v2059 = vpop.f32.mrf.mxu0
    %v2060 = vpop.f32.mrf.mxu0
    %2061 = vdwg.mxu0
    %v2062 = vpack.c.bf16 %v2017, %v2017
    %v2064 = vsel %vm180, %v2062, 0
    %2066 = vmatprep.subr.bf16.mxu0 0
    %2067 = vmatpush1.bf16.msra.mxu0 0
    %2068 = vmatprep.subr.bf16.mxu0 0
    %2069 = vmatpush1.bf16.msra.mxu0 0
    %2070 = vmatprep.subr.bf16.mxu0 0
    %2071 = vmatpush1.bf16.msra.mxu0 0
    %2072 = vmatprep.subr.bf16.mxu0 0
    %2073 = vmatpush1.bf16.msra.mxu0 0
    %2074 = vmatprep.subr.bf16.mxu0 0
    %2075 = vmatpush1.bf16.msra.mxu0 %v175
    %2076 = vmatprep.subr.bf16.mxu0 0
    %2077 = vmatpush1.bf16.msra.mxu0 %v174
    %2078 = vmatprep.subr.bf16.mxu0 0
    %2079 = vmatpush1.bf16.msra.mxu0 %v173
    %2080 = vmatprep.subr.bf16.mxu0 0
    %2081 = vmatpush1.bf16.msra.mxu0 %v172
    %2082 = vmatprep.subr.bf16.mxu0 0
    %2083 = vmatpush2.bf16.msra.mxu0 0
    %2084 = vmatprep.subr.bf16.mxu0 0
    %2085 = vmatpush2.bf16.msra.mxu0 0
    %2086 = vmatprep.subr.bf16.mxu0 0
    %2087 = vmatpush2.bf16.msra.mxu0 0
    %2088 = vmatprep.subr.bf16.mxu0 0
    %2089 = vmatpush2.bf16.msra.mxu0 0
    %2090 = vmatprep.subr.bf16.mxu0 0
    %2091 = vmatpush2.bf16.msra.mxu0 0
    %2092 = vmatprep.subr.bf16.mxu0 0
    %2093 = vmatpush2.bf16.msra.mxu0 0
    %2094 = vmatprep.subr.bf16.mxu0 0
    %2095 = vmatpush2.bf16.msra.mxu0 0
    %2096 = vmatprep.subr.bf16.mxu0 0
    %2097 = vmatpush2.bf16.msra.mxu0 0
    %2098 = vmatprep.mubr.bf16.mxu0 0
    %2099 = vmatmul.mubr.bf16.gmra.mxu0 %v2064
    %v2100 = vpop.f32.mrf.mxu0
    %v2101 = vadd.f32 %v46, %v2100
    %v2102 = vpop.f32.mrf.mxu0
    %v2103 = vpop.f32.mrf.mxu0
    %v2104 = vpop.f32.mrf.mxu0
    %2105 = vdwg.mxu0
    %v2106 = vadd.f32 %v1554, %v2057
    %v2107 = vadd.f32 %v1560, %v2101
    %v2108 = vpack.c.bf16 %v2106, %v2106
    %v2109 = vpack.c.bf16 %v2107, %v2107
    %v2111 = vsel %vm50, %v2108, 0
    %2113 = vmatprep.subr.bf16.mxu0 0
    %2114 = vmatpush1.bf16.msra.mxu0 0
    %2115 = vmatprep.subr.bf16.mxu0 0
    %2116 = vmatpush1.bf16.msra.mxu0 0
    %2117 = vmatprep.subr.bf16.mxu0 0
    %2118 = vmatpush1.bf16.msra.mxu0 0
    %2119 = vmatprep.subr.bf16.mxu0 0
    %2120 = vmatpush1.bf16.msra.mxu0 0
    %2121 = vmatprep.subr.bf16.mxu0 0
    %2122 = vmatpush1.bf16.msra.mxu0 0
    %2123 = vmatprep.subr.bf16.mxu0 0
    %2124 = vmatpush1.bf16.msra.mxu0 0
    %2125 = vmatprep.subr.bf16.mxu0 0
    %2126 = vmatpush1.bf16.msra.mxu0 %v64
    %2127 = vmatprep.subr.bf16.mxu0 0
    %2128 = vmatpush1.bf16.msra.mxu0 %v63
    %2129 = vmatprep.subr.bf16.mxu0 0
    %2130 = vmatpush2.bf16.msra.mxu0 0
    %2131 = vmatprep.subr.bf16.mxu0 0
    %2132 = vmatpush2.bf16.msra.mxu0 0
    %2133 = vmatprep.subr.bf16.mxu0 0
    %2134 = vmatpush2.bf16.msra.mxu0 0
    %2135 = vmatprep.subr.bf16.mxu0 0
    %2136 = vmatpush2.bf16.msra.mxu0 0
    %2137 = vmatprep.subr.bf16.mxu0 0
    %2138 = vmatpush2.bf16.msra.mxu0 0
    %2139 = vmatprep.subr.bf16.mxu0 0
    %2140 = vmatpush2.bf16.msra.mxu0 0
    %2141 = vmatprep.subr.bf16.mxu0 0
    %2142 = vmatpush2.bf16.msra.mxu0 0
    %2143 = vmatprep.subr.bf16.mxu0 0
    %2144 = vmatpush2.bf16.msra.mxu0 0
    %2145 = vmatprep.mubr.bf16.mxu0 0
    %2146 = vmatmul.mubr.bf16.gmra.mxu0 %v2111
    %v2147 = vpop.f32.mrf.mxu0
    %v2148 = vadd.f32 %v39, %v2147
    %v2149 = vpop.f32.mrf.mxu0
    %v2150 = vpop.f32.mrf.mxu0
    %v2151 = vpop.f32.mrf.mxu0
    %2152 = vdwg.mxu0
    %v2153 = vtanh.pop %v2148
    %v2155 = vsel %vm50, %v2109, 0
    %2157 = vmatprep.subr.bf16.mxu0 0
    %2158 = vmatpush1.bf16.msra.mxu0 0
    %2159 = vmatprep.subr.bf16.mxu0 0
    %2160 = vmatpush1.bf16.msra.mxu0 0
    %2161 = vmatprep.subr.bf16.mxu0 0
    %2162 = vmatpush1.bf16.msra.mxu0 0
    %2163 = vmatprep.subr.bf16.mxu0 0
    %2164 = vmatpush1.bf16.msra.mxu0 0
    %2165 = vmatprep.subr.bf16.mxu0 0
    %2166 = vmatpush1.bf16.msra.mxu0 0
    %2167 = vmatprep.subr.bf16.mxu0 0
    %2168 = vmatpush1.bf16.msra.mxu0 0
    %2169 = vmatprep.subr.bf16.mxu0 0
    %2170 = vmatpush1.bf16.msra.mxu0 %v64
    %2171 = vmatprep.subr.bf16.mxu0 0
    %2172 = vmatpush1.bf16.msra.mxu0 %v63
    %2173 = vmatprep.subr.bf16.mxu0 0
    %2174 = vmatpush2.bf16.msra.mxu0 0
    %2175 = vmatprep.subr.bf16.mxu0 0
    %2176 = vmatpush2.bf16.msra.mxu0 0
    %2177 = vmatprep.subr.bf16.mxu0 0
    %2178 = vmatpush2.bf16.msra.mxu0 0
    %2179 = vmatprep.subr.bf16.mxu0 0
    %2180 = vmatpush2.bf16.msra.mxu0 0
    %2181 = vmatprep.subr.bf16.mxu0 0
    %2182 = vmatpush2.bf16.msra.mxu0 0
    %2183 = vmatprep.subr.bf16.mxu0 0
    %2184 = vmatpush2.bf16.msra.mxu0 0
    %2185 = vmatprep.subr.bf16.mxu0 0
    %2186 = vmatpush2.bf16.msra.mxu0 0
    %2187 = vmatprep.subr.bf16.mxu0 0
    %2188 = vmatpush2.bf16.msra.mxu0 0
    %2189 = vmatprep.mubr.bf16.mxu0 0
    %2190 = vmatmul.mubr.bf16.gmra.mxu0 %v2155
    %v2191 = vpop.f32.mrf.mxu0
    %v2192 = vadd.f32 %v39, %v2191
    %v2193 = vpop.f32.mrf.mxu0
    %v2194 = vpop.f32.mrf.mxu0
    %v2195 = vpop.f32.mrf.mxu0
    %2196 = vdwg.mxu0
    %v2197 = vtanh.pop %v2192
    %v2198 = vpack.c.bf16 %v2153, %v2153
    %v2200 = vsel %vm180, %v2198, 0
    %2202 = vmatprep.subr.bf16.mxu0 0
    %2203 = vmatpush1.bf16.msra.mxu0 0
    %2204 = vmatprep.subr.bf16.mxu0 0
    %2205 = vmatpush1.bf16.msra.mxu0 0
    %2206 = vmatprep.subr.bf16.mxu0 0
    %2207 = vmatpush1.bf16.msra.mxu0 0
    %2208 = vmatprep.subr.bf16.mxu0 0
    %2209 = vmatpush1.bf16.msra.mxu0 0
    %2210 = vmatprep.subr.bf16.mxu0 0
    %2211 = vmatpush1.bf16.msra.mxu0 %v175
    %2212 = vmatprep.subr.bf16.mxu0 0
    %2213 = vmatpush1.bf16.msra.mxu0 %v174
    %2214 = vmatprep.subr.bf16.mxu0 0
    %2215 = vmatpush1.bf16.msra.mxu0 %v173
    %2216 = vmatprep.subr.bf16.mxu0 0
    %2217 = vmatpush1.bf16.msra.mxu0 %v172
    %2218 = vmatprep.subr.bf16.mxu0 0
    %2219 = vmatpush2.bf16.msra.mxu0 0
    %2220 = vmatprep.subr.bf16.mxu0 0
    %2221 = vmatpush2.bf16.msra.mxu0 0
    %2222 = vmatprep.subr.bf16.mxu0 0
    %2223 = vmatpush2.bf16.msra.mxu0 0
    %2224 = vmatprep.subr.bf16.mxu0 0
    %2225 = vmatpush2.bf16.msra.mxu0 0
    %2226 = vmatprep.subr.bf16.mxu0 0
    %2227 = vmatpush2.bf16.msra.mxu0 0
    %2228 = vmatprep.subr.bf16.mxu0 0
    %2229 = vmatpush2.bf16.msra.mxu0 0
    %2230 = vmatprep.subr.bf16.mxu0 0
    %2231 = vmatpush2.bf16.msra.mxu0 0
    %2232 = vmatprep.subr.bf16.mxu0 0
    %2233 = vmatpush2.bf16.msra.mxu0 0
    %2234 = vmatprep.mubr.bf16.mxu0 0
    %2235 = vmatmul.mubr.bf16.gmra.mxu0 %v2200
    %v2236 = vpop.f32.mrf.mxu0
    %v2237 = vadd.f32 %v46, %v2236
    %v2238 = vpop.f32.mrf.mxu0
    %v2239 = vpop.f32.mrf.mxu0
    %v2240 = vpop.f32.mrf.mxu0
    %2241 = vdwg.mxu0
    %v2242 = vpack.c.bf16 %v2197, %v2197
    %v2244 = vsel %vm180, %v2242, 0
    %2246 = vmatprep.subr.bf16.mxu0 0
    %2247 = vmatpush1.bf16.msra.mxu0 0
    %2248 = vmatprep.subr.bf16.mxu0 0
    %2249 = vmatpush1.bf16.msra.mxu0 0
    %2250 = vmatprep.subr.bf16.mxu0 0
    %2251 = vmatpush1.bf16.msra.mxu0 0
    %2252 = vmatprep.subr.bf16.mxu0 0
    %2253 = vmatpush1.bf16.msra.mxu0 0
    %2254 = vmatprep.subr.bf16.mxu0 0
    %2255 = vmatpush1.bf16.msra.mxu0 %v175
    %2256 = vmatprep.subr.bf16.mxu0 0
    %2257 = vmatpush1.bf16.msra.mxu0 %v174
    %2258 = vmatprep.subr.bf16.mxu0 0
    %2259 = vmatpush1.bf16.msra.mxu0 %v173
    %2260 = vmatprep.subr.bf16.mxu0 0
    %2261 = vmatpush1.bf16.msra.mxu0 %v172
    %2262 = vmatprep.subr.bf16.mxu0 0
    %2263 = vmatpush2.bf16.msra.mxu0 0
    %2264 = vmatprep.subr.bf16.mxu0 0
    %2265 = vmatpush2.bf16.msra.mxu0 0
    %2266 = vmatprep.subr.bf16.mxu0 0
    %2267 = vmatpush2.bf16.msra.mxu0 0
    %2268 = vmatprep.subr.bf16.mxu0 0
    %2269 = vmatpush2.bf16.msra.mxu0 0
    %2270 = vmatprep.subr.bf16.mxu0 0
    %2271 = vmatpush2.bf16.msra.mxu0 0
    %2272 = vmatprep.subr.bf16.mxu0 0
    %2273 = vmatpush2.bf16.msra.mxu0 0
    %2274 = vmatprep.subr.bf16.mxu0 0
    %2275 = vmatpush2.bf16.msra.mxu0 0
    %2276 = vmatprep.subr.bf16.mxu0 0
    %2277 = vmatpush2.bf16.msra.mxu0 0
    %2278 = vmatprep.mubr.bf16.mxu0 0
    %2279 = vmatmul.mubr.bf16.gmra.mxu0 %v2244
    %v2280 = vpop.f32.mrf.mxu0
    %v2281 = vadd.f32 %v46, %v2280
    %v2282 = vpop.f32.mrf.mxu0
    %v2283 = vpop.f32.mrf.mxu0
    %v2284 = vpop.f32.mrf.mxu0
    %2285 = vdwg.mxu0
    %v2286 = vadd.f32 %v1875, %v2057
    %v2287 = vmul.f32 %v2286, 2.0
    %v2288 = vadd.f32 %v1693, %v2287
    %v2289 = vadd.f32 %v2288, %v2237
    %v2290 = vmul.f32 %v2289, 0.16666667
    %v2291 = vadd.f32 %v1554, %v2290
    %v2292 = vadd.f32 %v1919, %v2101
    %v2293 = vmul.f32 %v2292, 2.0
    %v2294 = vadd.f32 %v1737, %v2293
    %v2295 = vadd.f32 %v2294, %v2281
    %v2296 = vmul.f32 %v2295, 0.16666667
    %v2297 = vadd.f32 %v1560, %v2296
    %s2298 = scalar_lea.vmem [#allocation2], 48
    %2299 = vst.msk [vmem:[%s2298] sm:$0xff] %vm50, %v2291
    %2300 = vst.msk [vmem:[%s2298 + $0x8] sm:$0xff] %vm50, %v2297
    %v2301 = vpack.c.bf16 %v2291, %v2291
    %v2302 = vpack.c.bf16 %v2297, %v2297
    %v2304 = vsel %vm50, %v2301, 0
    %2306 = vmatprep.subr.bf16.mxu0 0
    %2307 = vmatpush1.bf16.msra.mxu0 0
    %2308 = vmatprep.subr.bf16.mxu0 0
    %2309 = vmatpush1.bf16.msra.mxu0 0
    %2310 = vmatprep.subr.bf16.mxu0 0
    %2311 = vmatpush1.bf16.msra.mxu0 0
    %2312 = vmatprep.subr.bf16.mxu0 0
    %2313 = vmatpush1.bf16.msra.mxu0 0
    %2314 = vmatprep.subr.bf16.mxu0 0
    %2315 = vmatpush1.bf16.msra.mxu0 0
    %2316 = vmatprep.subr.bf16.mxu0 0
    %2317 = vmatpush1.bf16.msra.mxu0 0
    %2318 = vmatprep.subr.bf16.mxu0 0
    %2319 = vmatpush1.bf16.msra.mxu0 %v64
    %2320 = vmatprep.subr.bf16.mxu0 0
    %2321 = vmatpush1.bf16.msra.mxu0 %v63
    %2322 = vmatprep.subr.bf16.mxu0 0
    %2323 = vmatpush2.bf16.msra.mxu0 0
    %2324 = vmatprep.subr.bf16.mxu0 0
    %2325 = vmatpush2.bf16.msra.mxu0 0
    %2326 = vmatprep.subr.bf16.mxu0 0
    %2327 = vmatpush2.bf16.msra.mxu0 0
    %2328 = vmatprep.subr.bf16.mxu0 0
    %2329 = vmatpush2.bf16.msra.mxu0 0
    %2330 = vmatprep.subr.bf16.mxu0 0
    %2331 = vmatpush2.bf16.msra.mxu0 0
    %2332 = vmatprep.subr.bf16.mxu0 0
    %2333 = vmatpush2.bf16.msra.mxu0 0
    %2334 = vmatprep.subr.bf16.mxu0 0
    %2335 = vmatpush2.bf16.msra.mxu0 0
    %2336 = vmatprep.subr.bf16.mxu0 0
    %2337 = vmatpush2.bf16.msra.mxu0 0
    %2338 = vmatprep.mubr.bf16.mxu0 0
    %2339 = vmatmul.mubr.bf16.gmra.mxu0 %v2304
    %v2340 = vpop.f32.mrf.mxu0
    %v2341 = vadd.f32 %v39, %v2340
    %v2342 = vpop.f32.mrf.mxu0
    %v2343 = vpop.f32.mrf.mxu0
    %v2344 = vpop.f32.mrf.mxu0
    %2345 = vdwg.mxu0
    %v2346 = vtanh.pop %v2341
    %v2348 = vsel %vm50, %v2302, 0
    %2350 = vmatprep.subr.bf16.mxu0 0
    %2351 = vmatpush1.bf16.msra.mxu0 0
    %2352 = vmatprep.subr.bf16.mxu0 0
    %2353 = vmatpush1.bf16.msra.mxu0 0
    %2354 = vmatprep.subr.bf16.mxu0 0
    %2355 = vmatpush1.bf16.msra.mxu0 0
    %2356 = vmatprep.subr.bf16.mxu0 0
    %2357 = vmatpush1.bf16.msra.mxu0 0
    %2358 = vmatprep.subr.bf16.mxu0 0
    %2359 = vmatpush1.bf16.msra.mxu0 0
    %2360 = vmatprep.subr.bf16.mxu0 0
    %2361 = vmatpush1.bf16.msra.mxu0 0
    %2362 = vmatprep.subr.bf16.mxu0 0
    %2363 = vmatpush1.bf16.msra.mxu0 %v64
    %2364 = vmatprep.subr.bf16.mxu0 0
    %2365 = vmatpush1.bf16.msra.mxu0 %v63
    %2366 = vmatprep.subr.bf16.mxu0 0
    %2367 = vmatpush2.bf16.msra.mxu0 0
    %2368 = vmatprep.subr.bf16.mxu0 0
    %2369 = vmatpush2.bf16.msra.mxu0 0
    %2370 = vmatprep.subr.bf16.mxu0 0
    %2371 = vmatpush2.bf16.msra.mxu0 0
    %2372 = vmatprep.subr.bf16.mxu0 0
    %2373 = vmatpush2.bf16.msra.mxu0 0
    %2374 = vmatprep.subr.bf16.mxu0 0
    %2375 = vmatpush2.bf16.msra.mxu0 0
    %2376 = vmatprep.subr.bf16.mxu0 0
    %2377 = vmatpush2.bf16.msra.mxu0 0
    %2378 = vmatprep.subr.bf16.mxu0 0
    %2379 = vmatpush2.bf16.msra.mxu0 0
    %2380 = vmatprep.subr.bf16.mxu0 0
    %2381 = vmatpush2.bf16.msra.mxu0 0
    %2382 = vmatprep.mubr.bf16.mxu0 0
    %2383 = vmatmul.mubr.bf16.gmra.mxu0 %v2348
    %v2384 = vpop.f32.mrf.mxu0
    %v2385 = vadd.f32 %v39, %v2384
    %v2386 = vpop.f32.mrf.mxu0
    %v2387 = vpop.f32.mrf.mxu0
    %v2388 = vpop.f32.mrf.mxu0
    %2389 = vdwg.mxu0
    %v2390 = vtanh.pop %v2385
    %v2391 = vpack.c.bf16 %v2346, %v2346
    %v2393 = vsel %vm180, %v2391, 0
    %2395 = vmatprep.subr.bf16.mxu0 0
    %2396 = vmatpush1.bf16.msra.mxu0 0
    %2397 = vmatprep.subr.bf16.mxu0 0
    %2398 = vmatpush1.bf16.msra.mxu0 0
    %2399 = vmatprep.subr.bf16.mxu0 0
    %2400 = vmatpush1.bf16.msra.mxu0 0
    %2401 = vmatprep.subr.bf16.mxu0 0
    %2402 = vmatpush1.bf16.msra.mxu0 0
    %2403 = vmatprep.subr.bf16.mxu0 0
    %2404 = vmatpush1.bf16.msra.mxu0 %v175
    %2405 = vmatprep.subr.bf16.mxu0 0
    %2406 = vmatpush1.bf16.msra.mxu0 %v174
    %2407 = vmatprep.subr.bf16.mxu0 0
    %2408 = vmatpush1.bf16.msra.mxu0 %v173
    %2409 = vmatprep.subr.bf16.mxu0 0
    %2410 = vmatpush1.bf16.msra.mxu0 %v172
    %2411 = vmatprep.subr.bf16.mxu0 0
    %2412 = vmatpush2.bf16.msra.mxu0 0
    %2413 = vmatprep.subr.bf16.mxu0 0
    %2414 = vmatpush2.bf16.msra.mxu0 0
    %2415 = vmatprep.subr.bf16.mxu0 0
    %2416 = vmatpush2.bf16.msra.mxu0 0
    %2417 = vmatprep.subr.bf16.mxu0 0
    %2418 = vmatpush2.bf16.msra.mxu0 0
    %2419 = vmatprep.subr.bf16.mxu0 0
    %2420 = vmatpush2.bf16.msra.mxu0 0
    %2421 = vmatprep.subr.bf16.mxu0 0
    %2422 = vmatpush2.bf16.msra.mxu0 0
    %2423 = vmatprep.subr.bf16.mxu0 0
    %2424 = vmatpush2.bf16.msra.mxu0 0
    %2425 = vmatprep.subr.bf16.mxu0 0
    %2426 = vmatpush2.bf16.msra.mxu0 0
    %2427 = vmatprep.mubr.bf16.mxu0 0
    %2428 = vmatmul.mubr.bf16.gmra.mxu0 %v2393
    %v2429 = vpop.f32.mrf.mxu0
    %v2430 = vadd.f32 %v46, %v2429
    %v2431 = vpop.f32.mrf.mxu0
    %v2432 = vpop.f32.mrf.mxu0
    %v2433 = vpop.f32.mrf.mxu0
    %2434 = vdwg.mxu0
    %v2435 = vpack.c.bf16 %v2390, %v2390
    %v2437 = vsel %vm180, %v2435, 0
    %2439 = vmatprep.subr.bf16.mxu0 0
    %2440 = vmatpush1.bf16.msra.mxu0 0
    %2441 = vmatprep.subr.bf16.mxu0 0
    %2442 = vmatpush1.bf16.msra.mxu0 0
    %2443 = vmatprep.subr.bf16.mxu0 0
    %2444 = vmatpush1.bf16.msra.mxu0 0
    %2445 = vmatprep.subr.bf16.mxu0 0
    %2446 = vmatpush1.bf16.msra.mxu0 0
    %2447 = vmatprep.subr.bf16.mxu0 0
    %2448 = vmatpush1.bf16.msra.mxu0 %v175
    %2449 = vmatprep.subr.bf16.mxu0 0
    %2450 = vmatpush1.bf16.msra.mxu0 %v174
    %2451 = vmatprep.subr.bf16.mxu0 0
    %2452 = vmatpush1.bf16.msra.mxu0 %v173
    %2453 = vmatprep.subr.bf16.mxu0 0
    %2454 = vmatpush1.bf16.msra.mxu0 %v172
    %2455 = vmatprep.subr.bf16.mxu0 0
    %2456 = vmatpush2.bf16.msra.mxu0 0
    %2457 = vmatprep.subr.bf16.mxu0 0
    %2458 = vmatpush2.bf16.msra.mxu0 0
    %2459 = vmatprep.subr.bf16.mxu0 0
    %2460 = vmatpush2.bf16.msra.mxu0 0
    %2461 = vmatprep.subr.bf16.mxu0 0
    %2462 = vmatpush2.bf16.msra.mxu0 0
    %2463 = vmatprep.subr.bf16.mxu0 0
    %2464 = vmatpush2.bf16.msra.mxu0 0
    %2465 = vmatprep.subr.bf16.mxu0 0
    %2466 = vmatpush2.bf16.msra.mxu0 0
    %2467 = vmatprep.subr.bf16.mxu0 0
    %2468 = vmatpush2.bf16.msra.mxu0 0
    %2469 = vmatprep.subr.bf16.mxu0 0
    %2470 = vmatpush2.bf16.msra.mxu0 0
    %2471 = vmatprep.mubr.bf16.mxu0 0
    %2472 = vmatmul.mubr.bf16.gmra.mxu0 %v2437
    %v2473 = vpop.f32.mrf.mxu0
    %v2474 = vadd.f32 %v46, %v2473
    %v2475 = vpop.f32.mrf.mxu0
    %v2476 = vpop.f32.mrf.mxu0
    %v2477 = vpop.f32.mrf.mxu0
    %2478 = vdwg.mxu0
    %v2479 = vmul.f32 %v2430, 0.5
    %v2480 = vadd.f32 %v2291, %v2479
    %v2481 = vmul.f32 %v2474, 0.5
    %v2482 = vadd.f32 %v2297, %v2481
    %v2483 = vpack.c.bf16 %v2480, %v2480
    %v2484 = vpack.c.bf16 %v2482, %v2482
    %v2486 = vsel %vm50, %v2483, 0
    %2488 = vmatprep.subr.bf16.mxu0 0
    %2489 = vmatpush1.bf16.msra.mxu0 0
    %2490 = vmatprep.subr.bf16.mxu0 0
    %2491 = vmatpush1.bf16.msra.mxu0 0
    %2492 = vmatprep.subr.bf16.mxu0 0
    %2493 = vmatpush1.bf16.msra.mxu0 0
    %2494 = vmatprep.subr.bf16.mxu0 0
    %2495 = vmatpush1.bf16.msra.mxu0 0
    %2496 = vmatprep.subr.bf16.mxu0 0
    %2497 = vmatpush1.bf16.msra.mxu0 0
    %2498 = vmatprep.subr.bf16.mxu0 0
    %2499 = vmatpush1.bf16.msra.mxu0 0
    %2500 = vmatprep.subr.bf16.mxu0 0
    %2501 = vmatpush1.bf16.msra.mxu0 %v64
    %2502 = vmatprep.subr.bf16.mxu0 0
    %2503 = vmatpush1.bf16.msra.mxu0 %v63
    %2504 = vmatprep.subr.bf16.mxu0 0
    %2505 = vmatpush2.bf16.msra.mxu0 0
    %2506 = vmatprep.subr.bf16.mxu0 0
    %2507 = vmatpush2.bf16.msra.mxu0 0
    %2508 = vmatprep.subr.bf16.mxu0 0
    %2509 = vmatpush2.bf16.msra.mxu0 0
    %2510 = vmatprep.subr.bf16.mxu0 0
    %2511 = vmatpush2.bf16.msra.mxu0 0
    %2512 = vmatprep.subr.bf16.mxu0 0
    %2513 = vmatpush2.bf16.msra.mxu0 0
    %2514 = vmatprep.subr.bf16.mxu0 0
    %2515 = vmatpush2.bf16.msra.mxu0 0
    %2516 = vmatprep.subr.bf16.mxu0 0
    %2517 = vmatpush2.bf16.msra.mxu0 0
    %2518 = vmatprep.subr.bf16.mxu0 0
    %2519 = vmatpush2.bf16.msra.mxu0 0
    %2520 = vmatprep.mubr.bf16.mxu0 0
    %2521 = vmatmul.mubr.bf16.gmra.mxu0 %v2486
    %v2522 = vpop.f32.mrf.mxu0
    %v2523 = vadd.f32 %v39, %v2522
    %v2524 = vpop.f32.mrf.mxu0
    %v2525 = vpop.f32.mrf.mxu0
    %v2526 = vpop.f32.mrf.mxu0
    %2527 = vdwg.mxu0
    %v2528 = vtanh.pop %v2523
    %v2530 = vsel %vm50, %v2484, 0
    %2532 = vmatprep.subr.bf16.mxu0 0
    %2533 = vmatpush1.bf16.msra.mxu0 0
    %2534 = vmatprep.subr.bf16.mxu0 0
    %2535 = vmatpush1.bf16.msra.mxu0 0
    %2536 = vmatprep.subr.bf16.mxu0 0
    %2537 = vmatpush1.bf16.msra.mxu0 0
    %2538 = vmatprep.subr.bf16.mxu0 0
    %2539 = vmatpush1.bf16.msra.mxu0 0
    %2540 = vmatprep.subr.bf16.mxu0 0
    %2541 = vmatpush1.bf16.msra.mxu0 0
    %2542 = vmatprep.subr.bf16.mxu0 0
    %2543 = vmatpush1.bf16.msra.mxu0 0
    %2544 = vmatprep.subr.bf16.mxu0 0
    %2545 = vmatpush1.bf16.msra.mxu0 %v64
    %2546 = vmatprep.subr.bf16.mxu0 0
    %2547 = vmatpush1.bf16.msra.mxu0 %v63
    %2548 = vmatprep.subr.bf16.mxu0 0
    %2549 = vmatpush2.bf16.msra.mxu0 0
    %2550 = vmatprep.subr.bf16.mxu0 0
    %2551 = vmatpush2.bf16.msra.mxu0 0
    %2552 = vmatprep.subr.bf16.mxu0 0
    %2553 = vmatpush2.bf16.msra.mxu0 0
    %2554 = vmatprep.subr.bf16.mxu0 0
    %2555 = vmatpush2.bf16.msra.mxu0 0
    %2556 = vmatprep.subr.bf16.mxu0 0
    %2557 = vmatpush2.bf16.msra.mxu0 0
    %2558 = vmatprep.subr.bf16.mxu0 0
    %2559 = vmatpush2.bf16.msra.mxu0 0
    %2560 = vmatprep.subr.bf16.mxu0 0
    %2561 = vmatpush2.bf16.msra.mxu0 0
    %2562 = vmatprep.subr.bf16.mxu0 0
    %2563 = vmatpush2.bf16.msra.mxu0 0
    %2564 = vmatprep.mubr.bf16.mxu0 0
    %2565 = vmatmul.mubr.bf16.gmra.mxu0 %v2530
    %v2566 = vpop.f32.mrf.mxu0
    %v2567 = vadd.f32 %v39, %v2566
    %v2568 = vpop.f32.mrf.mxu0
    %v2569 = vpop.f32.mrf.mxu0
    %v2570 = vpop.f32.mrf.mxu0
    %2571 = vdwg.mxu0
    %v2572 = vtanh.pop %v2567
    %v2573 = vpack.c.bf16 %v2528, %v2528
    %v2575 = vsel %vm180, %v2573, 0
    %2577 = vmatprep.subr.bf16.mxu0 0
    %2578 = vmatpush1.bf16.msra.mxu0 0
    %2579 = vmatprep.subr.bf16.mxu0 0
    %2580 = vmatpush1.bf16.msra.mxu0 0
    %2581 = vmatprep.subr.bf16.mxu0 0
    %2582 = vmatpush1.bf16.msra.mxu0 0
    %2583 = vmatprep.subr.bf16.mxu0 0
    %2584 = vmatpush1.bf16.msra.mxu0 0
    %2585 = vmatprep.subr.bf16.mxu0 0
    %2586 = vmatpush1.bf16.msra.mxu0 %v175
    %2587 = vmatprep.subr.bf16.mxu0 0
    %2588 = vmatpush1.bf16.msra.mxu0 %v174
    %2589 = vmatprep.subr.bf16.mxu0 0
    %2590 = vmatpush1.bf16.msra.mxu0 %v173
    %2591 = vmatprep.subr.bf16.mxu0 0
    %2592 = vmatpush1.bf16.msra.mxu0 %v172
    %2593 = vmatprep.subr.bf16.mxu0 0
    %2594 = vmatpush2.bf16.msra.mxu0 0
    %2595 = vmatprep.subr.bf16.mxu0 0
    %2596 = vmatpush2.bf16.msra.mxu0 0
    %2597 = vmatprep.subr.bf16.mxu0 0
    %2598 = vmatpush2.bf16.msra.mxu0 0
    %2599 = vmatprep.subr.bf16.mxu0 0
    %2600 = vmatpush2.bf16.msra.mxu0 0
    %2601 = vmatprep.subr.bf16.mxu0 0
    %2602 = vmatpush2.bf16.msra.mxu0 0
    %2603 = vmatprep.subr.bf16.mxu0 0
    %2604 = vmatpush2.bf16.msra.mxu0 0
    %2605 = vmatprep.subr.bf16.mxu0 0
    %2606 = vmatpush2.bf16.msra.mxu0 0
    %2607 = vmatprep.subr.bf16.mxu0 0
    %2608 = vmatpush2.bf16.msra.mxu0 0
    %2609 = vmatprep.mubr.bf16.mxu0 0
    %2610 = vmatmul.mubr.bf16.gmra.mxu0 %v2575
    %v2611 = vpop.f32.mrf.mxu0
    %v2612 = vadd.f32 %v46, %v2611
    %v2613 = vpop.f32.mrf.mxu0
    %v2614 = vpop.f32.mrf.mxu0
    %v2615 = vpop.f32.mrf.mxu0
    %2616 = vdwg.mxu0
    %v2617 = vpack.c.bf16 %v2572, %v2572
    %v2619 = vsel %vm180, %v2617, 0
    %2621 = vmatprep.subr.bf16.mxu0 0
    %2622 = vmatpush1.bf16.msra.mxu0 0
    %2623 = vmatprep.subr.bf16.mxu0 0
    %2624 = vmatpush1.bf16.msra.mxu0 0
    %2625 = vmatprep.subr.bf16.mxu0 0
    %2626 = vmatpush1.bf16.msra.mxu0 0
    %2627 = vmatprep.subr.bf16.mxu0 0
    %2628 = vmatpush1.bf16.msra.mxu0 0
    %2629 = vmatprep.subr.bf16.mxu0 0
    %2630 = vmatpush1.bf16.msra.mxu0 %v175
    %2631 = vmatprep.subr.bf16.mxu0 0
    %2632 = vmatpush1.bf16.msra.mxu0 %v174
    %2633 = vmatprep.subr.bf16.mxu0 0
    %2634 = vmatpush1.bf16.msra.mxu0 %v173
    %2635 = vmatprep.subr.bf16.mxu0 0
    %2636 = vmatpush1.bf16.msra.mxu0 %v172
    %2637 = vmatprep.subr.bf16.mxu0 0
    %2638 = vmatpush2.bf16.msra.mxu0 0
    %2639 = vmatprep.subr.bf16.mxu0 0
    %2640 = vmatpush2.bf16.msra.mxu0 0
    %2641 = vmatprep.subr.bf16.mxu0 0
    %2642 = vmatpush2.bf16.msra.mxu0 0
    %2643 = vmatprep.subr.bf16.mxu0 0
    %2644 = vmatpush2.bf16.msra.mxu0 0
    %2645 = vmatprep.subr.bf16.mxu0 0
    %2646 = vmatpush2.bf16.msra.mxu0 0
    %2647 = vmatprep.subr.bf16.mxu0 0
    %2648 = vmatpush2.bf16.msra.mxu0 0
    %2649 = vmatprep.subr.bf16.mxu0 0
    %2650 = vmatpush2.bf16.msra.mxu0 0
    %2651 = vmatprep.subr.bf16.mxu0 0
    %2652 = vmatpush2.bf16.msra.mxu0 0
    %2653 = vmatprep.mubr.bf16.mxu0 0
    %2654 = vmatmul.mubr.bf16.gmra.mxu0 %v2619
    %v2655 = vpop.f32.mrf.mxu0
    %v2656 = vadd.f32 %v46, %v2655
    %v2657 = vpop.f32.mrf.mxu0
    %v2658 = vpop.f32.mrf.mxu0
    %v2659 = vpop.f32.mrf.mxu0
    %2660 = vdwg.mxu0
    %v2661 = vmul.f32 %v2612, 0.5
    %v2662 = vadd.f32 %v2291, %v2661
    %v2663 = vmul.f32 %v2656, 0.5
    %v2664 = vadd.f32 %v2297, %v2663
    %v2665 = vpack.c.bf16 %v2662, %v2662
    %v2666 = vpack.c.bf16 %v2664, %v2664
    %v2668 = vsel %vm50, %v2665, 0
    %2670 = vmatprep.subr.bf16.mxu0 0
    %2671 = vmatpush1.bf16.msra.mxu0 0
    %2672 = vmatprep.subr.bf16.mxu0 0
    %2673 = vmatpush1.bf16.msra.mxu0 0
    %2674 = vmatprep.subr.bf16.mxu0 0
    %2675 = vmatpush1.bf16.msra.mxu0 0
    %2676 = vmatprep.subr.bf16.mxu0 0
    %2677 = vmatpush1.bf16.msra.mxu0 0
    %2678 = vmatprep.subr.bf16.mxu0 0
    %2679 = vmatpush1.bf16.msra.mxu0 0
    %2680 = vmatprep.subr.bf16.mxu0 0
    %2681 = vmatpush1.bf16.msra.mxu0 0
    %2682 = vmatprep.subr.bf16.mxu0 0
    %2683 = vmatpush1.bf16.msra.mxu0 %v64
    %2684 = vmatprep.subr.bf16.mxu0 0
    %2685 = vmatpush1.bf16.msra.mxu0 %v63
    %2686 = vmatprep.subr.bf16.mxu0 0
    %2687 = vmatpush2.bf16.msra.mxu0 0
    %2688 = vmatprep.subr.bf16.mxu0 0
    %2689 = vmatpush2.bf16.msra.mxu0 0
    %2690 = vmatprep.subr.bf16.mxu0 0
    %2691 = vmatpush2.bf16.msra.mxu0 0
    %2692 = vmatprep.subr.bf16.mxu0 0
    %2693 = vmatpush2.bf16.msra.mxu0 0
    %2694 = vmatprep.subr.bf16.mxu0 0
    %2695 = vmatpush2.bf16.msra.mxu0 0
    %2696 = vmatprep.subr.bf16.mxu0 0
    %2697 = vmatpush2.bf16.msra.mxu0 0
    %2698 = vmatprep.subr.bf16.mxu0 0
    %2699 = vmatpush2.bf16.msra.mxu0 0
    %2700 = vmatprep.subr.bf16.mxu0 0
    %2701 = vmatpush2.bf16.msra.mxu0 0
    %2702 = vmatprep.mubr.bf16.mxu0 0
    %2703 = vmatmul.mubr.bf16.gmra.mxu0 %v2668
    %v2704 = vpop.f32.mrf.mxu0
    %v2705 = vadd.f32 %v39, %v2704
    %v2706 = vpop.f32.mrf.mxu0
    %v2707 = vpop.f32.mrf.mxu0
    %v2708 = vpop.f32.mrf.mxu0
    %2709 = vdwg.mxu0
    %v2710 = vtanh.pop %v2705
    %v2712 = vsel %vm50, %v2666, 0
    %2714 = vmatprep.subr.bf16.mxu0 0
    %2715 = vmatpush1.bf16.msra.mxu0 0
    %2716 = vmatprep.subr.bf16.mxu0 0
    %2717 = vmatpush1.bf16.msra.mxu0 0
    %2718 = vmatprep.subr.bf16.mxu0 0
    %2719 = vmatpush1.bf16.msra.mxu0 0
    %2720 = vmatprep.subr.bf16.mxu0 0
    %2721 = vmatpush1.bf16.msra.mxu0 0
    %2722 = vmatprep.subr.bf16.mxu0 0
    %2723 = vmatpush1.bf16.msra.mxu0 0
    %2724 = vmatprep.subr.bf16.mxu0 0
    %2725 = vmatpush1.bf16.msra.mxu0 0
    %2726 = vmatprep.subr.bf16.mxu0 0
    %2727 = vmatpush1.bf16.msra.mxu0 %v64
    %2728 = vmatprep.subr.bf16.mxu0 0
    %2729 = vmatpush1.bf16.msra.mxu0 %v63
    %2730 = vmatprep.subr.bf16.mxu0 0
    %2731 = vmatpush2.bf16.msra.mxu0 0
    %2732 = vmatprep.subr.bf16.mxu0 0
    %2733 = vmatpush2.bf16.msra.mxu0 0
    %2734 = vmatprep.subr.bf16.mxu0 0
    %2735 = vmatpush2.bf16.msra.mxu0 0
    %2736 = vmatprep.subr.bf16.mxu0 0
    %2737 = vmatpush2.bf16.msra.mxu0 0
    %2738 = vmatprep.subr.bf16.mxu0 0
    %2739 = vmatpush2.bf16.msra.mxu0 0
    %2740 = vmatprep.subr.bf16.mxu0 0
    %2741 = vmatpush2.bf16.msra.mxu0 0
    %2742 = vmatprep.subr.bf16.mxu0 0
    %2743 = vmatpush2.bf16.msra.mxu0 0
    %2744 = vmatprep.subr.bf16.mxu0 0
    %2745 = vmatpush2.bf16.msra.mxu0 0
    %2746 = vmatprep.mubr.bf16.mxu0 0
    %2747 = vmatmul.mubr.bf16.gmra.mxu0 %v2712
    %v2748 = vpop.f32.mrf.mxu0
    %v2749 = vadd.f32 %v39, %v2748
    %v2750 = vpop.f32.mrf.mxu0
    %v2751 = vpop.f32.mrf.mxu0
    %v2752 = vpop.f32.mrf.mxu0
    %2753 = vdwg.mxu0
    %v2754 = vtanh.pop %v2749
    %v2755 = vpack.c.bf16 %v2710, %v2710
    %v2757 = vsel %vm180, %v2755, 0
    %2759 = vmatprep.subr.bf16.mxu0 0
    %2760 = vmatpush1.bf16.msra.mxu0 0
    %2761 = vmatprep.subr.bf16.mxu0 0
    %2762 = vmatpush1.bf16.msra.mxu0 0
    %2763 = vmatprep.subr.bf16.mxu0 0
    %2764 = vmatpush1.bf16.msra.mxu0 0
    %2765 = vmatprep.subr.bf16.mxu0 0
    %2766 = vmatpush1.bf16.msra.mxu0 0
    %2767 = vmatprep.subr.bf16.mxu0 0
    %2768 = vmatpush1.bf16.msra.mxu0 %v175
    %2769 = vmatprep.subr.bf16.mxu0 0
    %2770 = vmatpush1.bf16.msra.mxu0 %v174
    %2771 = vmatprep.subr.bf16.mxu0 0
    %2772 = vmatpush1.bf16.msra.mxu0 %v173
    %2773 = vmatprep.subr.bf16.mxu0 0
    %2774 = vmatpush1.bf16.msra.mxu0 %v172
    %2775 = vmatprep.subr.bf16.mxu0 0
    %2776 = vmatpush2.bf16.msra.mxu0 0
    %2777 = vmatprep.subr.bf16.mxu0 0
    %2778 = vmatpush2.bf16.msra.mxu0 0
    %2779 = vmatprep.subr.bf16.mxu0 0
    %2780 = vmatpush2.bf16.msra.mxu0 0
    %2781 = vmatprep.subr.bf16.mxu0 0
    %2782 = vmatpush2.bf16.msra.mxu0 0
    %2783 = vmatprep.subr.bf16.mxu0 0
    %2784 = vmatpush2.bf16.msra.mxu0 0
    %2785 = vmatprep.subr.bf16.mxu0 0
    %2786 = vmatpush2.bf16.msra.mxu0 0
    %2787 = vmatprep.subr.bf16.mxu0 0
    %2788 = vmatpush2.bf16.msra.mxu0 0
    %2789 = vmatprep.subr.bf16.mxu0 0
    %2790 = vmatpush2.bf16.msra.mxu0 0
    %2791 = vmatprep.mubr.bf16.mxu0 0
    %2792 = vmatmul.mubr.bf16.gmra.mxu0 %v2757
    %v2793 = vpop.f32.mrf.mxu0
    %v2794 = vadd.f32 %v46, %v2793
    %v2795 = vpop.f32.mrf.mxu0
    %v2796 = vpop.f32.mrf.mxu0
    %v2797 = vpop.f32.mrf.mxu0
    %2798 = vdwg.mxu0
    %v2799 = vpack.c.bf16 %v2754, %v2754
    %v2801 = vsel %vm180, %v2799, 0
    %2803 = vmatprep.subr.bf16.mxu0 0
    %2804 = vmatpush1.bf16.msra.mxu0 0
    %2805 = vmatprep.subr.bf16.mxu0 0
    %2806 = vmatpush1.bf16.msra.mxu0 0
    %2807 = vmatprep.subr.bf16.mxu0 0
    %2808 = vmatpush1.bf16.msra.mxu0 0
    %2809 = vmatprep.subr.bf16.mxu0 0
    %2810 = vmatpush1.bf16.msra.mxu0 0
    %2811 = vmatprep.subr.bf16.mxu0 0
    %2812 = vmatpush1.bf16.msra.mxu0 %v175
    %2813 = vmatprep.subr.bf16.mxu0 0
    %2814 = vmatpush1.bf16.msra.mxu0 %v174
    %2815 = vmatprep.subr.bf16.mxu0 0
    %2816 = vmatpush1.bf16.msra.mxu0 %v173
    %2817 = vmatprep.subr.bf16.mxu0 0
    %2818 = vmatpush1.bf16.msra.mxu0 %v172
    %2819 = vmatprep.subr.bf16.mxu0 0
    %2820 = vmatpush2.bf16.msra.mxu0 0
    %2821 = vmatprep.subr.bf16.mxu0 0
    %2822 = vmatpush2.bf16.msra.mxu0 0
    %2823 = vmatprep.subr.bf16.mxu0 0
    %2824 = vmatpush2.bf16.msra.mxu0 0
    %2825 = vmatprep.subr.bf16.mxu0 0
    %2826 = vmatpush2.bf16.msra.mxu0 0
    %2827 = vmatprep.subr.bf16.mxu0 0
    %2828 = vmatpush2.bf16.msra.mxu0 0
    %2829 = vmatprep.subr.bf16.mxu0 0
    %2830 = vmatpush2.bf16.msra.mxu0 0
    %2831 = vmatprep.subr.bf16.mxu0 0
    %2832 = vmatpush2.bf16.msra.mxu0 0
    %2833 = vmatprep.subr.bf16.mxu0 0
    %2834 = vmatpush2.bf16.msra.mxu0 0
    %2835 = vmatprep.mubr.bf16.mxu0 0
    %2836 = vmatmul.mubr.bf16.gmra.mxu0 %v2801
    %v2837 = vpop.f32.mrf.mxu0
    %v2838 = vadd.f32 %v46, %v2837
    %v2839 = vpop.f32.mrf.mxu0
    %v2840 = vpop.f32.mrf.mxu0
    %v2841 = vpop.f32.mrf.mxu0
    %2842 = vdwg.mxu0
    %v2843 = vadd.f32 %v2291, %v2794
    %v2844 = vadd.f32 %v2297, %v2838
    %v2845 = vpack.c.bf16 %v2843, %v2843
    %v2846 = vpack.c.bf16 %v2844, %v2844
    %v2848 = vsel %vm50, %v2845, 0
    %2850 = vmatprep.subr.bf16.mxu0 0
    %2851 = vmatpush1.bf16.msra.mxu0 0
    %2852 = vmatprep.subr.bf16.mxu0 0
    %2853 = vmatpush1.bf16.msra.mxu0 0
    %2854 = vmatprep.subr.bf16.mxu0 0
    %2855 = vmatpush1.bf16.msra.mxu0 0
    %2856 = vmatprep.subr.bf16.mxu0 0
    %2857 = vmatpush1.bf16.msra.mxu0 0
    %2858 = vmatprep.subr.bf16.mxu0 0
    %2859 = vmatpush1.bf16.msra.mxu0 0
    %2860 = vmatprep.subr.bf16.mxu0 0
    %2861 = vmatpush1.bf16.msra.mxu0 0
    %2862 = vmatprep.subr.bf16.mxu0 0
    %2863 = vmatpush1.bf16.msra.mxu0 %v64
    %2864 = vmatprep.subr.bf16.mxu0 0
    %2865 = vmatpush1.bf16.msra.mxu0 %v63
    %2866 = vmatprep.subr.bf16.mxu0 0
    %2867 = vmatpush2.bf16.msra.mxu0 0
    %2868 = vmatprep.subr.bf16.mxu0 0
    %2869 = vmatpush2.bf16.msra.mxu0 0
    %2870 = vmatprep.subr.bf16.mxu0 0
    %2871 = vmatpush2.bf16.msra.mxu0 0
    %2872 = vmatprep.subr.bf16.mxu0 0
    %2873 = vmatpush2.bf16.msra.mxu0 0
    %2874 = vmatprep.subr.bf16.mxu0 0
    %2875 = vmatpush2.bf16.msra.mxu0 0
    %2876 = vmatprep.subr.bf16.mxu0 0
    %2877 = vmatpush2.bf16.msra.mxu0 0
    %2878 = vmatprep.subr.bf16.mxu0 0
    %2879 = vmatpush2.bf16.msra.mxu0 0
    %2880 = vmatprep.subr.bf16.mxu0 0
    %2881 = vmatpush2.bf16.msra.mxu0 0
    %2882 = vmatprep.mubr.bf16.mxu0 0
    %2883 = vmatmul.mubr.bf16.gmra.mxu0 %v2848
    %v2884 = vpop.f32.mrf.mxu0
    %v2885 = vadd.f32 %v39, %v2884
    %v2886 = vpop.f32.mrf.mxu0
    %v2887 = vpop.f32.mrf.mxu0
    %v2888 = vpop.f32.mrf.mxu0
    %2889 = vdwg.mxu0
    %v2890 = vtanh.pop %v2885
    %v2892 = vsel %vm50, %v2846, 0
    %2894 = vmatprep.subr.bf16.mxu0 0
    %2895 = vmatpush1.bf16.msra.mxu0 0
    %2896 = vmatprep.subr.bf16.mxu0 0
    %2897 = vmatpush1.bf16.msra.mxu0 0
    %2898 = vmatprep.subr.bf16.mxu0 0
    %2899 = vmatpush1.bf16.msra.mxu0 0
    %2900 = vmatprep.subr.bf16.mxu0 0
    %2901 = vmatpush1.bf16.msra.mxu0 0
    %2902 = vmatprep.subr.bf16.mxu0 0
    %2903 = vmatpush1.bf16.msra.mxu0 0
    %2904 = vmatprep.subr.bf16.mxu0 0
    %2905 = vmatpush1.bf16.msra.mxu0 0
    %2906 = vmatprep.subr.bf16.mxu0 0
    %2907 = vmatpush1.bf16.msra.mxu0 %v64
    %2908 = vmatprep.subr.bf16.mxu0 0
    %2909 = vmatpush1.bf16.msra.mxu0 %v63
    %2910 = vmatprep.subr.bf16.mxu0 0
    %2911 = vmatpush2.bf16.msra.mxu0 0
    %2912 = vmatprep.subr.bf16.mxu0 0
    %2913 = vmatpush2.bf16.msra.mxu0 0
    %2914 = vmatprep.subr.bf16.mxu0 0
    %2915 = vmatpush2.bf16.msra.mxu0 0
    %2916 = vmatprep.subr.bf16.mxu0 0
    %2917 = vmatpush2.bf16.msra.mxu0 0
    %2918 = vmatprep.subr.bf16.mxu0 0
    %2919 = vmatpush2.bf16.msra.mxu0 0
    %2920 = vmatprep.subr.bf16.mxu0 0
    %2921 = vmatpush2.bf16.msra.mxu0 0
    %2922 = vmatprep.subr.bf16.mxu0 0
    %2923 = vmatpush2.bf16.msra.mxu0 0
    %2924 = vmatprep.subr.bf16.mxu0 0
    %2925 = vmatpush2.bf16.msra.mxu0 0
    %2926 = vmatprep.mubr.bf16.mxu0 0
    %2927 = vmatmul.mubr.bf16.gmra.mxu0 %v2892
    %v2928 = vpop.f32.mrf.mxu0
    %v2929 = vadd.f32 %v39, %v2928
    %v2930 = vpop.f32.mrf.mxu0
    %v2931 = vpop.f32.mrf.mxu0
    %v2932 = vpop.f32.mrf.mxu0
    %2933 = vdwg.mxu0
    %v2934 = vtanh.pop %v2929
    %v2935 = vpack.c.bf16 %v2890, %v2890
    %v2937 = vsel %vm180, %v2935, 0
    %2939 = vmatprep.subr.bf16.mxu0 0
    %2940 = vmatpush1.bf16.msra.mxu0 0
    %2941 = vmatprep.subr.bf16.mxu0 0
    %2942 = vmatpush1.bf16.msra.mxu0 0
    %2943 = vmatprep.subr.bf16.mxu0 0
    %2944 = vmatpush1.bf16.msra.mxu0 0
    %2945 = vmatprep.subr.bf16.mxu0 0
    %2946 = vmatpush1.bf16.msra.mxu0 0
    %2947 = vmatprep.subr.bf16.mxu0 0
    %2948 = vmatpush1.bf16.msra.mxu0 %v175
    %2949 = vmatprep.subr.bf16.mxu0 0
    %2950 = vmatpush1.bf16.msra.mxu0 %v174
    %2951 = vmatprep.subr.bf16.mxu0 0
    %2952 = vmatpush1.bf16.msra.mxu0 %v173
    %2953 = vmatprep.subr.bf16.mxu0 0
    %2954 = vmatpush1.bf16.msra.mxu0 %v172
    %2955 = vmatprep.subr.bf16.mxu0 0
    %2956 = vmatpush2.bf16.msra.mxu0 0
    %2957 = vmatprep.subr.bf16.mxu0 0
    %2958 = vmatpush2.bf16.msra.mxu0 0
    %2959 = vmatprep.subr.bf16.mxu0 0
    %2960 = vmatpush2.bf16.msra.mxu0 0
    %2961 = vmatprep.subr.bf16.mxu0 0
    %2962 = vmatpush2.bf16.msra.mxu0 0
    %2963 = vmatprep.subr.bf16.mxu0 0
    %2964 = vmatpush2.bf16.msra.mxu0 0
    %2965 = vmatprep.subr.bf16.mxu0 0
    %2966 = vmatpush2.bf16.msra.mxu0 0
    %2967 = vmatprep.subr.bf16.mxu0 0
    %2968 = vmatpush2.bf16.msra.mxu0 0
    %2969 = vmatprep.subr.bf16.mxu0 0
    %2970 = vmatpush2.bf16.msra.mxu0 0
    %2971 = vmatprep.mubr.bf16.mxu0 0
    %2972 = vmatmul.mubr.bf16.gmra.mxu0 %v2937
    %v2973 = vpop.f32.mrf.mxu0
    %v2974 = vadd.f32 %v46, %v2973
    %v2975 = vpop.f32.mrf.mxu0
    %v2976 = vpop.f32.mrf.mxu0
    %v2977 = vpop.f32.mrf.mxu0
    %2978 = vdwg.mxu0
    %v2979 = vpack.c.bf16 %v2934, %v2934
    %v2981 = vsel %vm180, %v2979, 0
    %2983 = vmatprep.subr.bf16.mxu0 0
    %2984 = vmatpush1.bf16.msra.mxu0 0
    %2985 = vmatprep.subr.bf16.mxu0 0
    %2986 = vmatpush1.bf16.msra.mxu0 0
    %2987 = vmatprep.subr.bf16.mxu0 0
    %2988 = vmatpush1.bf16.msra.mxu0 0
    %2989 = vmatprep.subr.bf16.mxu0 0
    %2990 = vmatpush1.bf16.msra.mxu0 0
    %2991 = vmatprep.subr.bf16.mxu0 0
    %2992 = vmatpush1.bf16.msra.mxu0 %v175
    %2993 = vmatprep.subr.bf16.mxu0 0
    %2994 = vmatpush1.bf16.msra.mxu0 %v174
    %2995 = vmatprep.subr.bf16.mxu0 0
    %2996 = vmatpush1.bf16.msra.mxu0 %v173
    %2997 = vmatprep.subr.bf16.mxu0 0
    %2998 = vmatpush1.bf16.msra.mxu0 %v172
    %2999 = vmatprep.subr.bf16.mxu0 0
    %3000 = vmatpush2.bf16.msra.mxu0 0
    %3001 = vmatprep.subr.bf16.mxu0 0
    %3002 = vmatpush2.bf16.msra.mxu0 0
    %3003 = vmatprep.subr.bf16.mxu0 0
    %3004 = vmatpush2.bf16.msra.mxu0 0
    %3005 = vmatprep.subr.bf16.mxu0 0
    %3006 = vmatpush2.bf16.msra.mxu0 0
    %3007 = vmatprep.subr.bf16.mxu0 0
    %3008 = vmatpush2.bf16.msra.mxu0 0
    %3009 = vmatprep.subr.bf16.mxu0 0
    %3010 = vmatpush2.bf16.msra.mxu0 0
    %3011 = vmatprep.subr.bf16.mxu0 0
    %3012 = vmatpush2.bf16.msra.mxu0 0
    %3013 = vmatprep.subr.bf16.mxu0 0
    %3014 = vmatpush2.bf16.msra.mxu0 0
    %3015 = vmatprep.mubr.bf16.mxu0 0
    %3016 = vmatmul.mubr.bf16.gmra.mxu0 %v2981
    %v3017 = vpop.f32.mrf.mxu0
    %v3018 = vadd.f32 %v46, %v3017
    %v3019 = vpop.f32.mrf.mxu0
    %v3020 = vpop.f32.mrf.mxu0
    %v3021 = vpop.f32.mrf.mxu0
    %3022 = vdwg.mxu0
    %v3023 = vadd.f32 %v2612, %v2794
    %v3024 = vmul.f32 %v3023, 2.0
    %v3025 = vadd.f32 %v2430, %v3024
    %v3026 = vadd.f32 %v3025, %v2974
    %v3027 = vmul.f32 %v3026, 0.16666667
    %v3028 = vadd.f32 %v2291, %v3027
    %v3029 = vadd.f32 %v2656, %v2838
    %v3030 = vmul.f32 %v3029, 2.0
    %v3031 = vadd.f32 %v2474, %v3030
    %v3032 = vadd.f32 %v3031, %v3018
    %v3033 = vmul.f32 %v3032, 0.16666667
    %v3034 = vadd.f32 %v2297, %v3033
    %s3035 = scalar_lea.vmem [#allocation2], 64
    %3036 = vst.msk [vmem:[%s3035] sm:$0xff] %vm50, %v3028
    %3037 = vst.msk [vmem:[%s3035 + $0x8] sm:$0xff] %vm50, %v3034
    %v3038 = vpack.c.bf16 %v3028, %v3028
    %v3039 = vpack.c.bf16 %v3034, %v3034
    %v3041 = vsel %vm50, %v3038, 0
    %3043 = vmatprep.subr.bf16.mxu0 0
    %3044 = vmatpush1.bf16.msra.mxu0 0
    %3045 = vmatprep.subr.bf16.mxu0 0
    %3046 = vmatpush1.bf16.msra.mxu0 0
    %3047 = vmatprep.subr.bf16.mxu0 0
    %3048 = vmatpush1.bf16.msra.mxu0 0
    %3049 = vmatprep.subr.bf16.mxu0 0
    %3050 = vmatpush1.bf16.msra.mxu0 0
    %3051 = vmatprep.subr.bf16.mxu0 0
    %3052 = vmatpush1.bf16.msra.mxu0 0
    %3053 = vmatprep.subr.bf16.mxu0 0
    %3054 = vmatpush1.bf16.msra.mxu0 0
    %3055 = vmatprep.subr.bf16.mxu0 0
    %3056 = vmatpush1.bf16.msra.mxu0 %v64
    %3057 = vmatprep.subr.bf16.mxu0 0
    %3058 = vmatpush1.bf16.msra.mxu0 %v63
    %3059 = vmatprep.subr.bf16.mxu0 0
    %3060 = vmatpush2.bf16.msra.mxu0 0
    %3061 = vmatprep.subr.bf16.mxu0 0
    %3062 = vmatpush2.bf16.msra.mxu0 0
    %3063 = vmatprep.subr.bf16.mxu0 0
    %3064 = vmatpush2.bf16.msra.mxu0 0
    %3065 = vmatprep.subr.bf16.mxu0 0
    %3066 = vmatpush2.bf16.msra.mxu0 0
    %3067 = vmatprep.subr.bf16.mxu0 0
    %3068 = vmatpush2.bf16.msra.mxu0 0
    %3069 = vmatprep.subr.bf16.mxu0 0
    %3070 = vmatpush2.bf16.msra.mxu0 0
    %3071 = vmatprep.subr.bf16.mxu0 0
    %3072 = vmatpush2.bf16.msra.mxu0 0
    %3073 = vmatprep.subr.bf16.mxu0 0
    %3074 = vmatpush2.bf16.msra.mxu0 0
    %3075 = vmatprep.mubr.bf16.mxu0 0
    %3076 = vmatmul.mubr.bf16.gmra.mxu0 %v3041
    %v3077 = vpop.f32.mrf.mxu0
    %v3078 = vadd.f32 %v39, %v3077
    %v3079 = vpop.f32.mrf.mxu0
    %v3080 = vpop.f32.mrf.mxu0
    %v3081 = vpop.f32.mrf.mxu0
    %3082 = vdwg.mxu0
    %v3083 = vtanh.pop %v3078
    %v3085 = vsel %vm50, %v3039, 0
    %3087 = vmatprep.subr.bf16.mxu0 0
    %3088 = vmatpush1.bf16.msra.mxu0 0
    %3089 = vmatprep.subr.bf16.mxu0 0
    %3090 = vmatpush1.bf16.msra.mxu0 0
    %3091 = vmatprep.subr.bf16.mxu0 0
    %3092 = vmatpush1.bf16.msra.mxu0 0
    %3093 = vmatprep.subr.bf16.mxu0 0
    %3094 = vmatpush1.bf16.msra.mxu0 0
    %3095 = vmatprep.subr.bf16.mxu0 0
    %3096 = vmatpush1.bf16.msra.mxu0 0
    %3097 = vmatprep.subr.bf16.mxu0 0
    %3098 = vmatpush1.bf16.msra.mxu0 0
    %3099 = vmatprep.subr.bf16.mxu0 0
    %3100 = vmatpush1.bf16.msra.mxu0 %v64
    %3101 = vmatprep.subr.bf16.mxu0 0
    %3102 = vmatpush1.bf16.msra.mxu0 %v63
    %3103 = vmatprep.subr.bf16.mxu0 0
    %3104 = vmatpush2.bf16.msra.mxu0 0
    %3105 = vmatprep.subr.bf16.mxu0 0
    %3106 = vmatpush2.bf16.msra.mxu0 0
    %3107 = vmatprep.subr.bf16.mxu0 0
    %3108 = vmatpush2.bf16.msra.mxu0 0
    %3109 = vmatprep.subr.bf16.mxu0 0
    %3110 = vmatpush2.bf16.msra.mxu0 0
    %3111 = vmatprep.subr.bf16.mxu0 0
    %3112 = vmatpush2.bf16.msra.mxu0 0
    %3113 = vmatprep.subr.bf16.mxu0 0
    %3114 = vmatpush2.bf16.msra.mxu0 0
    %3115 = vmatprep.subr.bf16.mxu0 0
    %3116 = vmatpush2.bf16.msra.mxu0 0
    %3117 = vmatprep.subr.bf16.mxu0 0
    %3118 = vmatpush2.bf16.msra.mxu0 0
    %3119 = vmatprep.mubr.bf16.mxu0 0
    %3120 = vmatmul.mubr.bf16.gmra.mxu0 %v3085
    %v3121 = vpop.f32.mrf.mxu0
    %v3122 = vadd.f32 %v39, %v3121
    %v3123 = vpop.f32.mrf.mxu0
    %v3124 = vpop.f32.mrf.mxu0
    %v3125 = vpop.f32.mrf.mxu0
    %3126 = vdwg.mxu0
    %v3127 = vtanh.pop %v3122
    %v3128 = vpack.c.bf16 %v3083, %v3083
    %v3130 = vsel %vm180, %v3128, 0
    %3132 = vmatprep.subr.bf16.mxu0 0
    %3133 = vmatpush1.bf16.msra.mxu0 0
    %3134 = vmatprep.subr.bf16.mxu0 0
    %3135 = vmatpush1.bf16.msra.mxu0 0
    %3136 = vmatprep.subr.bf16.mxu0 0
    %3137 = vmatpush1.bf16.msra.mxu0 0
    %3138 = vmatprep.subr.bf16.mxu0 0
    %3139 = vmatpush1.bf16.msra.mxu0 0
    %3140 = vmatprep.subr.bf16.mxu0 0
    %3141 = vmatpush1.bf16.msra.mxu0 %v175
    %3142 = vmatprep.subr.bf16.mxu0 0
    %3143 = vmatpush1.bf16.msra.mxu0 %v174
    %3144 = vmatprep.subr.bf16.mxu0 0
    %3145 = vmatpush1.bf16.msra.mxu0 %v173
    %3146 = vmatprep.subr.bf16.mxu0 0
    %3147 = vmatpush1.bf16.msra.mxu0 %v172
    %3148 = vmatprep.subr.bf16.mxu0 0
    %3149 = vmatpush2.bf16.msra.mxu0 0
    %3150 = vmatprep.subr.bf16.mxu0 0
    %3151 = vmatpush2.bf16.msra.mxu0 0
    %3152 = vmatprep.subr.bf16.mxu0 0
    %3153 = vmatpush2.bf16.msra.mxu0 0
    %3154 = vmatprep.subr.bf16.mxu0 0
    %3155 = vmatpush2.bf16.msra.mxu0 0
    %3156 = vmatprep.subr.bf16.mxu0 0
    %3157 = vmatpush2.bf16.msra.mxu0 0
    %3158 = vmatprep.subr.bf16.mxu0 0
    %3159 = vmatpush2.bf16.msra.mxu0 0
    %3160 = vmatprep.subr.bf16.mxu0 0
    %3161 = vmatpush2.bf16.msra.mxu0 0
    %3162 = vmatprep.subr.bf16.mxu0 0
    %3163 = vmatpush2.bf16.msra.mxu0 0
    %3164 = vmatprep.mubr.bf16.mxu0 0
    %3165 = vmatmul.mubr.bf16.gmra.mxu0 %v3130
    %v3166 = vpop.f32.mrf.mxu0
    %v3167 = vadd.f32 %v46, %v3166
    %v3168 = vpop.f32.mrf.mxu0
    %v3169 = vpop.f32.mrf.mxu0
    %v3170 = vpop.f32.mrf.mxu0
    %3171 = vdwg.mxu0
    %v3172 = vpack.c.bf16 %v3127, %v3127
    %v3174 = vsel %vm180, %v3172, 0
    %3176 = vmatprep.subr.bf16.mxu0 0
    %3177 = vmatpush1.bf16.msra.mxu0 0
    %3178 = vmatprep.subr.bf16.mxu0 0
    %3179 = vmatpush1.bf16.msra.mxu0 0
    %3180 = vmatprep.subr.bf16.mxu0 0
    %3181 = vmatpush1.bf16.msra.mxu0 0
    %3182 = vmatprep.subr.bf16.mxu0 0
    %3183 = vmatpush1.bf16.msra.mxu0 0
    %3184 = vmatprep.subr.bf16.mxu0 0
    %3185 = vmatpush1.bf16.msra.mxu0 %v175
    %3186 = vmatprep.subr.bf16.mxu0 0
    %3187 = vmatpush1.bf16.msra.mxu0 %v174
    %3188 = vmatprep.subr.bf16.mxu0 0
    %3189 = vmatpush1.bf16.msra.mxu0 %v173
    %3190 = vmatprep.subr.bf16.mxu0 0
    %3191 = vmatpush1.bf16.msra.mxu0 %v172
    %3192 = vmatprep.subr.bf16.mxu0 0
    %3193 = vmatpush2.bf16.msra.mxu0 0
    %3194 = vmatprep.subr.bf16.mxu0 0
    %3195 = vmatpush2.bf16.msra.mxu0 0
    %3196 = vmatprep.subr.bf16.mxu0 0
    %3197 = vmatpush2.bf16.msra.mxu0 0
    %3198 = vmatprep.subr.bf16.mxu0 0
    %3199 = vmatpush2.bf16.msra.mxu0 0
    %3200 = vmatprep.subr.bf16.mxu0 0
    %3201 = vmatpush2.bf16.msra.mxu0 0
    %3202 = vmatprep.subr.bf16.mxu0 0
    %3203 = vmatpush2.bf16.msra.mxu0 0
    %3204 = vmatprep.subr.bf16.mxu0 0
    %3205 = vmatpush2.bf16.msra.mxu0 0
    %3206 = vmatprep.subr.bf16.mxu0 0
    %3207 = vmatpush2.bf16.msra.mxu0 0
    %3208 = vmatprep.mubr.bf16.mxu0 0
    %3209 = vmatmul.mubr.bf16.gmra.mxu0 %v3174
    %v3210 = vpop.f32.mrf.mxu0
    %v3211 = vadd.f32 %v46, %v3210
    %v3212 = vpop.f32.mrf.mxu0
    %v3213 = vpop.f32.mrf.mxu0
    %v3214 = vpop.f32.mrf.mxu0
    %3215 = vdwg.mxu0
    %v3216 = vmul.f32 %v3167, 0.5
    %v3217 = vadd.f32 %v3028, %v3216
    %v3218 = vmul.f32 %v3211, 0.5
    %v3219 = vadd.f32 %v3034, %v3218
    %v3220 = vpack.c.bf16 %v3217, %v3217
    %v3221 = vpack.c.bf16 %v3219, %v3219
    %v3223 = vsel %vm50, %v3220, 0
    %3225 = vmatprep.subr.bf16.mxu0 0
    %3226 = vmatpush1.bf16.msra.mxu0 0
    %3227 = vmatprep.subr.bf16.mxu0 0
    %3228 = vmatpush1.bf16.msra.mxu0 0
    %3229 = vmatprep.subr.bf16.mxu0 0
    %3230 = vmatpush1.bf16.msra.mxu0 0
    %3231 = vmatprep.subr.bf16.mxu0 0
    %3232 = vmatpush1.bf16.msra.mxu0 0
    %3233 = vmatprep.subr.bf16.mxu0 0
    %3234 = vmatpush1.bf16.msra.mxu0 0
    %3235 = vmatprep.subr.bf16.mxu0 0
    %3236 = vmatpush1.bf16.msra.mxu0 0
    %3237 = vmatprep.subr.bf16.mxu0 0
    %3238 = vmatpush1.bf16.msra.mxu0 %v64
    %3239 = vmatprep.subr.bf16.mxu0 0
    %3240 = vmatpush1.bf16.msra.mxu0 %v63
    %3241 = vmatprep.subr.bf16.mxu0 0
    %3242 = vmatpush2.bf16.msra.mxu0 0
    %3243 = vmatprep.subr.bf16.mxu0 0
    %3244 = vmatpush2.bf16.msra.mxu0 0
    %3245 = vmatprep.subr.bf16.mxu0 0
    %3246 = vmatpush2.bf16.msra.mxu0 0
    %3247 = vmatprep.subr.bf16.mxu0 0
    %3248 = vmatpush2.bf16.msra.mxu0 0
    %3249 = vmatprep.subr.bf16.mxu0 0
    %3250 = vmatpush2.bf16.msra.mxu0 0
    %3251 = vmatprep.subr.bf16.mxu0 0
    %3252 = vmatpush2.bf16.msra.mxu0 0
    %3253 = vmatprep.subr.bf16.mxu0 0
    %3254 = vmatpush2.bf16.msra.mxu0 0
    %3255 = vmatprep.subr.bf16.mxu0 0
    %3256 = vmatpush2.bf16.msra.mxu0 0
    %3257 = vmatprep.mubr.bf16.mxu0 0
    %3258 = vmatmul.mubr.bf16.gmra.mxu0 %v3223
    %v3259 = vpop.f32.mrf.mxu0
    %v3260 = vadd.f32 %v39, %v3259
    %v3261 = vpop.f32.mrf.mxu0
    %v3262 = vpop.f32.mrf.mxu0
    %v3263 = vpop.f32.mrf.mxu0
    %3264 = vdwg.mxu0
    %v3265 = vtanh.pop %v3260
    %v3267 = vsel %vm50, %v3221, 0
    %3269 = vmatprep.subr.bf16.mxu0 0
    %3270 = vmatpush1.bf16.msra.mxu0 0
    %3271 = vmatprep.subr.bf16.mxu0 0
    %3272 = vmatpush1.bf16.msra.mxu0 0
    %3273 = vmatprep.subr.bf16.mxu0 0
    %3274 = vmatpush1.bf16.msra.mxu0 0
    %3275 = vmatprep.subr.bf16.mxu0 0
    %3276 = vmatpush1.bf16.msra.mxu0 0
    %3277 = vmatprep.subr.bf16.mxu0 0
    %3278 = vmatpush1.bf16.msra.mxu0 0
    %3279 = vmatprep.subr.bf16.mxu0 0
    %3280 = vmatpush1.bf16.msra.mxu0 0
    %3281 = vmatprep.subr.bf16.mxu0 0
    %3282 = vmatpush1.bf16.msra.mxu0 %v64
    %3283 = vmatprep.subr.bf16.mxu0 0
    %3284 = vmatpush1.bf16.msra.mxu0 %v63
    %3285 = vmatprep.subr.bf16.mxu0 0
    %3286 = vmatpush2.bf16.msra.mxu0 0
    %3287 = vmatprep.subr.bf16.mxu0 0
    %3288 = vmatpush2.bf16.msra.mxu0 0
    %3289 = vmatprep.subr.bf16.mxu0 0
    %3290 = vmatpush2.bf16.msra.mxu0 0
    %3291 = vmatprep.subr.bf16.mxu0 0
    %3292 = vmatpush2.bf16.msra.mxu0 0
    %3293 = vmatprep.subr.bf16.mxu0 0
    %3294 = vmatpush2.bf16.msra.mxu0 0
    %3295 = vmatprep.subr.bf16.mxu0 0
    %3296 = vmatpush2.bf16.msra.mxu0 0
    %3297 = vmatprep.subr.bf16.mxu0 0
    %3298 = vmatpush2.bf16.msra.mxu0 0
    %3299 = vmatprep.subr.bf16.mxu0 0
    %3300 = vmatpush2.bf16.msra.mxu0 0
    %3301 = vmatprep.mubr.bf16.mxu0 0
    %3302 = vmatmul.mubr.bf16.gmra.mxu0 %v3267
    %v3303 = vpop.f32.mrf.mxu0
    %v3304 = vadd.f32 %v39, %v3303
    %v3305 = vpop.f32.mrf.mxu0
    %v3306 = vpop.f32.mrf.mxu0
    %v3307 = vpop.f32.mrf.mxu0
    %3308 = vdwg.mxu0
    %v3309 = vtanh.pop %v3304
    %v3310 = vpack.c.bf16 %v3265, %v3265
    %v3312 = vsel %vm180, %v3310, 0
    %3314 = vmatprep.subr.bf16.mxu0 0
    %3315 = vmatpush1.bf16.msra.mxu0 0
    %3316 = vmatprep.subr.bf16.mxu0 0
    %3317 = vmatpush1.bf16.msra.mxu0 0
    %3318 = vmatprep.subr.bf16.mxu0 0
    %3319 = vmatpush1.bf16.msra.mxu0 0
    %3320 = vmatprep.subr.bf16.mxu0 0
    %3321 = vmatpush1.bf16.msra.mxu0 0
    %3322 = vmatprep.subr.bf16.mxu0 0
    %3323 = vmatpush1.bf16.msra.mxu0 %v175
    %3324 = vmatprep.subr.bf16.mxu0 0
    %3325 = vmatpush1.bf16.msra.mxu0 %v174
    %3326 = vmatprep.subr.bf16.mxu0 0
    %3327 = vmatpush1.bf16.msra.mxu0 %v173
    %3328 = vmatprep.subr.bf16.mxu0 0
    %3329 = vmatpush1.bf16.msra.mxu0 %v172
    %3330 = vmatprep.subr.bf16.mxu0 0
    %3331 = vmatpush2.bf16.msra.mxu0 0
    %3332 = vmatprep.subr.bf16.mxu0 0
    %3333 = vmatpush2.bf16.msra.mxu0 0
    %3334 = vmatprep.subr.bf16.mxu0 0
    %3335 = vmatpush2.bf16.msra.mxu0 0
    %3336 = vmatprep.subr.bf16.mxu0 0
    %3337 = vmatpush2.bf16.msra.mxu0 0
    %3338 = vmatprep.subr.bf16.mxu0 0
    %3339 = vmatpush2.bf16.msra.mxu0 0
    %3340 = vmatprep.subr.bf16.mxu0 0
    %3341 = vmatpush2.bf16.msra.mxu0 0
    %3342 = vmatprep.subr.bf16.mxu0 0
    %3343 = vmatpush2.bf16.msra.mxu0 0
    %3344 = vmatprep.subr.bf16.mxu0 0
    %3345 = vmatpush2.bf16.msra.mxu0 0
    %3346 = vmatprep.mubr.bf16.mxu0 0
    %3347 = vmatmul.mubr.bf16.gmra.mxu0 %v3312
    %v3348 = vpop.f32.mrf.mxu0
    %v3349 = vadd.f32 %v46, %v3348
    %v3350 = vpop.f32.mrf.mxu0
    %v3351 = vpop.f32.mrf.mxu0
    %v3352 = vpop.f32.mrf.mxu0
    %3353 = vdwg.mxu0
    %v3354 = vpack.c.bf16 %v3309, %v3309
    %v3356 = vsel %vm180, %v3354, 0
    %3358 = vmatprep.subr.bf16.mxu0 0
    %3359 = vmatpush1.bf16.msra.mxu0 0
    %3360 = vmatprep.subr.bf16.mxu0 0
    %3361 = vmatpush1.bf16.msra.mxu0 0
    %3362 = vmatprep.subr.bf16.mxu0 0
    %3363 = vmatpush1.bf16.msra.mxu0 0
    %3364 = vmatprep.subr.bf16.mxu0 0
    %3365 = vmatpush1.bf16.msra.mxu0 0
    %3366 = vmatprep.subr.bf16.mxu0 0
    %3367 = vmatpush1.bf16.msra.mxu0 %v175
    %3368 = vmatprep.subr.bf16.mxu0 0
    %3369 = vmatpush1.bf16.msra.mxu0 %v174
    %3370 = vmatprep.subr.bf16.mxu0 0
    %3371 = vmatpush1.bf16.msra.mxu0 %v173
    %3372 = vmatprep.subr.bf16.mxu0 0
    %3373 = vmatpush1.bf16.msra.mxu0 %v172
    %3374 = vmatprep.subr.bf16.mxu0 0
    %3375 = vmatpush2.bf16.msra.mxu0 0
    %3376 = vmatprep.subr.bf16.mxu0 0
    %3377 = vmatpush2.bf16.msra.mxu0 0
    %3378 = vmatprep.subr.bf16.mxu0 0
    %3379 = vmatpush2.bf16.msra.mxu0 0
    %3380 = vmatprep.subr.bf16.mxu0 0
    %3381 = vmatpush2.bf16.msra.mxu0 0
    %3382 = vmatprep.subr.bf16.mxu0 0
    %3383 = vmatpush2.bf16.msra.mxu0 0
    %3384 = vmatprep.subr.bf16.mxu0 0
    %3385 = vmatpush2.bf16.msra.mxu0 0
    %3386 = vmatprep.subr.bf16.mxu0 0
    %3387 = vmatpush2.bf16.msra.mxu0 0
    %3388 = vmatprep.subr.bf16.mxu0 0
    %3389 = vmatpush2.bf16.msra.mxu0 0
    %3390 = vmatprep.mubr.bf16.mxu0 0
    %3391 = vmatmul.mubr.bf16.gmra.mxu0 %v3356
    %v3392 = vpop.f32.mrf.mxu0
    %v3393 = vadd.f32 %v46, %v3392
    %v3394 = vpop.f32.mrf.mxu0
    %v3395 = vpop.f32.mrf.mxu0
    %v3396 = vpop.f32.mrf.mxu0
    %3397 = vdwg.mxu0
    %v3398 = vmul.f32 %v3349, 0.5
    %v3399 = vadd.f32 %v3028, %v3398
    %v3400 = vmul.f32 %v3393, 0.5
    %v3401 = vadd.f32 %v3034, %v3400
    %v3402 = vpack.c.bf16 %v3399, %v3399
    %v3403 = vpack.c.bf16 %v3401, %v3401
    %v3405 = vsel %vm50, %v3402, 0
    %3407 = vmatprep.subr.bf16.mxu0 0
    %3408 = vmatpush1.bf16.msra.mxu0 0
    %3409 = vmatprep.subr.bf16.mxu0 0
    %3410 = vmatpush1.bf16.msra.mxu0 0
    %3411 = vmatprep.subr.bf16.mxu0 0
    %3412 = vmatpush1.bf16.msra.mxu0 0
    %3413 = vmatprep.subr.bf16.mxu0 0
    %3414 = vmatpush1.bf16.msra.mxu0 0
    %3415 = vmatprep.subr.bf16.mxu0 0
    %3416 = vmatpush1.bf16.msra.mxu0 0
    %3417 = vmatprep.subr.bf16.mxu0 0
    %3418 = vmatpush1.bf16.msra.mxu0 0
    %3419 = vmatprep.subr.bf16.mxu0 0
    %3420 = vmatpush1.bf16.msra.mxu0 %v64
    %3421 = vmatprep.subr.bf16.mxu0 0
    %3422 = vmatpush1.bf16.msra.mxu0 %v63
    %3423 = vmatprep.subr.bf16.mxu0 0
    %3424 = vmatpush2.bf16.msra.mxu0 0
    %3425 = vmatprep.subr.bf16.mxu0 0
    %3426 = vmatpush2.bf16.msra.mxu0 0
    %3427 = vmatprep.subr.bf16.mxu0 0
    %3428 = vmatpush2.bf16.msra.mxu0 0
    %3429 = vmatprep.subr.bf16.mxu0 0
    %3430 = vmatpush2.bf16.msra.mxu0 0
    %3431 = vmatprep.subr.bf16.mxu0 0
    %3432 = vmatpush2.bf16.msra.mxu0 0
    %3433 = vmatprep.subr.bf16.mxu0 0
    %3434 = vmatpush2.bf16.msra.mxu0 0
    %3435 = vmatprep.subr.bf16.mxu0 0
    %3436 = vmatpush2.bf16.msra.mxu0 0
    %3437 = vmatprep.subr.bf16.mxu0 0
    %3438 = vmatpush2.bf16.msra.mxu0 0
    %3439 = vmatprep.mubr.bf16.mxu0 0
    %3440 = vmatmul.mubr.bf16.gmra.mxu0 %v3405
    %v3441 = vpop.f32.mrf.mxu0
    %v3442 = vadd.f32 %v39, %v3441
    %v3443 = vpop.f32.mrf.mxu0
    %v3444 = vpop.f32.mrf.mxu0
    %v3445 = vpop.f32.mrf.mxu0
    %3446 = vdwg.mxu0
    %v3447 = vtanh.pop %v3442
    %v3449 = vsel %vm50, %v3403, 0
    %3451 = vmatprep.subr.bf16.mxu0 0
    %3452 = vmatpush1.bf16.msra.mxu0 0
    %3453 = vmatprep.subr.bf16.mxu0 0
    %3454 = vmatpush1.bf16.msra.mxu0 0
    %3455 = vmatprep.subr.bf16.mxu0 0
    %3456 = vmatpush1.bf16.msra.mxu0 0
    %3457 = vmatprep.subr.bf16.mxu0 0
    %3458 = vmatpush1.bf16.msra.mxu0 0
    %3459 = vmatprep.subr.bf16.mxu0 0
    %3460 = vmatpush1.bf16.msra.mxu0 0
    %3461 = vmatprep.subr.bf16.mxu0 0
    %3462 = vmatpush1.bf16.msra.mxu0 0
    %3463 = vmatprep.subr.bf16.mxu0 0
    %3464 = vmatpush1.bf16.msra.mxu0 %v64
    %3465 = vmatprep.subr.bf16.mxu0 0
    %3466 = vmatpush1.bf16.msra.mxu0 %v63
    %3467 = vmatprep.subr.bf16.mxu0 0
    %3468 = vmatpush2.bf16.msra.mxu0 0
    %3469 = vmatprep.subr.bf16.mxu0 0
    %3470 = vmatpush2.bf16.msra.mxu0 0
    %3471 = vmatprep.subr.bf16.mxu0 0
    %3472 = vmatpush2.bf16.msra.mxu0 0
    %3473 = vmatprep.subr.bf16.mxu0 0
    %3474 = vmatpush2.bf16.msra.mxu0 0
    %3475 = vmatprep.subr.bf16.mxu0 0
    %3476 = vmatpush2.bf16.msra.mxu0 0
    %3477 = vmatprep.subr.bf16.mxu0 0
    %3478 = vmatpush2.bf16.msra.mxu0 0
    %3479 = vmatprep.subr.bf16.mxu0 0
    %3480 = vmatpush2.bf16.msra.mxu0 0
    %3481 = vmatprep.subr.bf16.mxu0 0
    %3482 = vmatpush2.bf16.msra.mxu0 0
    %3483 = vmatprep.mubr.bf16.mxu0 0
    %3484 = vmatmul.mubr.bf16.gmra.mxu0 %v3449
    %v3485 = vpop.f32.mrf.mxu0
    %v3486 = vadd.f32 %v39, %v3485
    %v3487 = vpop.f32.mrf.mxu0
    %v3488 = vpop.f32.mrf.mxu0
    %v3489 = vpop.f32.mrf.mxu0
    %3490 = vdwg.mxu0
    %v3491 = vtanh.pop %v3486
    %v3492 = vpack.c.bf16 %v3447, %v3447
    %v3494 = vsel %vm180, %v3492, 0
    %3496 = vmatprep.subr.bf16.mxu0 0
    %3497 = vmatpush1.bf16.msra.mxu0 0
    %3498 = vmatprep.subr.bf16.mxu0 0
    %3499 = vmatpush1.bf16.msra.mxu0 0
    %3500 = vmatprep.subr.bf16.mxu0 0
    %3501 = vmatpush1.bf16.msra.mxu0 0
    %3502 = vmatprep.subr.bf16.mxu0 0
    %3503 = vmatpush1.bf16.msra.mxu0 0
    %3504 = vmatprep.subr.bf16.mxu0 0
    %3505 = vmatpush1.bf16.msra.mxu0 %v175
    %3506 = vmatprep.subr.bf16.mxu0 0
    %3507 = vmatpush1.bf16.msra.mxu0 %v174
    %3508 = vmatprep.subr.bf16.mxu0 0
    %3509 = vmatpush1.bf16.msra.mxu0 %v173
    %3510 = vmatprep.subr.bf16.mxu0 0
    %3511 = vmatpush1.bf16.msra.mxu0 %v172
    %3512 = vmatprep.subr.bf16.mxu0 0
    %3513 = vmatpush2.bf16.msra.mxu0 0
    %3514 = vmatprep.subr.bf16.mxu0 0
    %3515 = vmatpush2.bf16.msra.mxu0 0
    %3516 = vmatprep.subr.bf16.mxu0 0
    %3517 = vmatpush2.bf16.msra.mxu0 0
    %3518 = vmatprep.subr.bf16.mxu0 0
    %3519 = vmatpush2.bf16.msra.mxu0 0
    %3520 = vmatprep.subr.bf16.mxu0 0
    %3521 = vmatpush2.bf16.msra.mxu0 0
    %3522 = vmatprep.subr.bf16.mxu0 0
    %3523 = vmatpush2.bf16.msra.mxu0 0
    %3524 = vmatprep.subr.bf16.mxu0 0
    %3525 = vmatpush2.bf16.msra.mxu0 0
    %3526 = vmatprep.subr.bf16.mxu0 0
    %3527 = vmatpush2.bf16.msra.mxu0 0
    %3528 = vmatprep.mubr.bf16.mxu0 0
    %3529 = vmatmul.mubr.bf16.gmra.mxu0 %v3494
    %v3530 = vpop.f32.mrf.mxu0
    %v3531 = vadd.f32 %v46, %v3530
    %v3532 = vpop.f32.mrf.mxu0
    %v3533 = vpop.f32.mrf.mxu0
    %v3534 = vpop.f32.mrf.mxu0
    %3535 = vdwg.mxu0
    %v3536 = vpack.c.bf16 %v3491, %v3491
    %v3538 = vsel %vm180, %v3536, 0
    %3540 = vmatprep.subr.bf16.mxu0 0
    %3541 = vmatpush1.bf16.msra.mxu0 0
    %3542 = vmatprep.subr.bf16.mxu0 0
    %3543 = vmatpush1.bf16.msra.mxu0 0
    %3544 = vmatprep.subr.bf16.mxu0 0
    %3545 = vmatpush1.bf16.msra.mxu0 0
    %3546 = vmatprep.subr.bf16.mxu0 0
    %3547 = vmatpush1.bf16.msra.mxu0 0
    %3548 = vmatprep.subr.bf16.mxu0 0
    %3549 = vmatpush1.bf16.msra.mxu0 %v175
    %3550 = vmatprep.subr.bf16.mxu0 0
    %3551 = vmatpush1.bf16.msra.mxu0 %v174
    %3552 = vmatprep.subr.bf16.mxu0 0
    %3553 = vmatpush1.bf16.msra.mxu0 %v173
    %3554 = vmatprep.subr.bf16.mxu0 0
    %3555 = vmatpush1.bf16.msra.mxu0 %v172
    %3556 = vmatprep.subr.bf16.mxu0 0
    %3557 = vmatpush2.bf16.msra.mxu0 0
    %3558 = vmatprep.subr.bf16.mxu0 0
    %3559 = vmatpush2.bf16.msra.mxu0 0
    %3560 = vmatprep.subr.bf16.mxu0 0
    %3561 = vmatpush2.bf16.msra.mxu0 0
    %3562 = vmatprep.subr.bf16.mxu0 0
    %3563 = vmatpush2.bf16.msra.mxu0 0
    %3564 = vmatprep.subr.bf16.mxu0 0
    %3565 = vmatpush2.bf16.msra.mxu0 0
    %3566 = vmatprep.subr.bf16.mxu0 0
    %3567 = vmatpush2.bf16.msra.mxu0 0
    %3568 = vmatprep.subr.bf16.mxu0 0
    %3569 = vmatpush2.bf16.msra.mxu0 0
    %3570 = vmatprep.subr.bf16.mxu0 0
    %3571 = vmatpush2.bf16.msra.mxu0 0
    %3572 = vmatprep.mubr.bf16.mxu0 0
    %3573 = vmatmul.mubr.bf16.gmra.mxu0 %v3538
    %v3574 = vpop.f32.mrf.mxu0
    %v3575 = vadd.f32 %v46, %v3574
    %v3576 = vpop.f32.mrf.mxu0
    %v3577 = vpop.f32.mrf.mxu0
    %v3578 = vpop.f32.mrf.mxu0
    %3579 = vdwg.mxu0
    %v3580 = vadd.f32 %v3028, %v3531
    %v3581 = vadd.f32 %v3034, %v3575
    %v3582 = vpack.c.bf16 %v3580, %v3580
    %v3583 = vpack.c.bf16 %v3581, %v3581
    %v3585 = vsel %vm50, %v3582, 0
    %3587 = vmatprep.subr.bf16.mxu0 0
    %3588 = vmatpush1.bf16.msra.mxu0 0
    %3589 = vmatprep.subr.bf16.mxu0 0
    %3590 = vmatpush1.bf16.msra.mxu0 0
    %3591 = vmatprep.subr.bf16.mxu0 0
    %3592 = vmatpush1.bf16.msra.mxu0 0
    %3593 = vmatprep.subr.bf16.mxu0 0
    %3594 = vmatpush1.bf16.msra.mxu0 0
    %3595 = vmatprep.subr.bf16.mxu0 0
    %3596 = vmatpush1.bf16.msra.mxu0 0
    %3597 = vmatprep.subr.bf16.mxu0 0
    %3598 = vmatpush1.bf16.msra.mxu0 0
    %3599 = vmatprep.subr.bf16.mxu0 0
    %3600 = vmatpush1.bf16.msra.mxu0 %v64
    %3601 = vmatprep.subr.bf16.mxu0 0
    %3602 = vmatpush1.bf16.msra.mxu0 %v63
    %3603 = vmatprep.subr.bf16.mxu0 0
    %3604 = vmatpush2.bf16.msra.mxu0 0
    %3605 = vmatprep.subr.bf16.mxu0 0
    %3606 = vmatpush2.bf16.msra.mxu0 0
    %3607 = vmatprep.subr.bf16.mxu0 0
    %3608 = vmatpush2.bf16.msra.mxu0 0
    %3609 = vmatprep.subr.bf16.mxu0 0
    %3610 = vmatpush2.bf16.msra.mxu0 0
    %3611 = vmatprep.subr.bf16.mxu0 0
    %3612 = vmatpush2.bf16.msra.mxu0 0
    %3613 = vmatprep.subr.bf16.mxu0 0
    %3614 = vmatpush2.bf16.msra.mxu0 0
    %3615 = vmatprep.subr.bf16.mxu0 0
    %3616 = vmatpush2.bf16.msra.mxu0 0
    %3617 = vmatprep.subr.bf16.mxu0 0
    %3618 = vmatpush2.bf16.msra.mxu0 0
    %3619 = vmatprep.mubr.bf16.mxu0 0
    %3620 = vmatmul.mubr.bf16.gmra.mxu0 %v3585
    %v3621 = vpop.f32.mrf.mxu0
    %v3622 = vadd.f32 %v39, %v3621
    %v3623 = vpop.f32.mrf.mxu0
    %v3624 = vpop.f32.mrf.mxu0
    %v3625 = vpop.f32.mrf.mxu0
    %3626 = vdwg.mxu0
    %v3627 = vtanh.pop %v3622
    %v3629 = vsel %vm50, %v3583, 0
    %3631 = vmatprep.subr.bf16.mxu0 0
    %3632 = vmatpush1.bf16.msra.mxu0 0
    %3633 = vmatprep.subr.bf16.mxu0 0
    %3634 = vmatpush1.bf16.msra.mxu0 0
    %3635 = vmatprep.subr.bf16.mxu0 0
    %3636 = vmatpush1.bf16.msra.mxu0 0
    %3637 = vmatprep.subr.bf16.mxu0 0
    %3638 = vmatpush1.bf16.msra.mxu0 0
    %3639 = vmatprep.subr.bf16.mxu0 0
    %3640 = vmatpush1.bf16.msra.mxu0 0
    %3641 = vmatprep.subr.bf16.mxu0 0
    %3642 = vmatpush1.bf16.msra.mxu0 0
    %3643 = vmatprep.subr.bf16.mxu0 0
    %3644 = vmatpush1.bf16.msra.mxu0 %v64
    %3645 = vmatprep.subr.bf16.mxu0 0
    %3646 = vmatpush1.bf16.msra.mxu0 %v63
    %3647 = vmatprep.subr.bf16.mxu0 0
    %3648 = vmatpush2.bf16.msra.mxu0 0
    %3649 = vmatprep.subr.bf16.mxu0 0
    %3650 = vmatpush2.bf16.msra.mxu0 0
    %3651 = vmatprep.subr.bf16.mxu0 0
    %3652 = vmatpush2.bf16.msra.mxu0 0
    %3653 = vmatprep.subr.bf16.mxu0 0
    %3654 = vmatpush2.bf16.msra.mxu0 0
    %3655 = vmatprep.subr.bf16.mxu0 0
    %3656 = vmatpush2.bf16.msra.mxu0 0
    %3657 = vmatprep.subr.bf16.mxu0 0
    %3658 = vmatpush2.bf16.msra.mxu0 0
    %3659 = vmatprep.subr.bf16.mxu0 0
    %3660 = vmatpush2.bf16.msra.mxu0 0
    %3661 = vmatprep.subr.bf16.mxu0 0
    %3662 = vmatpush2.bf16.msra.mxu0 0
    %3663 = vmatprep.mubr.bf16.mxu0 0
    %3664 = vmatmul.mubr.bf16.gmra.mxu0 %v3629
    %v3665 = vpop.f32.mrf.mxu0
    %v3666 = vadd.f32 %v39, %v3665
    %v3667 = vpop.f32.mrf.mxu0
    %v3668 = vpop.f32.mrf.mxu0
    %v3669 = vpop.f32.mrf.mxu0
    %3670 = vdwg.mxu0
    %v3671 = vtanh.pop %v3666
    %v3672 = vpack.c.bf16 %v3627, %v3627
    %v3674 = vsel %vm180, %v3672, 0
    %3676 = vmatprep.subr.bf16.mxu0 0
    %3677 = vmatpush1.bf16.msra.mxu0 0
    %3678 = vmatprep.subr.bf16.mxu0 0
    %3679 = vmatpush1.bf16.msra.mxu0 0
    %3680 = vmatprep.subr.bf16.mxu0 0
    %3681 = vmatpush1.bf16.msra.mxu0 0
    %3682 = vmatprep.subr.bf16.mxu0 0
    %3683 = vmatpush1.bf16.msra.mxu0 0
    %3684 = vmatprep.subr.bf16.mxu0 0
    %3685 = vmatpush1.bf16.msra.mxu0 %v175
    %3686 = vmatprep.subr.bf16.mxu0 0
    %3687 = vmatpush1.bf16.msra.mxu0 %v174
    %3688 = vmatprep.subr.bf16.mxu0 0
    %3689 = vmatpush1.bf16.msra.mxu0 %v173
    %3690 = vmatprep.subr.bf16.mxu0 0
    %3691 = vmatpush1.bf16.msra.mxu0 %v172
    %3692 = vmatprep.subr.bf16.mxu0 0
    %3693 = vmatpush2.bf16.msra.mxu0 0
    %3694 = vmatprep.subr.bf16.mxu0 0
    %3695 = vmatpush2.bf16.msra.mxu0 0
    %3696 = vmatprep.subr.bf16.mxu0 0
    %3697 = vmatpush2.bf16.msra.mxu0 0
    %3698 = vmatprep.subr.bf16.mxu0 0
    %3699 = vmatpush2.bf16.msra.mxu0 0
    %3700 = vmatprep.subr.bf16.mxu0 0
    %3701 = vmatpush2.bf16.msra.mxu0 0
    %3702 = vmatprep.subr.bf16.mxu0 0
    %3703 = vmatpush2.bf16.msra.mxu0 0
    %3704 = vmatprep.subr.bf16.mxu0 0
    %3705 = vmatpush2.bf16.msra.mxu0 0
    %3706 = vmatprep.subr.bf16.mxu0 0
    %3707 = vmatpush2.bf16.msra.mxu0 0
    %3708 = vmatprep.mubr.bf16.mxu0 0
    %3709 = vmatmul.mubr.bf16.gmra.mxu0 %v3674
    %v3710 = vpop.f32.mrf.mxu0
    %v3711 = vadd.f32 %v46, %v3710
    %v3712 = vpop.f32.mrf.mxu0
    %v3713 = vpop.f32.mrf.mxu0
    %v3714 = vpop.f32.mrf.mxu0
    %3715 = vdwg.mxu0
    %v3716 = vpack.c.bf16 %v3671, %v3671
    %v3718 = vsel %vm180, %v3716, 0
    %3720 = vmatprep.subr.bf16.mxu0 0
    %3721 = vmatpush1.bf16.msra.mxu0 0
    %3722 = vmatprep.subr.bf16.mxu0 0
    %3723 = vmatpush1.bf16.msra.mxu0 0
    %3724 = vmatprep.subr.bf16.mxu0 0
    %3725 = vmatpush1.bf16.msra.mxu0 0
    %3726 = vmatprep.subr.bf16.mxu0 0
    %3727 = vmatpush1.bf16.msra.mxu0 0
    %3728 = vmatprep.subr.bf16.mxu0 0
    %3729 = vmatpush1.bf16.msra.mxu0 %v175
    %3730 = vmatprep.subr.bf16.mxu0 0
    %3731 = vmatpush1.bf16.msra.mxu0 %v174
    %3732 = vmatprep.subr.bf16.mxu0 0
    %3733 = vmatpush1.bf16.msra.mxu0 %v173
    %3734 = vmatprep.subr.bf16.mxu0 0
    %3735 = vmatpush1.bf16.msra.mxu0 %v172
    %3736 = vmatprep.subr.bf16.mxu0 0
    %3737 = vmatpush2.bf16.msra.mxu0 0
    %3738 = vmatprep.subr.bf16.mxu0 0
    %3739 = vmatpush2.bf16.msra.mxu0 0
    %3740 = vmatprep.subr.bf16.mxu0 0
    %3741 = vmatpush2.bf16.msra.mxu0 0
    %3742 = vmatprep.subr.bf16.mxu0 0
    %3743 = vmatpush2.bf16.msra.mxu0 0
    %3744 = vmatprep.subr.bf16.mxu0 0
    %3745 = vmatpush2.bf16.msra.mxu0 0
    %3746 = vmatprep.subr.bf16.mxu0 0
    %3747 = vmatpush2.bf16.msra.mxu0 0
    %3748 = vmatprep.subr.bf16.mxu0 0
    %3749 = vmatpush2.bf16.msra.mxu0 0
    %3750 = vmatprep.subr.bf16.mxu0 0
    %3751 = vmatpush2.bf16.msra.mxu0 0
    %3752 = vmatprep.mubr.bf16.mxu0 0
    %3753 = vmatmul.mubr.bf16.gmra.mxu0 %v3718
    %v3754 = vpop.f32.mrf.mxu0
    %v3755 = vadd.f32 %v46, %v3754
    %v3756 = vpop.f32.mrf.mxu0
    %v3757 = vpop.f32.mrf.mxu0
    %v3758 = vpop.f32.mrf.mxu0
    %3759 = vdwg.mxu0
    %v3760 = vadd.f32 %v3349, %v3531
    %v3761 = vmul.f32 %v3760, 2.0
    %v3762 = vadd.f32 %v3167, %v3761
    %v3763 = vadd.f32 %v3762, %v3711
    %v3764 = vmul.f32 %v3763, 0.16666667
    %v3765 = vadd.f32 %v3028, %v3764
    %v3766 = vadd.f32 %v3393, %v3575
    %v3767 = vmul.f32 %v3766, 2.0
    %v3768 = vadd.f32 %v3211, %v3767
    %v3769 = vadd.f32 %v3768, %v3755
    %v3770 = vmul.f32 %v3769, 0.16666667
    %v3771 = vadd.f32 %v3034, %v3770
    %s3772 = scalar_lea.vmem [#allocation2], 80
    %3773 = vst.msk [vmem:[%s3772] sm:$0xff] %vm50, %v3765
    %3774 = vst.msk [vmem:[%s3772 + $0x8] sm:$0xff] %vm50, %v3771
    // Predicated region
    $region22: #{tpu_custom_call.1} parent=1 // pred_check
      _
    $region23: #{tpu_custom_call.1} parent=1 // pred_check_branch
      %3776 = sbr.rel (0) target = $region25
    $region24: #{tpu_custom_call.1} parent=1 // pred_region
      %s3778 = ssub.s32 1536, 1536
      %3779 = vsyncadd [#allocation3], %s3778
      %s3780 = sshll.u32 [#allocation2], 4
      %s3781 = int_to_ptr.vmem [resolvable:$true] %s3780
      %3786 = dma.vmem_to_hbm [thread:$0]  %s3781, 1536, %s5, [#allocation3], 128, 128, 8
    $region25: #{tpu_custom_call.1} parent=1 // pred_fallthru
      _
    // Predicated region
    $region26: #{tpu_custom_call.1} parent=1 // pred_check
      _
    $region27: #{tpu_custom_call.1} parent=1 // pred_check_branch
      %3788 = sbr.rel (0) target = $region29
    $region28: #{tpu_custom_call.1} parent=1 // pred_region
      %3789 = dma.done [#allocation3], 1536
    $region29: #{tpu_custom_call.1} parent=1 // pred_fallthru
      _
    %3790 = vsyncpa [#allocation3], 1

</llo_original>
